<compile_context>
chip_gen: v7x
topology: tpu7x:2x2x1
jax: 0.10.0
libtpu: 0.0.40
codegen_flags: <defaults>
</compile_context>

<pallas_src>
import functools

import numpy as np
import jax
import jax.numpy as jnp
from jax.experimental import pallas as pl
from jax.experimental.pallas import tpu as pltpu


# ---------------------------------------------------------------------------
# 3D sin/cos positional embedding (host-side, deterministic, numpy)
# ---------------------------------------------------------------------------
def _get_1d_sincos_pos_embed_from_grid(embed_dim, pos):
    omega = np.arange(embed_dim // 2, dtype=np.float64)
    omega /= embed_dim / 2.0
    omega = 1.0 / 10000 ** omega
    out = np.einsum("m,d->md", pos.reshape(-1).astype(np.float64), omega)
    return np.concatenate([np.sin(out), np.cos(out)], axis=1)


def _get_2d_sincos_pos_embed_from_grid(embed_dim, grid):
    emb_h = _get_1d_sincos_pos_embed_from_grid(embed_dim // 2, grid[0])
    emb_w = _get_1d_sincos_pos_embed_from_grid(embed_dim // 2, grid[1])
    return np.concatenate([emb_h, emb_w], axis=1)


def get_3d_sincos_pos_embed(embed_dim, grid_size, t_size):
    embed_dim_spatial = embed_dim // 4 * 3
    embed_dim_temporal = embed_dim // 4

    grid_h = np.arange(grid_size, dtype=np.float64)
    grid_w = np.arange(grid_size, dtype=np.float64)
    grid = np.meshgrid(grid_w, grid_h)  # w goes first
    grid = np.stack(grid, axis=0).reshape([2, 1, grid_size, grid_size])
    pos_embed_spatial = _get_2d_sincos_pos_embed_from_grid(embed_dim_spatial, grid)

    grid_t = np.arange(t_size, dtype=np.float64)
    pos_embed_temporal = _get_1d_sincos_pos_embed_from_grid(embed_dim_temporal, grid_t)

    pos_embed_temporal = np.repeat(pos_embed_temporal[:, None, :], grid_size ** 2, axis=1)
    pos_embed_spatial = np.repeat(pos_embed_spatial[None, :, :], t_size, axis=0)
    pos_embed = np.concatenate([pos_embed_temporal, pos_embed_spatial], axis=-1)
    return pos_embed.reshape(-1, embed_dim)  # [t*g*g, embed_dim]


# ---------------------------------------------------------------------------
# In-kernel helpers (pure jnp / pl; traced inside the Pallas kernel body)
# ---------------------------------------------------------------------------
def _layernorm(x, g, b, eps=1e-5):
    mu = jnp.mean(x, axis=-1, keepdims=True)
    var = jnp.mean(jnp.square(x - mu), axis=-1, keepdims=True)
    return (x - mu) * jax.lax.rsqrt(var + eps) * g + b


def _softmax(s):
    # Divide replaced by an EUP reciprocal (+ 1 Newton step -> ~f32-exact) and
    # a broadcast multiply; the EUP slot is otherwise idle here.
    s = s - jnp.max(s, axis=-1, keepdims=True)
    p = jnp.exp(s)
    denom = jnp.sum(p, axis=-1, keepdims=True)
    inv = pl.reciprocal(denom, approx=True)
    inv = inv * (2.0 - denom * inv)
    return p * inv


# ---------------------------------------------------------------------------
# Fused kernel:  cross_transformer.get_attn(q, k)  ->  coord = attn @ pe
#                ->  self_transformer(coord, coord)     (pre-norm ViT block)
# ---------------------------------------------------------------------------
def pose_kernel(q_ref, k_ref, pe_ref,
                cg_ref, cb_ref, cwq_ref, cbq_ref, cwk_ref, cbk_ref,
                g1_ref, b1_ref, swq_ref, sbq_ref, swk_ref, sbk_ref,
                swv_ref, sbv_ref, wo_ref, bo_ref,
                g2_ref, b2_ref, w1_ref, bm1_ref, w2_ref, bm2_ref,
                out_ref):
    bb, C, Nq = q_ref.shape
    Nk = k_ref.shape[2]
    Dc = pe_ref.shape[1]

    # Weights / biases / pos-embed loaded once per grid step.
    pe = pe_ref[...]
    cg, cb = cg_ref[...], cb_ref[...]
    cwq, cbq = cwq_ref[...], cbq_ref[...]
    cwk, cbk = cwk_ref[...], cbk_ref[...]
    g1, b1 = g1_ref[...], b1_ref[...]
    swq, sbq = swq_ref[...], sbq_ref[...]
    swk, sbk = swk_ref[...], sbk_ref[...]
    swv, sbv = swv_ref[...], sbv_ref[...]
    wo, bo = wo_ref[...], bo_ref[...]
    g2, b2 = g2_ref[...], b2_ref[...]
    w1, bm1 = w1_ref[...], bm1_ref[...]
    w2, bm2 = w2_ref[...], bm2_ref[...]

    # ---- cross block: attn(q, k) and coord = attn @ pe ----------------------
    # Inputs are channel-first; one batched in-VMEM transpose per grid step,
    # then batch-stack the shared-weight projections into (bb*N, C) matmuls
    # (Nq alone is only 16 MXU rows per push).
    q_t = jnp.transpose(q_ref[...], (0, 2, 1)).reshape(bb * Nq, C)   # (bb*Nq, C)
    k_t = jnp.transpose(k_ref[...], (0, 2, 1)).reshape(bb * Nk, C)   # (bb*Nk, C)
    qn = _layernorm(q_t, cg, cb)
    kn = _layernorm(k_t, cg, cb)
    # 1/sqrt(C) is pre-folded into (cwq, cbq) by prepare_params().
    qh = (jnp.dot(qn, cwq, preferred_element_type=jnp.float32) + cbq).reshape(bb, Nq, C)
    kh = (jnp.dot(kn, cwk, preferred_element_type=jnp.float32) + cbk).reshape(bb, Nk, C)
    # Contract the shared feature axis directly — no kh.T materialised.
    scores = jnp.einsum("bqd,bkd->bqk", qh, kh,
                        preferred_element_type=jnp.float32)           # (bb, Nq, Nk)
    attn = _softmax(scores)
    coord = jnp.dot(attn.reshape(bb * Nq, Nk), pe,
                    preferred_element_type=jnp.float32)               # (bb*Nq, Dc)

    # ---- self block: pre-norm attention + MLP (batch-stacked matmuls) -------
    x = coord
    xn = _layernorm(x, g1, b1)
    # Q/K/V kept as three separate (Dc, Dc) matmuls: at Dc = 32 a fused 3*Dc
    # projection would require intra-lane-tile slicing (pure shuffle cost).
    # 1/sqrt(Dc) is pre-folded into (swq, sbq).
    q2 = (jnp.dot(xn, swq, preferred_element_type=jnp.float32) + sbq).reshape(bb, Nq, Dc)
    k2 = (jnp.dot(xn, swk, preferred_element_type=jnp.float32) + sbk).reshape(bb, Nq, Dc)
    v2 = (jnp.dot(xn, swv, preferred_element_type=jnp.float32) + sbv).reshape(bb, Nq, Dc)
    a2 = _softmax(jnp.einsum("bqd,bkd->bqk", q2, k2,
                             preferred_element_type=jnp.float32))     # (bb, Nq, Nq)
    y = jnp.einsum("bqk,bkd->bqd", a2, v2,
                   preferred_element_type=jnp.float32).reshape(bb * Nq, Dc)
    y = jnp.dot(y, wo, preferred_element_type=jnp.float32) + bo
    x = x + y                                                         # residual 1
    xn2 = _layernorm(x, g2, b2)
    h = jnp.dot(xn2, w1, preferred_element_type=jnp.float32) + bm1
    h = jax.nn.gelu(h, approximate=True)
    h = jnp.dot(h, w2, preferred_element_type=jnp.float32) + bm2
    x = x + h                                                         # residual 2

    # Token-major, lane-dense store (last dim = Dc); the tiny channel-first
    # permute happens once in the wrapper.
    out_ref[...] = x.reshape(bb, Nq, Dc)


# ---------------------------------------------------------------------------
# Wrapper
# ---------------------------------------------------------------------------
def _batch_block(B, max_stack=4):
    """Batches handled per grid step (pure function of B; no device sniffing).

    Keep >= 2 grid steps whenever B allows it so input DMA pipelines on
    single-TC chips and the "parallel" batch axis can shard across both
    TensorCores on v7x, while stacking up to `max_stack` batches per step so
    the shared-weight matmuls feed the MXU more rows per push.
    """
    if B <= 1:
        return max(B, 1)
    best = 1
    for bb in range(1, min(max_stack, B) + 1):
        if B % bb == 0 and B // bb >= 2:
            best = bb
    return best


def prepare_params(params):
    """One-time (host-side) weight transform: fold the 1/sqrt(dim) attention
    score scales into the Q projection weight AND bias of each block, so the
    kernel skips the per-batch score multiplies."""
    pc = dict(params["cross"])
    ps = dict(params["self"])
    c_scale = 1.0 / np.sqrt(pc["wq"].shape[0])
    s_scale = 1.0 / np.sqrt(ps["wq"].shape[0])
    pc["wq"] = pc["wq"] * c_scale
    pc["bq"] = pc["bq"] * c_scale
    ps["wq"] = ps["wq"] * s_scale
    ps["bq"] = ps["bq"] * s_scale
    return {"cross": pc, "self": ps}


def pose_transformer_forward(kparams, pe, q, k):
    """q: [B, C, Nq], k: [B, C, Nk] channel-first.  Returns [B, coord_dim, Nq].

    `kparams` must come from prepare_params() (score scales pre-folded)."""
    pc, ps = kparams["cross"], kparams["self"]
    B, C, Nq = q.shape
    Nk = k.shape[2]
    Dc = pe.shape[-1]
    H = ps["w1"].shape[1]

    bb = _batch_block(B)
    grid = (B // bb,)

    def rep(shape):
        # Whole-array block, constant across the grid (weights / biases / pe).
        return pl.BlockSpec(shape, lambda b: (0,) * len(shape))

    out_tok = pl.pallas_call(
        pose_kernel,
        out_shape=jax.ShapeDtypeStruct((B, Nq, Dc), jnp.float32),
        grid=grid,
        in_specs=[
            pl.BlockSpec((bb, C, Nq), lambda b: (b, 0, 0)),   # q (channel-first)
            pl.BlockSpec((bb, C, Nk), lambda b: (b, 0, 0)),   # k (channel-first)
            rep((Nk, Dc)),                                    # pos embed
            rep((1, C)), rep((1, C)),                         # cross LN
            rep((C, C)), rep((1, C)),                         # cross wq (scaled), bq
            rep((C, C)), rep((1, C)),                         # cross wk, bk
            rep((1, Dc)), rep((1, Dc)),                       # self LN1
            rep((Dc, Dc)), rep((1, Dc)),                      # self wq (scaled), bq
            rep((Dc, Dc)), rep((1, Dc)),                      # self wk, bk
            rep((Dc, Dc)), rep((1, Dc)),                      # self wv, bv
            rep((Dc, Dc)), rep((1, Dc)),                      # self wo, bo
            rep((1, Dc)), rep((1, Dc)),                       # self LN2
            rep((Dc, H)), rep((1, H)),                        # MLP fc1
            rep((H, Dc)), rep((1, Dc)),                       # MLP fc2
        ],
        out_specs=pl.BlockSpec((bb, Nq, Dc), lambda b: (b, 0, 0)),
        compiler_params=pltpu.CompilerParams(dimension_semantics=("parallel",)),
    )(q, k, pe,
      pc["ln_g"], pc["ln_b"], pc["wq"], pc["bq"], pc["wk"], pc["bk"],
      ps["ln1_g"], ps["ln1_b"], ps["wq"], ps["bq"], ps["wk"], ps["bk"],
      ps["wv"], ps["bv"], ps["wo"], ps["bo"],
      ps["ln2_g"], ps["ln2_b"], ps["w1"], ps["b1"], ps["w2"], ps["b2"])

    # Tiny (B*Nq*Dc*4 bytes) permute back to the PyTorch channel-first layout;
    # done outside the kernel so the kernel's stores stay lane-dense.
    return jnp.transpose(out_tok, (0, 2, 1))


# ---------------------------------------------------------------------------
# Pure-JAX reference (same math, raw/unscaled params) for a correctness check.
# ---------------------------------------------------------------------------
def _reference_forward(params, pe, q, k):
    pc, ps = params["cross"], params["self"]
    C = q.shape[1]
    Dc = pe.shape[-1]
    q_t = jnp.transpose(q, (0, 2, 1))
    k_t = jnp.transpose(k, (0, 2, 1))
    qn = _layernorm(q_t, pc["ln_g"], pc["ln_b"])
    kn = _layernorm(k_t, pc["ln_g"], pc["ln_b"])
    qh = qn @ pc["wq"] + pc["bq"]
    kh = kn @ pc["wk"] + pc["bk"]
    s = jnp.einsum("bqd,bkd->bqk", qh, kh) / np.sqrt(C)
    attn = jax.nn.softmax(s, axis=-1)
    coord = jnp.einsum("bqk,kd->bqd", attn, pe)
    x = coord
    xn = _layernorm(x, ps["ln1_g"], ps["ln1_b"])
    q2 = xn @ ps["wq"] + ps["bq"]
    k2 = xn @ ps["wk"] + ps["bk"]
    v2 = xn @ ps["wv"] + ps["bv"]
    a = jax.nn.softmax(jnp.einsum("bqd,bkd->bqk", q2, k2) / np.sqrt(Dc), -1)
    y = jnp.einsum("bqk,bkd->bqd", a, v2) @ ps["wo"] + ps["bo"]
    x = x + y
    xn2 = _layernorm(x, ps["ln2_g"], ps["ln2_b"])
    h = jax.nn.gelu(xn2 @ ps["w1"] + ps["b1"], approximate=True)
    x = x + (h @ ps["w2"] + ps["b2"])
    return jnp.transpose(x, (0, 2, 1))


# ---------------------------------------------------------------------------
# Deterministic parameter init (xavier_uniform weights; small NONZERO biases so
# the bias paths of the kernel are actually exercised by the test).
# ---------------------------------------------------------------------------
def _xavier(key, shape):
    a = np.sqrt(6.0 / (shape[0] + shape[1]))
    return jax.random.uniform(key, shape, jnp.float32, -a, a)


def init_params(key, dim, mlp_ratio):
    hid = dim * mlp_ratio
    keys = jax.random.split(key, 16)

    def bias(k, n):
        return 0.02 * jax.random.normal(k, (1, n), jnp.float32)

    cross = dict(
        ln_g=jnp.ones((1, dim), jnp.float32),
        ln_b=jnp.zeros((1, dim), jnp.float32),
        wq=_xavier(keys[0], (dim, dim)), bq=bias(keys[1], dim),
        wk=_xavier(keys[2], (dim, dim)), bk=bias(keys[3], dim),
    )
    selfp = dict(
        ln1_g=jnp.ones((1, dim), jnp.float32),
        ln1_b=jnp.zeros((1, dim), jnp.float32),
        wq=_xavier(keys[4], (dim, dim)), bq=bias(keys[5], dim),
        wk=_xavier(keys[6], (dim, dim)), bk=bias(keys[7], dim),
        wv=_xavier(keys[8], (dim, dim)), bv=bias(keys[9], dim),
        wo=_xavier(keys[10], (dim, dim)), bo=bias(keys[11], dim),
        ln2_g=jnp.ones((1, dim), jnp.float32),
        ln2_b=jnp.zeros((1, dim), jnp.float32),
        w1=_xavier(keys[12], (dim, hid)), b1=bias(keys[13], hid),
        w2=_xavier(keys[14], (hid, dim)), b2=bias(keys[15], dim),
    )
    return {"cross": cross, "self": selfp}


# ---------------------------------------------------------------------------
if __name__ == "__main__":
    # Small-shape config consistent with the module's forward:
    #   q: [B, dim, Nq], k: [B, dim, Nk] with Nk = inp_res**3 (volume tokens).
    inp_res, dim, mlp_ratio, coord_dim = 4, 32, 1, 32
    B, Nq = 2, 16
    Nk = inp_res ** 3  # 64

    key = jax.random.PRNGKey(0)
    kq, kk, kp = jax.random.split(key, 3)

    q = jax.random.normal(kq, (B, dim, Nq), jnp.float32)
    k = jax.random.normal(kk, (B, dim, Nk), jnp.float32)

    pe_np = get_3d_sincos_pos_embed(coord_dim, inp_res, inp_res) * 0.1
    pe = jnp.asarray(pe_np.reshape(Nk, coord_dim), jnp.float32)

    params = init_params(kp, dim, mlp_ratio)
    kparams = prepare_params(params)   # one-time score-scale fold into Q proj

    fwd = jax.jit(functools.partial(pose_transformer_forward, kparams, pe))
    out = fwd(q, k)
    jax.block_until_ready(out)

    ref = _reference_forward(params, pe, q, k)
    np.testing.assert_allclose(np.asarray(out), np.asarray(ref), rtol=1e-3, atol=1e-3)

    assert out.shape == (B, coord_dim, Nq)
    print("KERNEL_OK")
</pallas_src>

<mosaic_0001>
module attributes {stable_mosaic.version = 11 : i64} {
  func.func @pose_kernel(%arg0: i32, %arg1: memref<1x32x16xf32, #tpu.memory_space<vmem>>, %arg2: memref<1x32x64xf32, #tpu.memory_space<vmem>>, %arg3: memref<64x32xf32, #tpu.memory_space<vmem>>, %arg4: memref<1x32xf32, #tpu.memory_space<vmem>>, %arg5: memref<1x32xf32, #tpu.memory_space<vmem>>, %arg6: memref<32x32xf32, #tpu.memory_space<vmem>>, %arg7: memref<1x32xf32, #tpu.memory_space<vmem>>, %arg8: memref<32x32xf32, #tpu.memory_space<vmem>>, %arg9: memref<1x32xf32, #tpu.memory_space<vmem>>, %arg10: memref<1x32xf32, #tpu.memory_space<vmem>>, %arg11: memref<1x32xf32, #tpu.memory_space<vmem>>, %arg12: memref<32x32xf32, #tpu.memory_space<vmem>>, %arg13: memref<1x32xf32, #tpu.memory_space<vmem>>, %arg14: memref<32x32xf32, #tpu.memory_space<vmem>>, %arg15: memref<1x32xf32, #tpu.memory_space<vmem>>, %arg16: memref<32x32xf32, #tpu.memory_space<vmem>>, %arg17: memref<1x32xf32, #tpu.memory_space<vmem>>, %arg18: memref<32x32xf32, #tpu.memory_space<vmem>>, %arg19: memref<1x32xf32, #tpu.memory_space<vmem>>, %arg20: memref<1x32xf32, #tpu.memory_space<vmem>>, %arg21: memref<1x32xf32, #tpu.memory_space<vmem>>, %arg22: memref<32x32xf32, #tpu.memory_space<vmem>>, %arg23: memref<1x32xf32, #tpu.memory_space<vmem>>, %arg24: memref<32x32xf32, #tpu.memory_space<vmem>>, %arg25: memref<1x32xf32, #tpu.memory_space<vmem>>, %arg26: memref<1x16x32xf32, #tpu.memory_space<vmem>>) attributes {dimension_semantics = [#tpu.dimension_semantics<parallel>], iteration_bounds = array<i64: 2>, scalar_prefetch = 0 : i64, scratch_operands = 0 : i64, tpu.core_type = #tpu.core_type<tc>, window_params = [{transform_indices = @transform_0, window_bounds = array<i64: 1, 32, 16>}, {transform_indices = @transform_1, window_bounds = array<i64: 1, 32, 64>}, {pipeline_mode = #tpu.pipeline_mode<synchronous>, transform_indices = @transform_2, window_bounds = array<i64: 64, 32>}, {pipeline_mode = #tpu.pipeline_mode<synchronous>, transform_indices = @transform_3, window_bounds = array<i64: 1, 32>}, {pipeline_mode = #tpu.pipeline_mode<synchronous>, transform_indices = @transform_4, window_bounds = array<i64: 1, 32>}, {pipeline_mode = #tpu.pipeline_mode<synchronous>, transform_indices = @transform_5, window_bounds = array<i64: 32, 32>}, {pipeline_mode = #tpu.pipeline_mode<synchronous>, transform_indices = @transform_6, window_bounds = array<i64: 1, 32>}, {pipeline_mode = #tpu.pipeline_mode<synchronous>, transform_indices = @transform_7, window_bounds = array<i64: 32, 32>}, {pipeline_mode = #tpu.pipeline_mode<synchronous>, transform_indices = @transform_8, window_bounds = array<i64: 1, 32>}, {pipeline_mode = #tpu.pipeline_mode<synchronous>, transform_indices = @transform_9, window_bounds = array<i64: 1, 32>}, {pipeline_mode = #tpu.pipeline_mode<synchronous>, transform_indices = @transform_10, window_bounds = array<i64: 1, 32>}, {pipeline_mode = #tpu.pipeline_mode<synchronous>, transform_indices = @transform_11, window_bounds = array<i64: 32, 32>}, {pipeline_mode = #tpu.pipeline_mode<synchronous>, transform_indices = @transform_12, window_bounds = array<i64: 1, 32>}, {pipeline_mode = #tpu.pipeline_mode<synchronous>, transform_indices = @transform_13, window_bounds = array<i64: 32, 32>}, {pipeline_mode = #tpu.pipeline_mode<synchronous>, transform_indices = @transform_14, window_bounds = array<i64: 1, 32>}, {pipeline_mode = #tpu.pipeline_mode<synchronous>, transform_indices = @transform_15, window_bounds = array<i64: 32, 32>}, {pipeline_mode = #tpu.pipeline_mode<synchronous>, transform_indices = @transform_16, window_bounds = array<i64: 1, 32>}, {pipeline_mode = #tpu.pipeline_mode<synchronous>, transform_indices = @transform_17, window_bounds = array<i64: 32, 32>}, {pipeline_mode = #tpu.pipeline_mode<synchronous>, transform_indices = @transform_18, window_bounds = array<i64: 1, 32>}, {pipeline_mode = #tpu.pipeline_mode<synchronous>, transform_indices = @transform_19, window_bounds = array<i64: 1, 32>}, {pipeline_mode = #tpu.pipeline_mode<synchronous>, transform_indices = @transform_20, window_bounds = array<i64: 1, 32>}, {pipeline_mode = #tpu.pipeline_mode<synchronous>, transform_indices = @transform_21, window_bounds = array<i64: 32, 32>}, {pipeline_mode = #tpu.pipeline_mode<synchronous>, transform_indices = @transform_22, window_bounds = array<i64: 1, 32>}, {pipeline_mode = #tpu.pipeline_mode<synchronous>, transform_indices = @transform_23, window_bounds = array<i64: 32, 32>}, {pipeline_mode = #tpu.pipeline_mode<synchronous>, transform_indices = @transform_24, window_bounds = array<i64: 1, 32>}, {transform_indices = @transform_25, window_bounds = array<i64: 1, 16, 32>}]} {
    %c0 = arith.constant 0 : index
    %c0_0 = arith.constant 0 : index
    %0 = vector.load %arg3[%c0, %c0_0] : memref<64x32xf32, #tpu.memory_space<vmem>>, vector<64x32xf32>
    %c0_1 = arith.constant 0 : index
    %c0_2 = arith.constant 0 : index
    %1 = vector.load %arg4[%c0_1, %c0_2] : memref<1x32xf32, #tpu.memory_space<vmem>>, vector<1x32xf32>
    %c0_3 = arith.constant 0 : index
    %c0_4 = arith.constant 0 : index
    %2 = vector.load %arg5[%c0_3, %c0_4] : memref<1x32xf32, #tpu.memory_space<vmem>>, vector<1x32xf32>
    %c0_5 = arith.constant 0 : index
    %c0_6 = arith.constant 0 : index
    %3 = vector.load %arg6[%c0_5, %c0_6] : memref<32x32xf32, #tpu.memory_space<vmem>>, vector<32x32xf32>
    %c0_7 = arith.constant 0 : index
    %c0_8 = arith.constant 0 : index
    %4 = vector.load %arg7[%c0_7, %c0_8] : memref<1x32xf32, #tpu.memory_space<vmem>>, vector<1x32xf32>
    %c0_9 = arith.constant 0 : index
    %c0_10 = arith.constant 0 : index
    %5 = vector.load %arg8[%c0_9, %c0_10] : memref<32x32xf32, #tpu.memory_space<vmem>>, vector<32x32xf32>
    %c0_11 = arith.constant 0 : index
    %c0_12 = arith.constant 0 : index
    %6 = vector.load %arg9[%c0_11, %c0_12] : memref<1x32xf32, #tpu.memory_space<vmem>>, vector<1x32xf32>
    %c0_13 = arith.constant 0 : index
    %c0_14 = arith.constant 0 : index
    %7 = vector.load %arg10[%c0_13, %c0_14] : memref<1x32xf32, #tpu.memory_space<vmem>>, vector<1x32xf32>
    %c0_15 = arith.constant 0 : index
    %c0_16 = arith.constant 0 : index
    %8 = vector.load %arg11[%c0_15, %c0_16] : memref<1x32xf32, #tpu.memory_space<vmem>>, vector<1x32xf32>
    %c0_17 = arith.constant 0 : index
    %c0_18 = arith.constant 0 : index
    %9 = vector.load %arg12[%c0_17, %c0_18] : memref<32x32xf32, #tpu.memory_space<vmem>>, vector<32x32xf32>
    %c0_19 = arith.constant 0 : index
    %c0_20 = arith.constant 0 : index
    %10 = vector.load %arg13[%c0_19, %c0_20] : memref<1x32xf32, #tpu.memory_space<vmem>>, vector<1x32xf32>
    %c0_21 = arith.constant 0 : index
    %c0_22 = arith.constant 0 : index
    %11 = vector.load %arg14[%c0_21, %c0_22] : memref<32x32xf32, #tpu.memory_space<vmem>>, vector<32x32xf32>
    %c0_23 = arith.constant 0 : index
    %c0_24 = arith.constant 0 : index
    %12 = vector.load %arg15[%c0_23, %c0_24] : memref<1x32xf32, #tpu.memory_space<vmem>>, vector<1x32xf32>
    %c0_25 = arith.constant 0 : index
    %c0_26 = arith.constant 0 : index
    %13 = vector.load %arg16[%c0_25, %c0_26] : memref<32x32xf32, #tpu.memory_space<vmem>>, vector<32x32xf32>
    %c0_27 = arith.constant 0 : index
    %c0_28 = arith.constant 0 : index
    %14 = vector.load %arg17[%c0_27, %c0_28] : memref<1x32xf32, #tpu.memory_space<vmem>>, vector<1x32xf32>
    %c0_29 = arith.constant 0 : index
    %c0_30 = arith.constant 0 : index
    %15 = vector.load %arg18[%c0_29, %c0_30] : memref<32x32xf32, #tpu.memory_space<vmem>>, vector<32x32xf32>
    %c0_31 = arith.constant 0 : index
    %c0_32 = arith.constant 0 : index
    %16 = vector.load %arg19[%c0_31, %c0_32] : memref<1x32xf32, #tpu.memory_space<vmem>>, vector<1x32xf32>
    %c0_33 = arith.constant 0 : index
    %c0_34 = arith.constant 0 : index
    %17 = vector.load %arg20[%c0_33, %c0_34] : memref<1x32xf32, #tpu.memory_space<vmem>>, vector<1x32xf32>
    %c0_35 = arith.constant 0 : index
    %c0_36 = arith.constant 0 : index
    %18 = vector.load %arg21[%c0_35, %c0_36] : memref<1x32xf32, #tpu.memory_space<vmem>>, vector<1x32xf32>
    %c0_37 = arith.constant 0 : index
    %c0_38 = arith.constant 0 : index
    %19 = vector.load %arg22[%c0_37, %c0_38] : memref<32x32xf32, #tpu.memory_space<vmem>>, vector<32x32xf32>
    %c0_39 = arith.constant 0 : index
    %c0_40 = arith.constant 0 : index
    %20 = vector.load %arg23[%c0_39, %c0_40] : memref<1x32xf32, #tpu.memory_space<vmem>>, vector<1x32xf32>
    %c0_41 = arith.constant 0 : index
    %c0_42 = arith.constant 0 : index
    %21 = vector.load %arg24[%c0_41, %c0_42] : memref<32x32xf32, #tpu.memory_space<vmem>>, vector<32x32xf32>
    %c0_43 = arith.constant 0 : index
    %c0_44 = arith.constant 0 : index
    %22 = vector.load %arg25[%c0_43, %c0_44] : memref<1x32xf32, #tpu.memory_space<vmem>>, vector<1x32xf32>
    %c0_45 = arith.constant 0 : index
    %c0_46 = arith.constant 0 : index
    %c0_47 = arith.constant 0 : index
    %23 = vector.load %arg1[%c0_45, %c0_46, %c0_47] : memref<1x32x16xf32, #tpu.memory_space<vmem>>, vector<1x32x16xf32>
    %24 = tpu.transpose %23, [0, 2, 1] : vector<1x32x16xf32> -> vector<1x16x32xf32>
    %25 = vector.shape_cast %24 : vector<1x16x32xf32> to vector<16x32xf32>
    %c0_48 = arith.constant 0 : index
    %c0_49 = arith.constant 0 : index
    %c0_50 = arith.constant 0 : index
    %26 = vector.load %arg2[%c0_48, %c0_49, %c0_50] : memref<1x32x64xf32, #tpu.memory_space<vmem>>, vector<1x32x64xf32>
    %27 = tpu.transpose %26, [0, 2, 1] : vector<1x32x64xf32> -> vector<1x64x32xf32>
    %28 = vector.shape_cast %27 : vector<1x64x32xf32> to vector<64x32xf32>
    %cst = arith.constant dense<0.000000e+00> : vector<16xf32>
    %29 = vector.multi_reduction <add>, %25, %cst [1] : vector<16x32xf32> to vector<16xf32>
    %30 = vector.shape_cast %29 : vector<16xf32> to vector<16x1xf32>
    %cst_51 = arith.constant 3.200000e+01 : f32
    %31 = vector.broadcast %cst_51 : f32 to vector<16x1xf32>
    %32 = arith.divf %30, %31 : vector<16x1xf32>
    %33 = vector.broadcast %32 : vector<16x1xf32> to vector<16x32xf32>
    %34 = arith.subf %25, %33 : vector<16x32xf32>
    %35 = arith.mulf %34, %34 : vector<16x32xf32>
    %cst_52 = arith.constant dense<0.000000e+00> : vector<16xf32>
    %36 = vector.multi_reduction <add>, %35, %cst_52 [1] : vector<16x32xf32> to vector<16xf32>
    %37 = vector.shape_cast %36 : vector<16xf32> to vector<16x1xf32>
    %cst_53 = arith.constant 3.200000e+01 : f32
    %38 = vector.broadcast %cst_53 : f32 to vector<16x1xf32>
    %39 = arith.divf %37, %38 : vector<16x1xf32>
    %40 = vector.broadcast %32 : vector<16x1xf32> to vector<16x32xf32>
    %41 = arith.subf %25, %40 : vector<16x32xf32>
    %cst_54 = arith.constant 9.99999974E-6 : f32
    %42 = vector.broadcast %cst_54 : f32 to vector<16x1xf32>
    %43 = arith.addf %39, %42 : vector<16x1xf32>
    %44 = math.rsqrt %43 : vector<16x1xf32>
    %45 = vector.broadcast %44 : vector<16x1xf32> to vector<16x32xf32>
    %46 = arith.mulf %41, %45 : vector<16x32xf32>
    %47 = vector.broadcast %1 : vector<1x32xf32> to vector<16x32xf32>
    %48 = arith.mulf %46, %47 : vector<16x32xf32>
    %49 = vector.broadcast %2 : vector<1x32xf32> to vector<16x32xf32>
    %50 = arith.addf %48, %49 : vector<16x32xf32>
    %cst_55 = arith.constant dense<0.000000e+00> : vector<64xf32>
    %51 = vector.multi_reduction <add>, %28, %cst_55 [1] : vector<64x32xf32> to vector<64xf32>
    %52 = vector.shape_cast %51 : vector<64xf32> to vector<64x1xf32>
    %cst_56 = arith.constant 3.200000e+01 : f32
    %53 = vector.broadcast %cst_56 : f32 to vector<64x1xf32>
    %54 = arith.divf %52, %53 : vector<64x1xf32>
    %55 = vector.broadcast %54 : vector<64x1xf32> to vector<64x32xf32>
    %56 = arith.subf %28, %55 : vector<64x32xf32>
    %57 = arith.mulf %56, %56 : vector<64x32xf32>
    %cst_57 = arith.constant dense<0.000000e+00> : vector<64xf32>
    %58 = vector.multi_reduction <add>, %57, %cst_57 [1] : vector<64x32xf32> to vector<64xf32>
    %59 = vector.shape_cast %58 : vector<64xf32> to vector<64x1xf32>
    %cst_58 = arith.constant 3.200000e+01 : f32
    %60 = vector.broadcast %cst_58 : f32 to vector<64x1xf32>
    %61 = arith.divf %59, %60 : vector<64x1xf32>
    %62 = vector.broadcast %54 : vector<64x1xf32> to vector<64x32xf32>
    %63 = arith.subf %28, %62 : vector<64x32xf32>
    %cst_59 = arith.constant 9.99999974E-6 : f32
    %64 = vector.broadcast %cst_59 : f32 to vector<64x1xf32>
    %65 = arith.addf %61, %64 : vector<64x1xf32>
    %66 = math.rsqrt %65 : vector<64x1xf32>
    %67 = vector.broadcast %66 : vector<64x1xf32> to vector<64x32xf32>
    %68 = arith.mulf %63, %67 : vector<64x32xf32>
    %69 = vector.broadcast %1 : vector<1x32xf32> to vector<64x32xf32>
    %70 = arith.mulf %68, %69 : vector<64x32xf32>
    %71 = vector.broadcast %2 : vector<1x32xf32> to vector<64x32xf32>
    %72 = arith.addf %70, %71 : vector<64x32xf32>
    %cst_60 = arith.constant dense<0.000000e+00> : vector<16x32xf32>
    %73 = tpu.matmul %50, %3, %cst_60 {dimension_numbers = #tpu.dot_dimension_numbers<[1], [0], [0], [1], [0, 0, 1, 1], [], []>} : vector<16x32xf32>, vector<32x32xf32>, vector<16x32xf32> -> vector<16x32xf32>
    %74 = vector.broadcast %4 : vector<1x32xf32> to vector<16x32xf32>
    %75 = arith.addf %73, %74 : vector<16x32xf32>
    %76 = vector.shape_cast %75 : vector<16x32xf32> to vector<1x16x32xf32>
    %cst_61 = arith.constant dense<0.000000e+00> : vector<64x32xf32>
    %77 = tpu.matmul %72, %5, %cst_61 {dimension_numbers = #tpu.dot_dimension_numbers<[1], [0], [0], [1], [0, 0, 1, 1], [], []>} : vector<64x32xf32>, vector<32x32xf32>, vector<64x32xf32> -> vector<64x32xf32>
    %78 = vector.broadcast %6 : vector<1x32xf32> to vector<64x32xf32>
    %79 = arith.addf %77, %78 : vector<64x32xf32>
    %80 = vector.shape_cast %79 : vector<64x32xf32> to vector<1x64x32xf32>
    "tpu.trace_start"() <{level = 10 : i32, message = "bqd,bkd->bqk"}> : () -> ()
    %cst_62 = arith.constant dense<0.000000e+00> : vector<1x16x64xf32>
    %81 = tpu.matmul %76, %80, %cst_62 {dimension_numbers = #tpu.dot_dimension_numbers<[2], [2], [1], [1], [0, 0, 0, 1, 1, 1], [0], [0]>} : vector<1x16x32xf32>, vector<1x64x32xf32>, vector<1x16x64xf32> -> vector<1x16x64xf32>
    "tpu.trace_stop"() : () -> ()
    %cst_63 = arith.constant dense<0xFF800000> : vector<1x16xf32>
    %82 = vector.multi_reduction <maximumf>, %81, %cst_63 [2] : vector<1x16x64xf32> to vector<1x16xf32>
    %83 = vector.shape_cast %82 : vector<1x16xf32> to vector<1x16x1xf32>
    %84 = vector.broadcast %83 : vector<1x16x1xf32> to vector<1x16x64xf32>
    %85 = arith.subf %81, %84 : vector<1x16x64xf32>
    %86 = math.exp %85 : vector<1x16x64xf32>
    %cst_64 = arith.constant dense<0.000000e+00> : vector<1x16xf32>
    %87 = vector.multi_reduction <add>, %86, %cst_64 [2] : vector<1x16x64xf32> to vector<1x16xf32>
    %88 = vector.shape_cast %87 : vector<1x16xf32> to vector<1x16x1xf32>
    %89 = tpu.reciprocal %88 {approx = true} : vector<1x16x1xf32> -> vector<1x16x1xf32>
    %90 = arith.mulf %88, %89 : vector<1x16x1xf32>
    %cst_65 = arith.constant 2.000000e+00 : f32
    %91 = vector.broadcast %cst_65 : f32 to vector<1x16x1xf32>
    %92 = arith.subf %91, %90 : vector<1x16x1xf32>
    %93 = arith.mulf %89, %92 : vector<1x16x1xf32>
    %94 = vector.broadcast %93 : vector<1x16x1xf32> to vector<1x16x64xf32>
    %95 = arith.mulf %86, %94 : vector<1x16x64xf32>
    %96 = vector.shape_cast %95 : vector<1x16x64xf32> to vector<16x64xf32>
    %cst_66 = arith.constant dense<0.000000e+00> : vector<16x32xf32>
    %97 = tpu.matmul %96, %0, %cst_66 {dimension_numbers = #tpu.dot_dimension_numbers<[1], [0], [0], [1], [0, 0, 1, 1], [], []>} : vector<16x64xf32>, vector<64x32xf32>, vector<16x32xf32> -> vector<16x32xf32>
    %cst_67 = arith.constant dense<0.000000e+00> : vector<16xf32>
    %98 = vector.multi_reduction <add>, %97, %cst_67 [1] : vector<16x32xf32> to vector<16xf32>
    %99 = vector.shape_cast %98 : vector<16xf32> to vector<16x1xf32>
    %cst_68 = arith.constant 3.200000e+01 : f32
    %100 = vector.broadcast %cst_68 : f32 to vector<16x1xf32>
    %101 = arith.divf %99, %100 : vector<16x1xf32>
    %102 = vector.broadcast %101 : vector<16x1xf32> to vector<16x32xf32>
    %103 = arith.subf %97, %102 : vector<16x32xf32>
    %104 = arith.mulf %103, %103 : vector<16x32xf32>
    %cst_69 = arith.constant dense<0.000000e+00> : vector<16xf32>
    %105 = vector.multi_reduction <add>, %104, %cst_69 [1] : vector<16x32xf32> to vector<16xf32>
    %106 = vector.shape_cast %105 : vector<16xf32> to vector<16x1xf32>
    %cst_70 = arith.constant 3.200000e+01 : f32
    %107 = vector.broadcast %cst_70 : f32 to vector<16x1xf32>
    %108 = arith.divf %106, %107 : vector<16x1xf32>
    %109 = vector.broadcast %101 : vector<16x1xf32> to vector<16x32xf32>
    %110 = arith.subf %97, %109 : vector<16x32xf32>
    %cst_71 = arith.constant 9.99999974E-6 : f32
    %111 = vector.broadcast %cst_71 : f32 to vector<16x1xf32>
    %112 = arith.addf %108, %111 : vector<16x1xf32>
    %113 = math.rsqrt %112 : vector<16x1xf32>
    %114 = vector.broadcast %113 : vector<16x1xf32> to vector<16x32xf32>
    %115 = arith.mulf %110, %114 : vector<16x32xf32>
    %116 = vector.broadcast %7 : vector<1x32xf32> to vector<16x32xf32>
    %117 = arith.mulf %115, %116 : vector<16x32xf32>
    %118 = vector.broadcast %8 : vector<1x32xf32> to vector<16x32xf32>
    %119 = arith.addf %117, %118 : vector<16x32xf32>
    %cst_72 = arith.constant dense<0.000000e+00> : vector<16x32xf32>
    %120 = tpu.matmul %119, %9, %cst_72 {dimension_numbers = #tpu.dot_dimension_numbers<[1], [0], [0], [1], [0, 0, 1, 1], [], []>} : vector<16x32xf32>, vector<32x32xf32>, vector<16x32xf32> -> vector<16x32xf32>
    %121 = vector.broadcast %10 : vector<1x32xf32> to vector<16x32xf32>
    %122 = arith.addf %120, %121 : vector<16x32xf32>
    %123 = vector.shape_cast %122 : vector<16x32xf32> to vector<1x16x32xf32>
    %cst_73 = arith.constant dense<0.000000e+00> : vector<16x32xf32>
    %124 = tpu.matmul %119, %11, %cst_73 {dimension_numbers = #tpu.dot_dimension_numbers<[1], [0], [0], [1], [0, 0, 1, 1], [], []>} : vector<16x32xf32>, vector<32x32xf32>, vector<16x32xf32> -> vector<16x32xf32>
    %125 = vector.broadcast %12 : vector<1x32xf32> to vector<16x32xf32>
    %126 = arith.addf %124, %125 : vector<16x32xf32>
    %127 = vector.shape_cast %126 : vector<16x32xf32> to vector<1x16x32xf32>
    %cst_74 = arith.constant dense<0.000000e+00> : vector<16x32xf32>
    %128 = tpu.matmul %119, %13, %cst_74 {dimension_numbers = #tpu.dot_dimension_numbers<[1], [0], [0], [1], [0, 0, 1, 1], [], []>} : vector<16x32xf32>, vector<32x32xf32>, vector<16x32xf32> -> vector<16x32xf32>
    %129 = vector.broadcast %14 : vector<1x32xf32> to vector<16x32xf32>
    %130 = arith.addf %128, %129 : vector<16x32xf32>
    %131 = vector.shape_cast %130 : vector<16x32xf32> to vector<1x16x32xf32>
    "tpu.trace_start"() <{level = 10 : i32, message = "bqd,bkd->bqk"}> : () -> ()
    %cst_75 = arith.constant dense<0.000000e+00> : vector<1x16x16xf32>
    %132 = tpu.matmul %123, %127, %cst_75 {dimension_numbers = #tpu.dot_dimension_numbers<[2], [2], [1], [1], [0, 0, 0, 1, 1, 1], [0], [0]>} : vector<1x16x32xf32>, vector<1x16x32xf32>, vector<1x16x16xf32> -> vector<1x16x16xf32>
    "tpu.trace_stop"() : () -> ()
    %cst_76 = arith.constant dense<0xFF800000> : vector<1x16xf32>
    %133 = vector.multi_reduction <maximumf>, %132, %cst_76 [2] : vector<1x16x16xf32> to vector<1x16xf32>
    %134 = vector.shape_cast %133 : vector<1x16xf32> to vector<1x16x1xf32>
    %135 = vector.broadcast %134 : vector<1x16x1xf32> to vector<1x16x16xf32>
    %136 = arith.subf %132, %135 : vector<1x16x16xf32>
    %137 = math.exp %136 : vector<1x16x16xf32>
    %cst_77 = arith.constant dense<0.000000e+00> : vector<1x16xf32>
    %138 = vector.multi_reduction <add>, %137, %cst_77 [2] : vector<1x16x16xf32> to vector<1x16xf32>
    %139 = vector.shape_cast %138 : vector<1x16xf32> to vector<1x16x1xf32>
    %140 = tpu.reciprocal %139 {approx = true} : vector<1x16x1xf32> -> vector<1x16x1xf32>
    %141 = arith.mulf %139, %140 : vector<1x16x1xf32>
    %cst_78 = arith.constant 2.000000e+00 : f32
    %142 = vector.broadcast %cst_78 : f32 to vector<1x16x1xf32>
    %143 = arith.subf %142, %141 : vector<1x16x1xf32>
    %144 = arith.mulf %140, %143 : vector<1x16x1xf32>
    %145 = vector.broadcast %144 : vector<1x16x1xf32> to vector<1x16x16xf32>
    %146 = arith.mulf %137, %145 : vector<1x16x16xf32>
    "tpu.trace_start"() <{level = 10 : i32, message = "bqk,bkd->bqd"}> : () -> ()
    %cst_79 = arith.constant dense<0.000000e+00> : vector<1x16x32xf32>
    %147 = tpu.matmul %146, %131, %cst_79 {dimension_numbers = #tpu.dot_dimension_numbers<[2], [1], [1], [2], [0, 0, 0, 1, 1, 2], [0], [0]>} : vector<1x16x16xf32>, vector<1x16x32xf32>, vector<1x16x32xf32> -> vector<1x16x32xf32>
    "tpu.trace_stop"() : () -> ()
    %148 = vector.shape_cast %147 : vector<1x16x32xf32> to vector<16x32xf32>
    %cst_80 = arith.constant dense<0.000000e+00> : vector<16x32xf32>
    %149 = tpu.matmul %148, %15, %cst_80 {dimension_numbers = #tpu.dot_dimension_numbers<[1], [0], [0], [1], [0, 0, 1, 1], [], []>} : vector<16x32xf32>, vector<32x32xf32>, vector<16x32xf32> -> vector<16x32xf32>
    %150 = vector.broadcast %16 : vector<1x32xf32> to vector<16x32xf32>
    %151 = arith.addf %149, %150 : vector<16x32xf32>
    %152 = arith.addf %97, %151 : vector<16x32xf32>
    %cst_81 = arith.constant dense<0.000000e+00> : vector<16xf32>
    %153 = vector.multi_reduction <add>, %152, %cst_81 [1] : vector<16x32xf32> to vector<16xf32>
    %154 = vector.shape_cast %153 : vector<16xf32> to vector<16x1xf32>
    %cst_82 = arith.constant 3.200000e+01 : f32
    %155 = vector.broadcast %cst_82 : f32 to vector<16x1xf32>
    %156 = arith.divf %154, %155 : vector<16x1xf32>
    %157 = vector.broadcast %156 : vector<16x1xf32> to vector<16x32xf32>
    %158 = arith.subf %152, %157 : vector<16x32xf32>
    %159 = arith.mulf %158, %158 : vector<16x32xf32>
    %cst_83 = arith.constant dense<0.000000e+00> : vector<16xf32>
    %160 = vector.multi_reduction <add>, %159, %cst_83 [1] : vector<16x32xf32> to vector<16xf32>
    %161 = vector.shape_cast %160 : vector<16xf32> to vector<16x1xf32>
    %cst_84 = arith.constant 3.200000e+01 : f32
    %162 = vector.broadcast %cst_84 : f32 to vector<16x1xf32>
    %163 = arith.divf %161, %162 : vector<16x1xf32>
    %164 = vector.broadcast %156 : vector<16x1xf32> to vector<16x32xf32>
    %165 = arith.subf %152, %164 : vector<16x32xf32>
    %cst_85 = arith.constant 9.99999974E-6 : f32
    %166 = vector.broadcast %cst_85 : f32 to vector<16x1xf32>
    %167 = arith.addf %163, %166 : vector<16x1xf32>
    %168 = math.rsqrt %167 : vector<16x1xf32>
    %169 = vector.broadcast %168 : vector<16x1xf32> to vector<16x32xf32>
    %170 = arith.mulf %165, %169 : vector<16x32xf32>
    %171 = vector.broadcast %17 : vector<1x32xf32> to vector<16x32xf32>
    %172 = arith.mulf %170, %171 : vector<16x32xf32>
    %173 = vector.broadcast %18 : vector<1x32xf32> to vector<16x32xf32>
    %174 = arith.addf %172, %173 : vector<16x32xf32>
    %cst_86 = arith.constant dense<0.000000e+00> : vector<16x32xf32>
    %175 = tpu.matmul %174, %19, %cst_86 {dimension_numbers = #tpu.dot_dimension_numbers<[1], [0], [0], [1], [0, 0, 1, 1], [], []>} : vector<16x32xf32>, vector<32x32xf32>, vector<16x32xf32> -> vector<16x32xf32>
    %176 = vector.broadcast %20 : vector<1x32xf32> to vector<16x32xf32>
    %177 = arith.addf %175, %176 : vector<16x32xf32>
    %178 = arith.mulf %177, %177 : vector<16x32xf32>
    %179 = arith.mulf %177, %178 : vector<16x32xf32>
    %cst_87 = arith.constant 4.471500e-02 : f32
    %180 = vector.broadcast %cst_87 : f32 to vector<16x32xf32>
    %181 = arith.mulf %180, %179 : vector<16x32xf32>
    %182 = arith.addf %177, %181 : vector<16x32xf32>
    %cst_88 = arith.constant 0.797884583 : f32
    %183 = vector.broadcast %cst_88 : f32 to vector<16x32xf32>
    %184 = arith.mulf %183, %182 : vector<16x32xf32>
    %185 = math.tanh %184 : vector<16x32xf32>
    %cst_89 = arith.constant 1.000000e+00 : f32
    %186 = vector.broadcast %cst_89 : f32 to vector<16x32xf32>
    %187 = arith.addf %186, %185 : vector<16x32xf32>
    %cst_90 = arith.constant 5.000000e-01 : f32
    %188 = vector.broadcast %cst_90 : f32 to vector<16x32xf32>
    %189 = arith.mulf %188, %187 : vector<16x32xf32>
    %190 = arith.mulf %177, %189 : vector<16x32xf32>
    %cst_91 = arith.constant dense<0.000000e+00> : vector<16x32xf32>
    %191 = tpu.matmul %190, %21, %cst_91 {dimension_numbers = #tpu.dot_dimension_numbers<[1], [0], [0], [1], [0, 0, 1, 1], [], []>} : vector<16x32xf32>, vector<32x32xf32>, vector<16x32xf32> -> vector<16x32xf32>
    %192 = vector.broadcast %22 : vector<1x32xf32> to vector<16x32xf32>
    %193 = arith.addf %191, %192 : vector<16x32xf32>
    %194 = arith.addf %152, %193 : vector<16x32xf32>
    %195 = vector.shape_cast %194 : vector<16x32xf32> to vector<1x16x32xf32>
    %c0_92 = arith.constant 0 : index
    %c0_93 = arith.constant 0 : index
    %c0_94 = arith.constant 0 : index
    %196 = vector.load %arg26[%c0_92, %c0_93, %c0_94] : memref<1x16x32xf32, #tpu.memory_space<vmem>>, vector<1x16x32xf32>
    tpu.vector_store %arg26[%c0_92, %c0_93, %c0_94], %195 {strides = array<i32>} : memref<1x16x32xf32, #tpu.memory_space<vmem>>, vector<1x16x32xf32>,
    return
  }
  func.func @transform_0(%arg0: i32) -> (i32, i32, i32) {
    %c0_i32 = arith.constant 0 : i32
    %c0_i32_0 = arith.constant 0 : i32
    %c0_i32_1 = arith.constant 0 : i32
    return %arg0, %c0_i32, %c0_i32_0 : i32, i32, i32
  }
  func.func @transform_1(%arg0: i32) -> (i32, i32, i32) {
    %c0_i32 = arith.constant 0 : i32
    %c0_i32_0 = arith.constant 0 : i32
    %c0_i32_1 = arith.constant 0 : i32
    return %arg0, %c0_i32, %c0_i32_0 : i32, i32, i32
  }
  func.func @transform_2(%arg0: i32) -> (i32, i32) {
    %c0_i32 = arith.constant 0 : i32
    %c0_i32_0 = arith.constant 0 : i32
    %c0_i32_1 = arith.constant 0 : i32
    return %c0_i32, %c0_i32_0 : i32, i32
  }
  func.func @transform_3(%arg0: i32) -> (i32, i32) {
    %c0_i32 = arith.constant 0 : i32
    %c0_i32_0 = arith.constant 0 : i32
    %c0_i32_1 = arith.constant 0 : i32
    return %c0_i32, %c0_i32_0 : i32, i32
  }
  func.func @transform_4(%arg0: i32) -> (i32, i32) {
    %c0_i32 = arith.constant 0 : i32
    %c0_i32_0 = arith.constant 0 : i32
    %c0_i32_1 = arith.constant 0 : i32
    return %c0_i32, %c0_i32_0 : i32, i32
  }
  func.func @transform_5(%arg0: i32) -> (i32, i32) {
    %c0_i32 = arith.constant 0 : i32
    %c0_i32_0 = arith.constant 0 : i32
    %c0_i32_1 = arith.constant 0 : i32
    return %c0_i32, %c0_i32_0 : i32, i32
  }
  func.func @transform_6(%arg0: i32) -> (i32, i32) {
    %c0_i32 = arith.constant 0 : i32
    %c0_i32_0 = arith.constant 0 : i32
    %c0_i32_1 = arith.constant 0 : i32
    return %c0_i32, %c0_i32_0 : i32, i32
  }
  func.func @transform_7(%arg0: i32) -> (i32, i32) {
    %c0_i32 = arith.constant 0 : i32
    %c0_i32_0 = arith.constant 0 : i32
    %c0_i32_1 = arith.constant 0 : i32
    return %c0_i32, %c0_i32_0 : i32, i32
  }
  func.func @transform_8(%arg0: i32) -> (i32, i32) {
    %c0_i32 = arith.constant 0 : i32
    %c0_i32_0 = arith.constant 0 : i32
    %c0_i32_1 = arith.constant 0 : i32
    return %c0_i32, %c0_i32_0 : i32, i32
  }
  func.func @transform_9(%arg0: i32) -> (i32, i32) {
    %c0_i32 = arith.constant 0 : i32
    %c0_i32_0 = arith.constant 0 : i32
    %c0_i32_1 = arith.constant 0 : i32
    return %c0_i32, %c0_i32_0 : i32, i32
  }
  func.func @transform_10(%arg0: i32) -> (i32, i32) {
    %c0_i32 = arith.constant 0 : i32
    %c0_i32_0 = arith.constant 0 : i32
    %c0_i32_1 = arith.constant 0 : i32
    return %c0_i32, %c0_i32_0 : i32, i32
  }
  func.func @transform_11(%arg0: i32) -> (i32, i32) {
    %c0_i32 = arith.constant 0 : i32
    %c0_i32_0 = arith.constant 0 : i32
    %c0_i32_1 = arith.constant 0 : i32
    return %c0_i32, %c0_i32_0 : i32, i32
  }
  func.func @transform_12(%arg0: i32) -> (i32, i32) {
    %c0_i32 = arith.constant 0 : i32
    %c0_i32_0 = arith.constant 0 : i32
    %c0_i32_1 = arith.constant 0 : i32
    return %c0_i32, %c0_i32_0 : i32, i32
  }
  func.func @transform_13(%arg0: i32) -> (i32, i32) {
    %c0_i32 = arith.constant 0 : i32
    %c0_i32_0 = arith.constant 0 : i32
    %c0_i32_1 = arith.constant 0 : i32
    return %c0_i32, %c0_i32_0 : i32, i32
  }
  func.func @transform_14(%arg0: i32) -> (i32, i32) {
    %c0_i32 = arith.constant 0 : i32
    %c0_i32_0 = arith.constant 0 : i32
    %c0_i32_1 = arith.constant 0 : i32
    return %c0_i32, %c0_i32_0 : i32, i32
  }
  func.func @transform_15(%arg0: i32) -> (i32, i32) {
    %c0_i32 = arith.constant 0 : i32
    %c0_i32_0 = arith.constant 0 : i32
    %c0_i32_1 = arith.constant 0 : i32
    return %c0_i32, %c0_i32_0 : i32, i32
  }
  func.func @transform_16(%arg0: i32) -> (i32, i32) {
    %c0_i32 = arith.constant 0 : i32
    %c0_i32_0 = arith.constant 0 : i32
    %c0_i32_1 = arith.constant 0 : i32
    return %c0_i32, %c0_i32_0 : i32, i32
  }
  func.func @transform_17(%arg0: i32) -> (i32, i32) {
    %c0_i32 = arith.constant 0 : i32
    %c0_i32_0 = arith.constant 0 : i32
    %c0_i32_1 = arith.constant 0 : i32
    return %c0_i32, %c0_i32_0 : i32, i32
  }
  func.func @transform_18(%arg0: i32) -> (i32, i32) {
    %c0_i32 = arith.constant 0 : i32
    %c0_i32_0 = arith.constant 0 : i32
    %c0_i32_1 = arith.constant 0 : i32
    return %c0_i32, %c0_i32_0 : i32, i32
  }
  func.func @transform_19(%arg0: i32) -> (i32, i32) {
    %c0_i32 = arith.constant 0 : i32
    %c0_i32_0 = arith.constant 0 : i32
    %c0_i32_1 = arith.constant 0 : i32
    return %c0_i32, %c0_i32_0 : i32, i32
  }
  func.func @transform_20(%arg0: i32) -> (i32, i32) {
    %c0_i32 = arith.constant 0 : i32
    %c0_i32_0 = arith.constant 0 : i32
    %c0_i32_1 = arith.constant 0 : i32
    return %c0_i32, %c0_i32_0 : i32, i32
  }
  func.func @transform_21(%arg0: i32) -> (i32, i32) {
    %c0_i32 = arith.constant 0 : i32
    %c0_i32_0 = arith.constant 0 : i32
    %c0_i32_1 = arith.constant 0 : i32
    return %c0_i32, %c0_i32_0 : i32, i32
  }
  func.func @transform_22(%arg0: i32) -> (i32, i32) {
    %c0_i32 = arith.constant 0 : i32
    %c0_i32_0 = arith.constant 0 : i32
    %c0_i32_1 = arith.constant 0 : i32
    return %c0_i32, %c0_i32_0 : i32, i32
  }
  func.func @transform_23(%arg0: i32) -> (i32, i32) {
    %c0_i32 = arith.constant 0 : i32
    %c0_i32_0 = arith.constant 0 : i32
    %c0_i32_1 = arith.constant 0 : i32
    return %c0_i32, %c0_i32_0 : i32, i32
  }
  func.func @transform_24(%arg0: i32) -> (i32, i32) {
    %c0_i32 = arith.constant 0 : i32
    %c0_i32_0 = arith.constant 0 : i32
    %c0_i32_1 = arith.constant 0 : i32
    return %c0_i32, %c0_i32_0 : i32, i32
  }
  func.func @transform_25(%arg0: i32) -> (i32, i32, i32) {
    %c0_i32 = arith.constant 0 : i32
    %c0_i32_0 = arith.constant 0 : i32
    %c0_i32_1 = arith.constant 0 : i32
    return %arg0, %c0_i32, %c0_i32_0 : i32, i32, i32
  }
}

</mosaic_0001>

<llo_original>
// kernel: pose_transformer_forward.1
$region0: #{pose_transformer_forward.1}
  #allocation0 [shape = 'u32[]', space=smem, size = 0x4, offset = 0x4, fixed_abs, tag = 'smem constant byte address 0x4 - core index']
  #allocation1 [shape = 'u32[144,128]{1,0:T(1,128)}', space=vmem, size = 0x12000, scoped, tag = 'internal scratch']
  %s0 = inlined_call_operand.vmem [shape: f32[2,32,16], index: 0, kind: input, shape index: {}]
  %s1 = inlined_call_operand.vmem [shape: f32[2,32,64], index: 1, kind: input, shape index: {}]
  %s2 = inlined_call_operand.hbm [shape: f32[64,32], index: 2, kind: input, shape index: {}]
  %s3 = inlined_call_operand.vmem [shape: f32[1,32], index: 3, kind: input, shape index: {}, may-alias: {3,9,19}]
  %s4 = inlined_call_operand.vmem [shape: f32[1,32], index: 4, kind: input, shape index: {}, may-alias: {4,10,20}]
  %s5 = inlined_call_operand.hbm [shape: f32[32,32], index: 5, kind: input, shape index: {}]
  %s6 = inlined_call_operand.hbm [shape: f32[1,32], index: 6, kind: input, shape index: {}]
  %s7 = inlined_call_operand.hbm [shape: f32[32,32], index: 7, kind: input, shape index: {}]
  %s8 = inlined_call_operand.hbm [shape: f32[1,32], index: 8, kind: input, shape index: {}]
  %s9 = inlined_call_operand.vmem [shape: f32[1,32], index: 9, kind: input, shape index: {}, may-alias: {3,9,19}]
  %s10 = inlined_call_operand.vmem [shape: f32[1,32], index: 10, kind: input, shape index: {}, may-alias: {4,10,20}]
  %s11 = inlined_call_operand.hbm [shape: f32[32,32], index: 11, kind: input, shape index: {}]
  %s12 = inlined_call_operand.hbm [shape: f32[1,32], index: 12, kind: input, shape index: {}]
  %s13 = inlined_call_operand.hbm [shape: f32[32,32], index: 13, kind: input, shape index: {}]
  %s14 = inlined_call_operand.hbm [shape: f32[1,32], index: 14, kind: input, shape index: {}]
  %s15 = inlined_call_operand.hbm [shape: f32[32,32], index: 15, kind: input, shape index: {}]
  %s16 = inlined_call_operand.hbm [shape: f32[1,32], index: 16, kind: input, shape index: {}]
  %s17 = inlined_call_operand.vmem [shape: f32[32,32], index: 17, kind: input, shape index: {}]
  %s18 = inlined_call_operand.vmem [shape: f32[1,32], index: 18, kind: input, shape index: {}]
  %s19 = inlined_call_operand.vmem [shape: f32[1,32], index: 19, kind: input, shape index: {}, may-alias: {3,9,19}]
  %s20 = inlined_call_operand.vmem [shape: f32[1,32], index: 20, kind: input, shape index: {}, may-alias: {4,10,20}]
  %s21 = inlined_call_operand.vmem [shape: f32[32,32], index: 21, kind: input, shape index: {}]
  %s22 = inlined_call_operand.vmem [shape: f32[1,32], index: 22, kind: input, shape index: {}]
  %s23 = inlined_call_operand.vmem [shape: f32[32,32], index: 23, kind: input, shape index: {}]
  %s24 = inlined_call_operand.vmem [shape: f32[1,32], index: 24, kind: input, shape index: {}]
  %s25 = inlined_call_operand.hbm [shape: f32[2,16,32], index: 25, kind: output, shape index: {}]
  %s26 = sld [smem:[#allocation0]]
  $region177: #{pose_transformer_forward.1} parent=0
    _
  %s28 = ssub.s32 1, %s26
  %s29 = scalar_select 0, %s28, %s26
  $region1: #{pose_transformer_forward.1} parent=0
    #allocation2 [shape = 'u8[32768]{0}', space=vmem, size = 0x8000, scoped, tag = 'input window, operand 2, single buffered']
    #allocation3 [shape = 's32[2]{0}', space=sflag, size = 0x8, scoped, tag = 'scoped memory for pose_transformer_forward.1']
    #allocation4 [shape = 's32[2]{0}', space=sflag, size = 0x8, scoped, tag = 'scoped memory for pose_transformer_forward.1']
    #allocation5 [shape = 'u8[16384]{0}', space=vmem, size = 0x4000, scoped, tag = 'input window, operand 5, single buffered']
    #allocation6 [shape = 's32[1]{0}', space=sflag, size = 0x4, scoped, tag = 'scoped memory for pose_transformer_forward.1']
    #allocation7 [shape = 'u8[512]{0}', space=vmem, size = 0x400, scoped, tag = 'input window, operand 6, single buffered']
    #allocation8 [shape = 'u8[16384]{0}', space=vmem, size = 0x4000, scoped, tag = 'input window, operand 7, single buffered']
    #allocation9 [shape = 's32[1]{0}', space=sflag, size = 0x4, scoped, tag = 'scoped memory for pose_transformer_forward.1']
    #allocation10 [shape = 'u8[512]{0}', space=vmem, size = 0x400, scoped, tag = 'input window, operand 8, single buffered']
    #allocation11 [shape = 'u8[16384]{0}', space=vmem, size = 0x4000, scoped, tag = 'input window, operand 11, single buffered']
    #allocation12 [shape = 's32[1]{0}', space=sflag, size = 0x4, scoped, tag = 'scoped memory for pose_transformer_forward.1']
    #allocation13 [shape = 'u8[512]{0}', space=vmem, size = 0x400, scoped, tag = 'input window, operand 12, single buffered']
    #allocation14 [shape = 'u8[16384]{0}', space=vmem, size = 0x4000, scoped, tag = 'input window, operand 13, single buffered']
    #allocation15 [shape = 's32[1]{0}', space=sflag, size = 0x4, scoped, tag = 'scoped memory for pose_transformer_forward.1']
    #allocation16 [shape = 'u8[512]{0}', space=vmem, size = 0x400, scoped, tag = 'input window, operand 14, single buffered']
    #allocation17 [shape = 'u8[16384]{0}', space=vmem, size = 0x4000, scoped, tag = 'input window, operand 15, single buffered']
    #allocation18 [shape = 's32[1]{0}', space=sflag, size = 0x4, scoped, tag = 'scoped memory for pose_transformer_forward.1']
    #allocation19 [shape = 'u8[512]{0}', space=vmem, size = 0x400, scoped, tag = 'input window, operand 16, single buffered']
    #allocation20 [shape = 'u8[16384]{0}', space=vmem, size = 0x4000, scoped, tag = 'output window, operand 0']
    %30 = vsyncpa [#allocation3], 0
    %31 = vsyncpa [#allocation6], 0
    %32 = vsyncpa [#allocation9], 0
    %33 = vsyncpa [#allocation12], 0
    %34 = vsyncpa [#allocation15], 0
    %35 = vsyncpa [#allocation18], 0
    %36 = vsyncpa [#allocation4], 0
    %s37 = scalar_lea.sflag [#allocation4], 1
    %38 = vsyncpa %s37, 0
    loop: start=0, step=1, limit=4
    $region2: #{pose_transformer_forward.1} parent=1 // loop_pre_header
      _
    $region3: #{pose_transformer_forward.1} parent=1 // loop_header
      %s40 = sphi 0, %s44
      %p41 = scmp.ge.s32.totalorder %s40, 4
      %s50 = sphi 0, %s52
      %s53 = sphi 0, %s50
      %s54 = sphi 0, %s53
      %s70 = sphi 0, %s54
      %s76 = sphi 0, %s78
      %s79 = sphi 0, %s76
      %s80 = sphi 0, %s79
      %s96 = sphi 0, %s80
      %s100 = sphi 0, %s100
      %s102 = sphi 0, %s100
      %s103 = sphi 0, %s102
      %s117 = sphi 0, %s103
      %s121 = sphi 0, %s121
      %s123 = sphi 0, %s121
      %s124 = sphi 0, %s123
      %s138 = sphi 0, %s124
      %s142 = sphi 0, %s142
      %s144 = sphi 0, %s142
      %s145 = sphi 0, %s144
      %s159 = sphi 0, %s145
      %s163 = sphi 0, %s163
      %s165 = sphi 0, %s163
      %s166 = sphi 0, %s165
      %s180 = sphi 0, %s166
      %s184 = sphi 0, %s184
      %s186 = sphi 0, %s184
      %s187 = sphi 0, %s186
      %s201 = sphi 0, %s187
      %s205 = sphi 0, %s205
      %s207 = sphi 0, %s205
      %s208 = sphi 0, %s207
      %s222 = sphi 0, %s208
      %s226 = sphi 0, %s226
      %s228 = sphi 0, %s226
      %s229 = sphi 0, %s228
      %s243 = sphi 0, %s229
      %s247 = sphi 0, %s247
      %s249 = sphi 0, %s247
      %s250 = sphi 0, %s249
      %s264 = sphi 0, %s250
      %s268 = sphi 0, %s268
      %s270 = sphi 0, %s268
      %s271 = sphi 0, %s270
      %s285 = sphi 0, %s271
      %s289 = sphi 0, %s289
      %s291 = sphi 0, %s289
      %s292 = sphi 0, %s291
      %s306 = sphi 0, %s292
      %s310 = sphi 0, %s310
      %s312 = sphi 0, %s310
      %s313 = sphi 0, %s312
      %s327 = sphi 0, %s313
      %s331 = sphi 0, %s331
      %s333 = sphi 0, %s331
      %s334 = sphi 0, %s333
      %s348 = sphi 0, %s334
      %s352 = sphi 0, %s352
      %s354 = sphi 0, %s352
      %s355 = sphi 0, %s354
      %s369 = sphi 0, %s355
      %s373 = sphi 0, %s373
      %s375 = sphi 0, %s373
      %s376 = sphi 0, %s375
      %s390 = sphi 0, %s376
      %s394 = sphi 0, %s394
      %s396 = sphi 0, %s394
      %s397 = sphi 0, %s396
      %s411 = sphi 0, %s397
      %s415 = sphi 0, %s415
      %s417 = sphi 0, %s415
      %s418 = sphi 0, %s417
      %s432 = sphi 0, %s418
      %s436 = sphi 0, %s436
      %s438 = sphi 0, %s436
      %s439 = sphi 0, %s438
      %s453 = sphi 0, %s439
      %s457 = sphi 0, %s457
      %s459 = sphi 0, %s457
      %s460 = sphi 0, %s459
      %s474 = sphi 0, %s460
      %s478 = sphi 0, %s478
      %s480 = sphi 0, %s478
      %s481 = sphi 0, %s480
      %s495 = sphi 0, %s481
      %s499 = sphi 0, %s499
      %s501 = sphi 0, %s499
      %s502 = sphi 0, %s501
      %s516 = sphi 0, %s502
      %s520 = sphi 0, %s520
      %s522 = sphi 0, %s520
      %s523 = sphi 0, %s522
      %s537 = sphi 0, %s523
      %s541 = sphi 0, %s541
      %s543 = sphi 0, %s541
      %s544 = sphi 0, %s543
      %s558 = sphi 0, %s544
      %s562 = sphi 0, %s562
      %s564 = sphi 0, %s562
      %s565 = sphi 0, %s564
      %s579 = sphi 0, %s565
      %s585 = sphi 0, %s587
      %s588 = sphi 0, %s585
      %s589 = sphi 0, %s588
      %s605 = sphi 0, %s589
    $region4: #{pose_transformer_forward.1} parent=1 // loop_header_branch
      %43 = sbr.rel (%p41) target = $region8
    $region5: #{pose_transformer_forward.1} parent=1 // loop_body
      %s45 = ssub.s32 %s40, 1
      %s46 = ssub.s32 %s40, 2
      %s47 = sadd.s32 %s40, 1
      %s48 = ssub.s32 %s40, %s47
      %p49 = scmp.eq.s32.totalorder %s48, 0
      %s51 = sadd.s32 %s50, 1
      %s52 = scalar_select %p49, %s50, %s51
      %p55 = pneg %p49
      %p56 = scmp.eq.s32.totalorder %s40, 1
      %p57 = por %p55, %p56
      %p58 = scmp.ne.s32.totalorder %s50, %s53
      %p59 = scmp.eq.s32.totalorder %s40, 0
      %p60 = por %p58, %p59
      %p61 = scmp.ne.s32.totalorder %s50, %s53
      %p62 = scmp.eq.s32.totalorder %s45, 1
      %p63 = por %p61, %p62
      %p64 = scmp.ne.s32.totalorder %s53, %s54
      %p65 = scmp.eq.s32.totalorder %s45, 0
      %p66 = por %p64, %p65
      %p67 = scmp.ne.s32.totalorder %s53, %s54
      %p68 = scmp.eq.s32.totalorder %s46, 1
      %p69 = por %p67, %p68
      %p71 = scmp.ne.s32.totalorder %s54, %s70
      %p72 = scmp.eq.s32.totalorder %s46, 0
      %p73 = por %p71, %p72
      %s74 = ssub.s32 %s40, %s47
      %p75 = scmp.eq.s32.totalorder %s74, 0
      %s77 = sadd.s32 %s76, 1
      %s78 = scalar_select %p75, %s76, %s77
      %p81 = pneg %p75
      %p82 = scmp.eq.s32.totalorder %s40, 1
      %p83 = por %p81, %p82
      %p84 = scmp.ne.s32.totalorder %s76, %s79
      %p85 = scmp.eq.s32.totalorder %s40, 0
      %p86 = por %p84, %p85
      %p87 = scmp.ne.s32.totalorder %s76, %s79
      %p88 = scmp.eq.s32.totalorder %s45, 1
      %p89 = por %p87, %p88
      %p90 = scmp.ne.s32.totalorder %s79, %s80
      %p91 = scmp.eq.s32.totalorder %s45, 0
      %p92 = por %p90, %p91
      %p93 = scmp.ne.s32.totalorder %s79, %s80
      %p94 = scmp.eq.s32.totalorder %s46, 1
      %p95 = por %p93, %p94
      %p97 = scmp.ne.s32.totalorder %s80, %s96
      %p98 = scmp.eq.s32.totalorder %s46, 0
      %p99 = por %p97, %p98
      %s101 = sadd.s32 %s100, 1
      %p104 = scmp.eq.s32.totalorder %s40, 1
      %p105 = scmp.ne.s32.totalorder %s100, %s102
      %p106 = scmp.eq.s32.totalorder %s40, 0
      %p107 = por %p105, %p106
      %p108 = scmp.ne.s32.totalorder %s100, %s102
      %p109 = scmp.eq.s32.totalorder %s45, 1
      %p110 = por %p108, %p109
      %p111 = scmp.ne.s32.totalorder %s102, %s103
      %p112 = scmp.eq.s32.totalorder %s45, 0
      %p113 = por %p111, %p112
      %p114 = scmp.ne.s32.totalorder %s102, %s103
      %p115 = scmp.eq.s32.totalorder %s46, 1
      %p116 = por %p114, %p115
      %p118 = scmp.ne.s32.totalorder %s103, %s117
      %p119 = scmp.eq.s32.totalorder %s46, 0
      %p120 = por %p118, %p119
      %s122 = sadd.s32 %s121, 1
      %p125 = scmp.eq.s32.totalorder %s40, 1
      %p126 = scmp.ne.s32.totalorder %s121, %s123
      %p127 = scmp.eq.s32.totalorder %s40, 0
      %p128 = por %p126, %p127
      %p129 = scmp.ne.s32.totalorder %s121, %s123
      %p130 = scmp.eq.s32.totalorder %s45, 1
      %p131 = por %p129, %p130
      %p132 = scmp.ne.s32.totalorder %s123, %s124
      %p133 = scmp.eq.s32.totalorder %s45, 0
      %p134 = por %p132, %p133
      %p135 = scmp.ne.s32.totalorder %s123, %s124
      %p136 = scmp.eq.s32.totalorder %s46, 1
      %p137 = por %p135, %p136
      %p139 = scmp.ne.s32.totalorder %s124, %s138
      %p140 = scmp.eq.s32.totalorder %s46, 0
      %p141 = por %p139, %p140
      %s143 = sadd.s32 %s142, 1
      %p146 = scmp.eq.s32.totalorder %s40, 1
      %p147 = scmp.ne.s32.totalorder %s142, %s144
      %p148 = scmp.eq.s32.totalorder %s40, 0
      %p149 = por %p147, %p148
      %p150 = scmp.ne.s32.totalorder %s142, %s144
      %p151 = scmp.eq.s32.totalorder %s45, 1
      %p152 = por %p150, %p151
      %p153 = scmp.ne.s32.totalorder %s144, %s145
      %p154 = scmp.eq.s32.totalorder %s45, 0
      %p155 = por %p153, %p154
      %p156 = scmp.ne.s32.totalorder %s144, %s145
      %p157 = scmp.eq.s32.totalorder %s46, 1
      %p158 = por %p156, %p157
      %p160 = scmp.ne.s32.totalorder %s145, %s159
      %p161 = scmp.eq.s32.totalorder %s46, 0
      %p162 = por %p160, %p161
      %s164 = sadd.s32 %s163, 1
      %p167 = scmp.eq.s32.totalorder %s40, 1
      %p168 = scmp.ne.s32.totalorder %s163, %s165
      %p169 = scmp.eq.s32.totalorder %s40, 0
      %p170 = por %p168, %p169
      %p171 = scmp.ne.s32.totalorder %s163, %s165
      %p172 = scmp.eq.s32.totalorder %s45, 1
      %p173 = por %p171, %p172
      %p174 = scmp.ne.s32.totalorder %s165, %s166
      %p175 = scmp.eq.s32.totalorder %s45, 0
      %p176 = por %p174, %p175
      %p177 = scmp.ne.s32.totalorder %s165, %s166
      %p178 = scmp.eq.s32.totalorder %s46, 1
      %p179 = por %p177, %p178
      %p181 = scmp.ne.s32.totalorder %s166, %s180
      %p182 = scmp.eq.s32.totalorder %s46, 0
      %p183 = por %p181, %p182
      %s185 = sadd.s32 %s184, 1
      %p188 = scmp.eq.s32.totalorder %s40, 1
      %p189 = scmp.ne.s32.totalorder %s184, %s186
      %p190 = scmp.eq.s32.totalorder %s40, 0
      %p191 = por %p189, %p190
      %p192 = scmp.ne.s32.totalorder %s184, %s186
      %p193 = scmp.eq.s32.totalorder %s45, 1
      %p194 = por %p192, %p193
      %p195 = scmp.ne.s32.totalorder %s186, %s187
      %p196 = scmp.eq.s32.totalorder %s45, 0
      %p197 = por %p195, %p196
      %p198 = scmp.ne.s32.totalorder %s186, %s187
      %p199 = scmp.eq.s32.totalorder %s46, 1
      %p200 = por %p198, %p199
      %p202 = scmp.ne.s32.totalorder %s187, %s201
      %p203 = scmp.eq.s32.totalorder %s46, 0
      %p204 = por %p202, %p203
      %s206 = sadd.s32 %s205, 1
      %p209 = scmp.eq.s32.totalorder %s40, 1
      %p210 = scmp.ne.s32.totalorder %s205, %s207
      %p211 = scmp.eq.s32.totalorder %s40, 0
      %p212 = por %p210, %p211
      %p213 = scmp.ne.s32.totalorder %s205, %s207
      %p214 = scmp.eq.s32.totalorder %s45, 1
      %p215 = por %p213, %p214
      %p216 = scmp.ne.s32.totalorder %s207, %s208
      %p217 = scmp.eq.s32.totalorder %s45, 0
      %p218 = por %p216, %p217
      %p219 = scmp.ne.s32.totalorder %s207, %s208
      %p220 = scmp.eq.s32.totalorder %s46, 1
      %p221 = por %p219, %p220
      %p223 = scmp.ne.s32.totalorder %s208, %s222
      %p224 = scmp.eq.s32.totalorder %s46, 0
      %p225 = por %p223, %p224
      %s227 = sadd.s32 %s226, 1
      %p230 = scmp.eq.s32.totalorder %s40, 1
      %p231 = scmp.ne.s32.totalorder %s226, %s228
      %p232 = scmp.eq.s32.totalorder %s40, 0
      %p233 = por %p231, %p232
      %p234 = scmp.ne.s32.totalorder %s226, %s228
      %p235 = scmp.eq.s32.totalorder %s45, 1
      %p236 = por %p234, %p235
      %p237 = scmp.ne.s32.totalorder %s228, %s229
      %p238 = scmp.eq.s32.totalorder %s45, 0
      %p239 = por %p237, %p238
      %p240 = scmp.ne.s32.totalorder %s228, %s229
      %p241 = scmp.eq.s32.totalorder %s46, 1
      %p242 = por %p240, %p241
      %p244 = scmp.ne.s32.totalorder %s229, %s243
      %p245 = scmp.eq.s32.totalorder %s46, 0
      %p246 = por %p244, %p245
      %s248 = sadd.s32 %s247, 1
      %p251 = scmp.eq.s32.totalorder %s40, 1
      %p252 = scmp.ne.s32.totalorder %s247, %s249
      %p253 = scmp.eq.s32.totalorder %s40, 0
      %p254 = por %p252, %p253
      %p255 = scmp.ne.s32.totalorder %s247, %s249
      %p256 = scmp.eq.s32.totalorder %s45, 1
      %p257 = por %p255, %p256
      %p258 = scmp.ne.s32.totalorder %s249, %s250
      %p259 = scmp.eq.s32.totalorder %s45, 0
      %p260 = por %p258, %p259
      %p261 = scmp.ne.s32.totalorder %s249, %s250
      %p262 = scmp.eq.s32.totalorder %s46, 1
      %p263 = por %p261, %p262
      %p265 = scmp.ne.s32.totalorder %s250, %s264
      %p266 = scmp.eq.s32.totalorder %s46, 0
      %p267 = por %p265, %p266
      %s269 = sadd.s32 %s268, 1
      %p272 = scmp.eq.s32.totalorder %s40, 1
      %p273 = scmp.ne.s32.totalorder %s268, %s270
      %p274 = scmp.eq.s32.totalorder %s40, 0
      %p275 = por %p273, %p274
      %p276 = scmp.ne.s32.totalorder %s268, %s270
      %p277 = scmp.eq.s32.totalorder %s45, 1
      %p278 = por %p276, %p277
      %p279 = scmp.ne.s32.totalorder %s270, %s271
      %p280 = scmp.eq.s32.totalorder %s45, 0
      %p281 = por %p279, %p280
      %p282 = scmp.ne.s32.totalorder %s270, %s271
      %p283 = scmp.eq.s32.totalorder %s46, 1
      %p284 = por %p282, %p283
      %p286 = scmp.ne.s32.totalorder %s271, %s285
      %p287 = scmp.eq.s32.totalorder %s46, 0
      %p288 = por %p286, %p287
      %s290 = sadd.s32 %s289, 1
      %p293 = scmp.eq.s32.totalorder %s40, 1
      %p294 = scmp.ne.s32.totalorder %s289, %s291
      %p295 = scmp.eq.s32.totalorder %s40, 0
      %p296 = por %p294, %p295
      %p297 = scmp.ne.s32.totalorder %s289, %s291
      %p298 = scmp.eq.s32.totalorder %s45, 1
      %p299 = por %p297, %p298
      %p300 = scmp.ne.s32.totalorder %s291, %s292
      %p301 = scmp.eq.s32.totalorder %s45, 0
      %p302 = por %p300, %p301
      %p303 = scmp.ne.s32.totalorder %s291, %s292
      %p304 = scmp.eq.s32.totalorder %s46, 1
      %p305 = por %p303, %p304
      %p307 = scmp.ne.s32.totalorder %s292, %s306
      %p308 = scmp.eq.s32.totalorder %s46, 0
      %p309 = por %p307, %p308
      %s311 = sadd.s32 %s310, 1
      %p314 = scmp.eq.s32.totalorder %s40, 1
      %p315 = scmp.ne.s32.totalorder %s310, %s312
      %p316 = scmp.eq.s32.totalorder %s40, 0
      %p317 = por %p315, %p316
      %p318 = scmp.ne.s32.totalorder %s310, %s312
      %p319 = scmp.eq.s32.totalorder %s45, 1
      %p320 = por %p318, %p319
      %p321 = scmp.ne.s32.totalorder %s312, %s313
      %p322 = scmp.eq.s32.totalorder %s45, 0
      %p323 = por %p321, %p322
      %p324 = scmp.ne.s32.totalorder %s312, %s313
      %p325 = scmp.eq.s32.totalorder %s46, 1
      %p326 = por %p324, %p325
      %p328 = scmp.ne.s32.totalorder %s313, %s327
      %p329 = scmp.eq.s32.totalorder %s46, 0
      %p330 = por %p328, %p329
      %s332 = sadd.s32 %s331, 1
      %p335 = scmp.eq.s32.totalorder %s40, 1
      %p336 = scmp.ne.s32.totalorder %s331, %s333
      %p337 = scmp.eq.s32.totalorder %s40, 0
      %p338 = por %p336, %p337
      %p339 = scmp.ne.s32.totalorder %s331, %s333
      %p340 = scmp.eq.s32.totalorder %s45, 1
      %p341 = por %p339, %p340
      %p342 = scmp.ne.s32.totalorder %s333, %s334
      %p343 = scmp.eq.s32.totalorder %s45, 0
      %p344 = por %p342, %p343
      %p345 = scmp.ne.s32.totalorder %s333, %s334
      %p346 = scmp.eq.s32.totalorder %s46, 1
      %p347 = por %p345, %p346
      %p349 = scmp.ne.s32.totalorder %s334, %s348
      %p350 = scmp.eq.s32.totalorder %s46, 0
      %p351 = por %p349, %p350
      %s353 = sadd.s32 %s352, 1
      %p356 = scmp.eq.s32.totalorder %s40, 1
      %p357 = scmp.ne.s32.totalorder %s352, %s354
      %p358 = scmp.eq.s32.totalorder %s40, 0
      %p359 = por %p357, %p358
      %p360 = scmp.ne.s32.totalorder %s352, %s354
      %p361 = scmp.eq.s32.totalorder %s45, 1
      %p362 = por %p360, %p361
      %p363 = scmp.ne.s32.totalorder %s354, %s355
      %p364 = scmp.eq.s32.totalorder %s45, 0
      %p365 = por %p363, %p364
      %p366 = scmp.ne.s32.totalorder %s354, %s355
      %p367 = scmp.eq.s32.totalorder %s46, 1
      %p368 = por %p366, %p367
      %p370 = scmp.ne.s32.totalorder %s355, %s369
      %p371 = scmp.eq.s32.totalorder %s46, 0
      %p372 = por %p370, %p371
      %s374 = sadd.s32 %s373, 1
      %p377 = scmp.eq.s32.totalorder %s40, 1
      %p378 = scmp.ne.s32.totalorder %s373, %s375
      %p379 = scmp.eq.s32.totalorder %s40, 0
      %p380 = por %p378, %p379
      %p381 = scmp.ne.s32.totalorder %s373, %s375
      %p382 = scmp.eq.s32.totalorder %s45, 1
      %p383 = por %p381, %p382
      %p384 = scmp.ne.s32.totalorder %s375, %s376
      %p385 = scmp.eq.s32.totalorder %s45, 0
      %p386 = por %p384, %p385
      %p387 = scmp.ne.s32.totalorder %s375, %s376
      %p388 = scmp.eq.s32.totalorder %s46, 1
      %p389 = por %p387, %p388
      %p391 = scmp.ne.s32.totalorder %s376, %s390
      %p392 = scmp.eq.s32.totalorder %s46, 0
      %p393 = por %p391, %p392
      %s395 = sadd.s32 %s394, 1
      %p398 = scmp.eq.s32.totalorder %s40, 1
      %p399 = scmp.ne.s32.totalorder %s394, %s396
      %p400 = scmp.eq.s32.totalorder %s40, 0
      %p401 = por %p399, %p400
      %p402 = scmp.ne.s32.totalorder %s394, %s396
      %p403 = scmp.eq.s32.totalorder %s45, 1
      %p404 = por %p402, %p403
      %p405 = scmp.ne.s32.totalorder %s396, %s397
      %p406 = scmp.eq.s32.totalorder %s45, 0
      %p407 = por %p405, %p406
      %p408 = scmp.ne.s32.totalorder %s396, %s397
      %p409 = scmp.eq.s32.totalorder %s46, 1
      %p410 = por %p408, %p409
      %p412 = scmp.ne.s32.totalorder %s397, %s411
      %p413 = scmp.eq.s32.totalorder %s46, 0
      %p414 = por %p412, %p413
      %s416 = sadd.s32 %s415, 1
      %p419 = scmp.eq.s32.totalorder %s40, 1
      %p420 = scmp.ne.s32.totalorder %s415, %s417
      %p421 = scmp.eq.s32.totalorder %s40, 0
      %p422 = por %p420, %p421
      %p423 = scmp.ne.s32.totalorder %s415, %s417
      %p424 = scmp.eq.s32.totalorder %s45, 1
      %p425 = por %p423, %p424
      %p426 = scmp.ne.s32.totalorder %s417, %s418
      %p427 = scmp.eq.s32.totalorder %s45, 0
      %p428 = por %p426, %p427
      %p429 = scmp.ne.s32.totalorder %s417, %s418
      %p430 = scmp.eq.s32.totalorder %s46, 1
      %p431 = por %p429, %p430
      %p433 = scmp.ne.s32.totalorder %s418, %s432
      %p434 = scmp.eq.s32.totalorder %s46, 0
      %p435 = por %p433, %p434
      %s437 = sadd.s32 %s436, 1
      %p440 = scmp.eq.s32.totalorder %s40, 1
      %p441 = scmp.ne.s32.totalorder %s436, %s438
      %p442 = scmp.eq.s32.totalorder %s40, 0
      %p443 = por %p441, %p442
      %p444 = scmp.ne.s32.totalorder %s436, %s438
      %p445 = scmp.eq.s32.totalorder %s45, 1
      %p446 = por %p444, %p445
      %p447 = scmp.ne.s32.totalorder %s438, %s439
      %p448 = scmp.eq.s32.totalorder %s45, 0
      %p449 = por %p447, %p448
      %p450 = scmp.ne.s32.totalorder %s438, %s439
      %p451 = scmp.eq.s32.totalorder %s46, 1
      %p452 = por %p450, %p451
      %p454 = scmp.ne.s32.totalorder %s439, %s453
      %p455 = scmp.eq.s32.totalorder %s46, 0
      %p456 = por %p454, %p455
      %s458 = sadd.s32 %s457, 1
      %p461 = scmp.eq.s32.totalorder %s40, 1
      %p462 = scmp.ne.s32.totalorder %s457, %s459
      %p463 = scmp.eq.s32.totalorder %s40, 0
      %p464 = por %p462, %p463
      %p465 = scmp.ne.s32.totalorder %s457, %s459
      %p466 = scmp.eq.s32.totalorder %s45, 1
      %p467 = por %p465, %p466
      %p468 = scmp.ne.s32.totalorder %s459, %s460
      %p469 = scmp.eq.s32.totalorder %s45, 0
      %p470 = por %p468, %p469
      %p471 = scmp.ne.s32.totalorder %s459, %s460
      %p472 = scmp.eq.s32.totalorder %s46, 1
      %p473 = por %p471, %p472
      %p475 = scmp.ne.s32.totalorder %s460, %s474
      %p476 = scmp.eq.s32.totalorder %s46, 0
      %p477 = por %p475, %p476
      %s479 = sadd.s32 %s478, 1
      %p482 = scmp.eq.s32.totalorder %s40, 1
      %p483 = scmp.ne.s32.totalorder %s478, %s480
      %p484 = scmp.eq.s32.totalorder %s40, 0
      %p485 = por %p483, %p484
      %p486 = scmp.ne.s32.totalorder %s478, %s480
      %p487 = scmp.eq.s32.totalorder %s45, 1
      %p488 = por %p486, %p487
      %p489 = scmp.ne.s32.totalorder %s480, %s481
      %p490 = scmp.eq.s32.totalorder %s45, 0
      %p491 = por %p489, %p490
      %p492 = scmp.ne.s32.totalorder %s480, %s481
      %p493 = scmp.eq.s32.totalorder %s46, 1
      %p494 = por %p492, %p493
      %p496 = scmp.ne.s32.totalorder %s481, %s495
      %p497 = scmp.eq.s32.totalorder %s46, 0
      %p498 = por %p496, %p497
      %s500 = sadd.s32 %s499, 1
      %p503 = scmp.eq.s32.totalorder %s40, 1
      %p504 = scmp.ne.s32.totalorder %s499, %s501
      %p505 = scmp.eq.s32.totalorder %s40, 0
      %p506 = por %p504, %p505
      %p507 = scmp.ne.s32.totalorder %s499, %s501
      %p508 = scmp.eq.s32.totalorder %s45, 1
      %p509 = por %p507, %p508
      %p510 = scmp.ne.s32.totalorder %s501, %s502
      %p511 = scmp.eq.s32.totalorder %s45, 0
      %p512 = por %p510, %p511
      %p513 = scmp.ne.s32.totalorder %s501, %s502
      %p514 = scmp.eq.s32.totalorder %s46, 1
      %p515 = por %p513, %p514
      %p517 = scmp.ne.s32.totalorder %s502, %s516
      %p518 = scmp.eq.s32.totalorder %s46, 0
      %p519 = por %p517, %p518
      %s521 = sadd.s32 %s520, 1
      %p524 = scmp.eq.s32.totalorder %s40, 1
      %p525 = scmp.ne.s32.totalorder %s520, %s522
      %p526 = scmp.eq.s32.totalorder %s40, 0
      %p527 = por %p525, %p526
      %p528 = scmp.ne.s32.totalorder %s520, %s522
      %p529 = scmp.eq.s32.totalorder %s45, 1
      %p530 = por %p528, %p529
      %p531 = scmp.ne.s32.totalorder %s522, %s523
      %p532 = scmp.eq.s32.totalorder %s45, 0
      %p533 = por %p531, %p532
      %p534 = scmp.ne.s32.totalorder %s522, %s523
      %p535 = scmp.eq.s32.totalorder %s46, 1
      %p536 = por %p534, %p535
      %p538 = scmp.ne.s32.totalorder %s523, %s537
      %p539 = scmp.eq.s32.totalorder %s46, 0
      %p540 = por %p538, %p539
      %s542 = sadd.s32 %s541, 1
      %p545 = scmp.eq.s32.totalorder %s40, 1
      %p546 = scmp.ne.s32.totalorder %s541, %s543
      %p547 = scmp.eq.s32.totalorder %s40, 0
      %p548 = por %p546, %p547
      %p549 = scmp.ne.s32.totalorder %s541, %s543
      %p550 = scmp.eq.s32.totalorder %s45, 1
      %p551 = por %p549, %p550
      %p552 = scmp.ne.s32.totalorder %s543, %s544
      %p553 = scmp.eq.s32.totalorder %s45, 0
      %p554 = por %p552, %p553
      %p555 = scmp.ne.s32.totalorder %s543, %s544
      %p556 = scmp.eq.s32.totalorder %s46, 1
      %p557 = por %p555, %p556
      %p559 = scmp.ne.s32.totalorder %s544, %s558
      %p560 = scmp.eq.s32.totalorder %s46, 0
      %p561 = por %p559, %p560
      %s563 = sadd.s32 %s562, 1
      %p566 = scmp.eq.s32.totalorder %s40, 1
      %p567 = scmp.ne.s32.totalorder %s562, %s564
      %p568 = scmp.eq.s32.totalorder %s40, 0
      %p569 = por %p567, %p568
      %p570 = scmp.ne.s32.totalorder %s562, %s564
      %p571 = scmp.eq.s32.totalorder %s45, 1
      %p572 = por %p570, %p571
      %p573 = scmp.ne.s32.totalorder %s564, %s565
      %p574 = scmp.eq.s32.totalorder %s45, 0
      %p575 = por %p573, %p574
      %p576 = scmp.ne.s32.totalorder %s564, %s565
      %p577 = scmp.eq.s32.totalorder %s46, 1
      %p578 = por %p576, %p577
      %p580 = scmp.ne.s32.totalorder %s565, %s579
      %p581 = scmp.eq.s32.totalorder %s46, 0
      %p582 = por %p580, %p581
      %s583 = ssub.s32 %s40, %s47
      %p584 = scmp.eq.s32.totalorder %s583, 0
      %s586 = sadd.s32 %s585, 1
      %s587 = scalar_select %p584, %s585, %s586
      %p590 = pneg %p584
      %p591 = scmp.eq.s32.totalorder %s40, 1
      %p592 = por %p590, %p591
      %p593 = scmp.ne.s32.totalorder %s585, %s588
      %p594 = scmp.eq.s32.totalorder %s40, 0
      %p595 = por %p593, %p594
      %p596 = scmp.ne.s32.totalorder %s585, %s588
      %p597 = scmp.eq.s32.totalorder %s45, 1
      %p598 = por %p596, %p597
      %p599 = scmp.ne.s32.totalorder %s588, %s589
      %p600 = scmp.eq.s32.totalorder %s45, 0
      %p601 = por %p599, %p600
      %p602 = scmp.ne.s32.totalorder %s588, %s589
      %p603 = scmp.eq.s32.totalorder %s46, 1
      %p604 = por %p602, %p603
      %p606 = scmp.ne.s32.totalorder %s589, %s605
      %p607 = scmp.eq.s32.totalorder %s46, 0
      %p608 = por %p606, %p607
      %p609 = scmp.le.s32.totalorder 1, %s40
      %p610 = scmp.lt.s32.totalorder %s40, 3
      %p611 = pnand %p609, %p610
      %p612 = pneg %p611
      // Predicated region
      $region9: #{pose_transformer_forward.1} parent=5 // pred_check
        _
      $region10: #{pose_transformer_forward.1} parent=5 // pred_check_branch
        %614 = sbr.rel (%p611) target = $region12
      $region11: #{pose_transformer_forward.1} parent=5 // pred_region
        %s615 = ssub.s32 %s40, 1
        // Predicated region
        $region13: #{pose_transformer_forward.1} parent=11 // pred_check
          %p616 = pneg %p113
        $region14: #{pose_transformer_forward.1} parent=11 // pred_check_branch
          %618 = sbr.rel (%p616) target = $region16
        $region15: #{pose_transformer_forward.1} parent=11 // pred_region
          %s620 = ssub.s32 1024, 1024
          %621 = vsyncadd [#allocation3], %s620
          %s622 = sshll.u32 [#allocation2], 4
          %s623 = int_to_ptr.vmem [resolvable:$true] %s622
          %628 = dma.hbm_to_vmem [thread:$0]  %s2, 1024, %s623, [#allocation3], 128, 128, 8
        $region16: #{pose_transformer_forward.1} parent=11 // pred_fallthru
          _
        // Predicated region
        $region17: #{pose_transformer_forward.1} parent=11 // pred_check
          %p629 = pneg %p134
        $region18: #{pose_transformer_forward.1} parent=11 // pred_check_branch
          %631 = sbr.rel (%p629) target = $region20
        $region19: #{pose_transformer_forward.1} parent=11 // pred_region
          _
        $region20: #{pose_transformer_forward.1} parent=11 // pred_fallthru
          _
        // Predicated region
        $region21: #{pose_transformer_forward.1} parent=11 // pred_check
          %p632 = pneg %p155
        $region22: #{pose_transformer_forward.1} parent=11 // pred_check_branch
          %634 = sbr.rel (%p632) target = $region24
        $region23: #{pose_transformer_forward.1} parent=11 // pred_region
          _
        $region24: #{pose_transformer_forward.1} parent=11 // pred_fallthru
          _
        // Predicated region
        $region25: #{pose_transformer_forward.1} parent=11 // pred_check
          %p635 = pneg %p176
        $region26: #{pose_transformer_forward.1} parent=11 // pred_check_branch
          %637 = sbr.rel (%p635) target = $region28
        $region27: #{pose_transformer_forward.1} parent=11 // pred_region
          %s639 = ssub.s32 512, 512
          %640 = vsyncadd [#allocation6], %s639
          %s641 = sshll.u32 [#allocation5], 4
          %s642 = int_to_ptr.vmem [resolvable:$true] %s641
          %647 = dma.hbm_to_vmem [thread:$0]  %s5, 512, %s642, [#allocation6], 128, 128, 8
        $region28: #{pose_transformer_forward.1} parent=11 // pred_fallthru
          _
        // Predicated region
        $region29: #{pose_transformer_forward.1} parent=11 // pred_check
          %p648 = pneg %p197
        $region30: #{pose_transformer_forward.1} parent=11 // pred_check_branch
          %650 = sbr.rel (%p648) target = $region32
        $region31: #{pose_transformer_forward.1} parent=11 // pred_region
          %s652 = ssub.s32 16, 16
          %653 = vsyncadd [#allocation6], %s652
          %s655 = sshll.u32 [#allocation7], 4
          %s656 = int_to_ptr.vmem [resolvable:$true] %s655
          %658 = dma.hbm_to_vmem [thread:$0]  %s6, 16, %s656, [#allocation6]
        $region32: #{pose_transformer_forward.1} parent=11 // pred_fallthru
          _
        // Predicated region
        $region33: #{pose_transformer_forward.1} parent=11 // pred_check
          %p659 = pneg %p218
        $region34: #{pose_transformer_forward.1} parent=11 // pred_check_branch
          %661 = sbr.rel (%p659) target = $region36
        $region35: #{pose_transformer_forward.1} parent=11 // pred_region
          %s663 = ssub.s32 512, 512
          %664 = vsyncadd [#allocation9], %s663
          %s665 = sshll.u32 [#allocation8], 4
          %s666 = int_to_ptr.vmem [resolvable:$true] %s665
          %671 = dma.hbm_to_vmem [thread:$0]  %s7, 512, %s666, [#allocation9], 128, 128, 8
        $region36: #{pose_transformer_forward.1} parent=11 // pred_fallthru
          _
        // Predicated region
        $region37: #{pose_transformer_forward.1} parent=11 // pred_check
          %p672 = pneg %p239
        $region38: #{pose_transformer_forward.1} parent=11 // pred_check_branch
          %674 = sbr.rel (%p672) target = $region40
        $region39: #{pose_transformer_forward.1} parent=11 // pred_region
          %s676 = ssub.s32 16, 16
          %677 = vsyncadd [#allocation9], %s676
          %s679 = sshll.u32 [#allocation10], 4
          %s680 = int_to_ptr.vmem [resolvable:$true] %s679
          %682 = dma.hbm_to_vmem [thread:$0]  %s8, 16, %s680, [#allocation9]
        $region40: #{pose_transformer_forward.1} parent=11 // pred_fallthru
          _
        // Predicated region
        $region41: #{pose_transformer_forward.1} parent=11 // pred_check
          %p683 = pneg %p260
        $region42: #{pose_transformer_forward.1} parent=11 // pred_check_branch
          %685 = sbr.rel (%p683) target = $region44
        $region43: #{pose_transformer_forward.1} parent=11 // pred_region
          _
        $region44: #{pose_transformer_forward.1} parent=11 // pred_fallthru
          _
        // Predicated region
        $region45: #{pose_transformer_forward.1} parent=11 // pred_check
          %p686 = pneg %p281
        $region46: #{pose_transformer_forward.1} parent=11 // pred_check_branch
          %688 = sbr.rel (%p686) target = $region48
        $region47: #{pose_transformer_forward.1} parent=11 // pred_region
          _
        $region48: #{pose_transformer_forward.1} parent=11 // pred_fallthru
          _
        // Predicated region
        $region49: #{pose_transformer_forward.1} parent=11 // pred_check
          %p689 = pneg %p302
        $region50: #{pose_transformer_forward.1} parent=11 // pred_check_branch
          %691 = sbr.rel (%p689) target = $region52
        $region51: #{pose_transformer_forward.1} parent=11 // pred_region
          %s693 = ssub.s32 512, 512
          %694 = vsyncadd [#allocation12], %s693
          %s695 = sshll.u32 [#allocation11], 4
          %s696 = int_to_ptr.vmem [resolvable:$true] %s695
          %701 = dma.hbm_to_vmem [thread:$0]  %s11, 512, %s696, [#allocation12], 128, 128, 8
        $region52: #{pose_transformer_forward.1} parent=11 // pred_fallthru
          _
        // Predicated region
        $region53: #{pose_transformer_forward.1} parent=11 // pred_check
          %p702 = pneg %p323
        $region54: #{pose_transformer_forward.1} parent=11 // pred_check_branch
          %704 = sbr.rel (%p702) target = $region56
        $region55: #{pose_transformer_forward.1} parent=11 // pred_region
          %s706 = ssub.s32 16, 16
          %707 = vsyncadd [#allocation12], %s706
          %s709 = sshll.u32 [#allocation13], 4
          %s710 = int_to_ptr.vmem [resolvable:$true] %s709
          %712 = dma.hbm_to_vmem [thread:$0]  %s12, 16, %s710, [#allocation12]
        $region56: #{pose_transformer_forward.1} parent=11 // pred_fallthru
          _
        // Predicated region
        $region57: #{pose_transformer_forward.1} parent=11 // pred_check
          %p713 = pneg %p344
        $region58: #{pose_transformer_forward.1} parent=11 // pred_check_branch
          %715 = sbr.rel (%p713) target = $region60
        $region59: #{pose_transformer_forward.1} parent=11 // pred_region
          %s717 = ssub.s32 512, 512
          %718 = vsyncadd [#allocation15], %s717
          %s719 = sshll.u32 [#allocation14], 4
          %s720 = int_to_ptr.vmem [resolvable:$true] %s719
          %725 = dma.hbm_to_vmem [thread:$0]  %s13, 512, %s720, [#allocation15], 128, 128, 8
        $region60: #{pose_transformer_forward.1} parent=11 // pred_fallthru
          _
        // Predicated region
        $region61: #{pose_transformer_forward.1} parent=11 // pred_check
          %p726 = pneg %p365
        $region62: #{pose_transformer_forward.1} parent=11 // pred_check_branch
          %728 = sbr.rel (%p726) target = $region64
        $region63: #{pose_transformer_forward.1} parent=11 // pred_region
          %s730 = ssub.s32 16, 16
          %731 = vsyncadd [#allocation15], %s730
          %s733 = sshll.u32 [#allocation16], 4
          %s734 = int_to_ptr.vmem [resolvable:$true] %s733
          %736 = dma.hbm_to_vmem [thread:$0]  %s14, 16, %s734, [#allocation15]
        $region64: #{pose_transformer_forward.1} parent=11 // pred_fallthru
          _
        // Predicated region
        $region65: #{pose_transformer_forward.1} parent=11 // pred_check
          %p737 = pneg %p386
        $region66: #{pose_transformer_forward.1} parent=11 // pred_check_branch
          %739 = sbr.rel (%p737) target = $region68
        $region67: #{pose_transformer_forward.1} parent=11 // pred_region
          %s741 = ssub.s32 512, 512
          %742 = vsyncadd [#allocation18], %s741
          %s743 = sshll.u32 [#allocation17], 4
          %s744 = int_to_ptr.vmem [resolvable:$true] %s743
          %749 = dma.hbm_to_vmem [thread:$0]  %s15, 512, %s744, [#allocation18], 128, 128, 8
        $region68: #{pose_transformer_forward.1} parent=11 // pred_fallthru
          _
        // Predicated region
        $region69: #{pose_transformer_forward.1} parent=11 // pred_check
          %p750 = pneg %p407
        $region70: #{pose_transformer_forward.1} parent=11 // pred_check_branch
          %752 = sbr.rel (%p750) target = $region72
        $region71: #{pose_transformer_forward.1} parent=11 // pred_region
          %s754 = ssub.s32 16, 16
          %755 = vsyncadd [#allocation18], %s754
          %s757 = sshll.u32 [#allocation19], 4
          %s758 = int_to_ptr.vmem [resolvable:$true] %s757
          %760 = dma.hbm_to_vmem [thread:$0]  %s16, 16, %s758, [#allocation18]
        $region72: #{pose_transformer_forward.1} parent=11 // pred_fallthru
          _
        // Predicated region
        $region73: #{pose_transformer_forward.1} parent=11 // pred_check
          %p761 = pneg %p428
        $region74: #{pose_transformer_forward.1} parent=11 // pred_check_branch
          %763 = sbr.rel (%p761) target = $region76
        $region75: #{pose_transformer_forward.1} parent=11 // pred_region
          _
        $region76: #{pose_transformer_forward.1} parent=11 // pred_fallthru
          _
        // Predicated region
        $region77: #{pose_transformer_forward.1} parent=11 // pred_check
          %p764 = pneg %p449
        $region78: #{pose_transformer_forward.1} parent=11 // pred_check_branch
          %766 = sbr.rel (%p764) target = $region80
        $region79: #{pose_transformer_forward.1} parent=11 // pred_region
          _
        $region80: #{pose_transformer_forward.1} parent=11 // pred_fallthru
          _
        // Predicated region
        $region81: #{pose_transformer_forward.1} parent=11 // pred_check
          %p767 = pneg %p470
        $region82: #{pose_transformer_forward.1} parent=11 // pred_check_branch
          %769 = sbr.rel (%p767) target = $region84
        $region83: #{pose_transformer_forward.1} parent=11 // pred_region
          _
        $region84: #{pose_transformer_forward.1} parent=11 // pred_fallthru
          _
        // Predicated region
        $region85: #{pose_transformer_forward.1} parent=11 // pred_check
          %p770 = pneg %p491
        $region86: #{pose_transformer_forward.1} parent=11 // pred_check_branch
          %772 = sbr.rel (%p770) target = $region88
        $region87: #{pose_transformer_forward.1} parent=11 // pred_region
          _
        $region88: #{pose_transformer_forward.1} parent=11 // pred_fallthru
          _
        // Predicated region
        $region89: #{pose_transformer_forward.1} parent=11 // pred_check
          %p773 = pneg %p512
        $region90: #{pose_transformer_forward.1} parent=11 // pred_check_branch
          %775 = sbr.rel (%p773) target = $region92
        $region91: #{pose_transformer_forward.1} parent=11 // pred_region
          _
        $region92: #{pose_transformer_forward.1} parent=11 // pred_fallthru
          _
        // Predicated region
        $region93: #{pose_transformer_forward.1} parent=11 // pred_check
          %p776 = pneg %p533
        $region94: #{pose_transformer_forward.1} parent=11 // pred_check_branch
          %778 = sbr.rel (%p776) target = $region96
        $region95: #{pose_transformer_forward.1} parent=11 // pred_region
          _
        $region96: #{pose_transformer_forward.1} parent=11 // pred_fallthru
          _
        // Predicated region
        $region97: #{pose_transformer_forward.1} parent=11 // pred_check
          %p779 = pneg %p554
        $region98: #{pose_transformer_forward.1} parent=11 // pred_check_branch
          %781 = sbr.rel (%p779) target = $region100
        $region99: #{pose_transformer_forward.1} parent=11 // pred_region
          _
        $region100: #{pose_transformer_forward.1} parent=11 // pred_fallthru
          _
        // Predicated region
        $region101: #{pose_transformer_forward.1} parent=11 // pred_check
          %p782 = pneg %p575
        $region102: #{pose_transformer_forward.1} parent=11 // pred_check_branch
          %784 = sbr.rel (%p782) target = $region104
        $region103: #{pose_transformer_forward.1} parent=11 // pred_region
          _
        $region104: #{pose_transformer_forward.1} parent=11 // pred_fallthru
          _
      $region12: #{pose_transformer_forward.1} parent=5 // pred_fallthru
        _
      %p785 = scmp.lt.s32.totalorder %s40, 2
      // Predicated region
      $region105: #{pose_transformer_forward.1} parent=5 // pred_check
        %p786 = pneg %p785
      $region106: #{pose_transformer_forward.1} parent=5 // pred_check_branch
        %788 = sbr.rel (%p786) target = $region108
      $region107: #{pose_transformer_forward.1} parent=5 // pred_region
        // Predicated region
        $region109: #{pose_transformer_forward.1} parent=107 // pred_check
          %p789 = pneg %p60
        $region110: #{pose_transformer_forward.1} parent=107 // pred_check_branch
          %791 = sbr.rel (%p789) target = $region112
        $region111: #{pose_transformer_forward.1} parent=107 // pred_region
          %p792 = scmp.lt.s32.totalorder %s40, 1
          %s793 = scalar_select %p792, %s40, 1
          %s794 = smul.addr %s793, 4
          %s795 = smul.addr %s794, 8
          %s796 = scalar_lea.vmem %s0, %s795
        $region112: #{pose_transformer_forward.1} parent=107 // pred_fallthru
          _
        // Predicated region
        $region113: #{pose_transformer_forward.1} parent=107 // pred_check
          %p797 = pneg %p86
        $region114: #{pose_transformer_forward.1} parent=107 // pred_check_branch
          %799 = sbr.rel (%p797) target = $region116
        $region115: #{pose_transformer_forward.1} parent=107 // pred_region
          %p800 = scmp.lt.s32.totalorder %s40, 1
          %s801 = scalar_select %p800, %s40, 1
          %s802 = smul.addr %s801, 4
          %s803 = smul.addr %s802, 8
          %s804 = scalar_lea.vmem %s1, %s803
        $region116: #{pose_transformer_forward.1} parent=107 // pred_fallthru
          _
      $region108: #{pose_transformer_forward.1} parent=5 // pred_fallthru
        _
      %p805 = scmp.le.s32.totalorder 1, %s40
      %p806 = scmp.lt.s32.totalorder %s40, 3
      %p807 = pnand %p805, %p806
      %p808 = pneg %p807
      // Predicated region
      $region117: #{pose_transformer_forward.1} parent=5 // pred_check
        _
      $region118: #{pose_transformer_forward.1} parent=5 // pred_check_branch
        %810 = sbr.rel (%p807) target = $region120
      $region119: #{pose_transformer_forward.1} parent=5 // pred_region
        %s811 = ssub.s32 %s40, 1
        // Predicated region
        $region121: #{pose_transformer_forward.1} parent=119 // pred_check
          %p812 = pneg %p113
        $region122: #{pose_transformer_forward.1} parent=119 // pred_check_branch
          %814 = sbr.rel (%p812) target = $region124
        $region123: #{pose_transformer_forward.1} parent=119 // pred_region
          %815 = dma.done [#allocation3], 1024
        $region124: #{pose_transformer_forward.1} parent=119 // pred_fallthru
          _
        // Predicated region
        $region125: #{pose_transformer_forward.1} parent=119 // pred_check
          %p816 = pneg %p176
        $region126: #{pose_transformer_forward.1} parent=119 // pred_check_branch
          %818 = sbr.rel (%p816) target = $region128
        $region127: #{pose_transformer_forward.1} parent=119 // pred_region
          %819 = dma.done [#allocation6], 512
        $region128: #{pose_transformer_forward.1} parent=119 // pred_fallthru
          _
        // Predicated region
        $region129: #{pose_transformer_forward.1} parent=119 // pred_check
          %p820 = pneg %p197
        $region130: #{pose_transformer_forward.1} parent=119 // pred_check_branch
          %822 = sbr.rel (%p820) target = $region132
        $region131: #{pose_transformer_forward.1} parent=119 // pred_region
          %823 = dma.done [#allocation6], 16
        $region132: #{pose_transformer_forward.1} parent=119 // pred_fallthru
          _
        // Predicated region
        $region133: #{pose_transformer_forward.1} parent=119 // pred_check
          %p824 = pneg %p218
        $region134: #{pose_transformer_forward.1} parent=119 // pred_check_branch
          %826 = sbr.rel (%p824) target = $region136
        $region135: #{pose_transformer_forward.1} parent=119 // pred_region
          %827 = dma.done [#allocation9], 512
        $region136: #{pose_transformer_forward.1} parent=119 // pred_fallthru
          _
        // Predicated region
        $region137: #{pose_transformer_forward.1} parent=119 // pred_check
          %p828 = pneg %p239
        $region138: #{pose_transformer_forward.1} parent=119 // pred_check_branch
          %830 = sbr.rel (%p828) target = $region140
        $region139: #{pose_transformer_forward.1} parent=119 // pred_region
          %831 = dma.done [#allocation9], 16
        $region140: #{pose_transformer_forward.1} parent=119 // pred_fallthru
          _
        // Predicated region
        $region141: #{pose_transformer_forward.1} parent=119 // pred_check
          %p832 = pneg %p302
        $region142: #{pose_transformer_forward.1} parent=119 // pred_check_branch
          %834 = sbr.rel (%p832) target = $region144
        $region143: #{pose_transformer_forward.1} parent=119 // pred_region
          %835 = dma.done [#allocation12], 512
        $region144: #{pose_transformer_forward.1} parent=119 // pred_fallthru
          _
        // Predicated region
        $region145: #{pose_transformer_forward.1} parent=119 // pred_check
          %p836 = pneg %p323
        $region146: #{pose_transformer_forward.1} parent=119 // pred_check_branch
          %838 = sbr.rel (%p836) target = $region148
        $region147: #{pose_transformer_forward.1} parent=119 // pred_region
          %839 = dma.done [#allocation12], 16
        $region148: #{pose_transformer_forward.1} parent=119 // pred_fallthru
          _
        // Predicated region
        $region149: #{pose_transformer_forward.1} parent=119 // pred_check
          %p840 = pneg %p344
        $region150: #{pose_transformer_forward.1} parent=119 // pred_check_branch
          %842 = sbr.rel (%p840) target = $region152
        $region151: #{pose_transformer_forward.1} parent=119 // pred_region
          %843 = dma.done [#allocation15], 512
        $region152: #{pose_transformer_forward.1} parent=119 // pred_fallthru
          _
        // Predicated region
        $region153: #{pose_transformer_forward.1} parent=119 // pred_check
          %p844 = pneg %p365
        $region154: #{pose_transformer_forward.1} parent=119 // pred_check_branch
          %846 = sbr.rel (%p844) target = $region156
        $region155: #{pose_transformer_forward.1} parent=119 // pred_region
          %847 = dma.done [#allocation15], 16
        $region156: #{pose_transformer_forward.1} parent=119 // pred_fallthru
          _
        // Predicated region
        $region157: #{pose_transformer_forward.1} parent=119 // pred_check
          %p848 = pneg %p386
        $region158: #{pose_transformer_forward.1} parent=119 // pred_check_branch
          %850 = sbr.rel (%p848) target = $region160
        $region159: #{pose_transformer_forward.1} parent=119 // pred_region
          %851 = dma.done [#allocation18], 512
        $region160: #{pose_transformer_forward.1} parent=119 // pred_fallthru
          _
        // Predicated region
        $region161: #{pose_transformer_forward.1} parent=119 // pred_check
          %p852 = pneg %p407
        $region162: #{pose_transformer_forward.1} parent=119 // pred_check_branch
          %854 = sbr.rel (%p852) target = $region164
        $region163: #{pose_transformer_forward.1} parent=119 // pred_region
          %855 = dma.done [#allocation18], 16
        $region164: #{pose_transformer_forward.1} parent=119 // pred_fallthru
          _
        %p856 = scmp.lt.s32.totalorder %s45, 1
        %s857 = scalar_select %p856, %s45, 1
        %s858 = smul.addr %s857, 4
        %s859 = smul.addr %s858, 8
        %s860 = scalar_lea.vmem %s0, %s859
        %p861 = pneg %p66
        %p862 = pneg %p63
        %p863 = scmp.lt.s32.totalorder %s45, 1
        %s864 = scalar_select %p863, %s45, 1
        %s865 = smul.addr %s864, 4
        %s866 = smul.addr %s865, 8
        %s867 = scalar_lea.vmem %s1, %s866
        %p868 = pneg %p92
        %p869 = pneg %p89
        %p870 = pneg %p113
        %p871 = pneg %p110
        %p872 = pneg %p134
        %p873 = pneg %p131
        %p874 = pneg %p155
        %p875 = pneg %p152
        %p876 = pneg %p176
        %p877 = pneg %p173
        %p878 = pneg %p197
        %p879 = pneg %p194
        %p880 = pneg %p218
        %p881 = pneg %p215
        %p882 = pneg %p239
        %p883 = pneg %p236
        %p884 = pneg %p260
        %p885 = pneg %p257
        %p886 = pneg %p281
        %p887 = pneg %p278
        %p888 = pneg %p302
        %p889 = pneg %p299
        %p890 = pneg %p323
        %p891 = pneg %p320
        %p892 = pneg %p344
        %p893 = pneg %p341
        %p894 = pneg %p365
        %p895 = pneg %p362
        %p896 = pneg %p386
        %p897 = pneg %p383
        %p898 = pneg %p407
        %p899 = pneg %p404
        %p900 = pneg %p428
        %p901 = pneg %p425
        %p902 = pneg %p449
        %p903 = pneg %p446
        %p904 = pneg %p470
        %p905 = pneg %p467
        %p906 = pneg %p491
        %p907 = pneg %p488
        %p908 = pneg %p512
        %p909 = pneg %p509
        %p910 = pneg %p533
        %p911 = pneg %p530
        %p912 = pneg %p554
        %p913 = pneg %p551
        %p914 = pneg %p575
        %p915 = pneg %p572
        %p916 = pneg %p601
        %p917 = pneg %p598
        %s918 = sand.u32 %s588, 1
        %s919 = scalar_lea.sflag [#allocation4], %s918
        %s920 = sand.u32 %s588, 1
        %s921 = smul.addr %s920, 16
        %s922 = scalar_lea.vmem [#allocation20], %s921
        %p923 = scmp.lt.s32.totalorder %s45, 1
        %s924 = scalar_select %p923, %s45, 1
        %s925 = smul.addr %s924, 4
        %s926 = smul.addr %s925, 8
        %s927 = scalar_lea.vmem %s0, %s926
        %p928 = scmp.lt.s32.totalorder %s45, 1
        %s929 = scalar_select %p928, %s45, 1
        %s930 = smul.addr %s929, 4
        %s931 = smul.addr %s930, 8
        %s932 = scalar_lea.vmem %s1, %s931
        %v933 = vld [vmem:[#allocation2] sm:$0xff]
        %v934 = vld [vmem:[#allocation2 + $0x8] sm:$0xff]
        %v935 = vld [vmem:[#allocation2 + $0x10] sm:$0xff]
        %v936 = vld [vmem:[#allocation2 + $0x18] sm:$0xff]
        %v937 = vld [vmem:[#allocation2 + $0x20] sm:$0xff]
        %v938 = vld [vmem:[#allocation2 + $0x28] sm:$0xff]
        %v939 = vld [vmem:[#allocation2 + $0x30] sm:$0xff]
        %v940 = vld [vmem:[#allocation2 + $0x38] sm:$0xff]
        %v941 = vld [vmem:[%s3] sm:$0x1]
        %v942 = vld [vmem:[%s4] sm:$0x1]
        %v943 = vld [vmem:[#allocation5] sm:$0xff]
        %v944 = vld [vmem:[#allocation5 + $0x8] sm:$0xff]
        %v945 = vld [vmem:[#allocation5 + $0x10] sm:$0xff]
        %v946 = vld [vmem:[#allocation5 + $0x18] sm:$0xff]
        %v947 = vld [vmem:[#allocation7] sm:$0x1]
        %v948 = vld [vmem:[#allocation8] sm:$0xff]
        %v949 = vld [vmem:[#allocation8 + $0x8] sm:$0xff]
        %v950 = vld [vmem:[#allocation8 + $0x10] sm:$0xff]
        %v951 = vld [vmem:[#allocation8 + $0x18] sm:$0xff]
        %v952 = vld [vmem:[#allocation10] sm:$0x1]
        %v953 = vld [vmem:[%s9] sm:$0x1]
        %v954 = vld [vmem:[%s10] sm:$0x1]
        %v955 = vld [vmem:[#allocation11] sm:$0xff]
        %v956 = vld [vmem:[#allocation11 + $0x8] sm:$0xff]
        %v957 = vld [vmem:[#allocation11 + $0x10] sm:$0xff]
        %v958 = vld [vmem:[#allocation11 + $0x18] sm:$0xff]
        %v959 = vld [vmem:[#allocation13] sm:$0x1]
        %v960 = vld [vmem:[#allocation14] sm:$0xff]
        %v961 = vld [vmem:[#allocation14 + $0x8] sm:$0xff]
        %v962 = vld [vmem:[#allocation14 + $0x10] sm:$0xff]
        %v963 = vld [vmem:[#allocation14 + $0x18] sm:$0xff]
        %v964 = vld [vmem:[#allocation16] sm:$0x1]
        %v965 = vld [vmem:[#allocation17] sm:$0xff]
        %v966 = vld [vmem:[#allocation17 + $0x8] sm:$0xff]
        %v967 = vld [vmem:[#allocation17 + $0x10] sm:$0xff]
        %v968 = vld [vmem:[#allocation17 + $0x18] sm:$0xff]
        %v969 = vld [vmem:[#allocation19] sm:$0x1]
        %v970 = vld [vmem:[%s17] sm:$0xff]
        %v971 = vld [vmem:[%s17 + $0x8] sm:$0xff]
        %v972 = vld [vmem:[%s17 + $0x10] sm:$0xff]
        %v973 = vld [vmem:[%s17 + $0x18] sm:$0xff]
        %v974 = vld [vmem:[%s18] sm:$0x1]
        %v975 = vld [vmem:[%s19] sm:$0x1]
        %v976 = vld [vmem:[%s20] sm:$0x1]
        %v977 = vld [vmem:[%s21] sm:$0xff]
        %v978 = vld [vmem:[%s21 + $0x8] sm:$0xff]
        %v979 = vld [vmem:[%s21 + $0x10] sm:$0xff]
        %v980 = vld [vmem:[%s21 + $0x18] sm:$0xff]
        %v981 = vld [vmem:[%s22] sm:$0x1]
        %v982 = vld [vmem:[%s23] sm:$0xff]
        %v983 = vld [vmem:[%s23 + $0x8] sm:$0xff]
        %v984 = vld [vmem:[%s23 + $0x10] sm:$0xff]
        %v985 = vld [vmem:[%s23 + $0x18] sm:$0xff]
        %v986 = vld [vmem:[%s24] sm:$0x1]
        %v987 = vld [vmem:[%s927] sm:$0xff]
        %v988 = vld [vmem:[%s927 + $0x8] sm:$0xff]
        %v989 = vld [vmem:[%s927 + $0x10] sm:$0xff]
        %v990 = vld [vmem:[%s927 + $0x18] sm:$0xff]
        %991 = vxpose.xlu0.b32.start [1/16] %v987, 128
        %992 = vxpose.xlu0.b32.cont [2/16] %v988, 128
        %993 = vxpose.xlu0.b32.cont [3/16] %v989, 128
        %994 = vxpose.xlu0.b32.cont [4/16] %v990, 128
        %995 = vxpose.xlu0.b32.cont [5/16] 0.0, 128
        %996 = vxpose.xlu0.b32.cont [6/16] 0.0, 128
        %997 = vxpose.xlu0.b32.cont [7/16] 0.0, 128
        %998 = vxpose.xlu0.b32.cont [8/16] 0.0, 128
        %999 = vxpose.xlu0.b32.cont [9/16] 0.0, 128
        %1000 = vxpose.xlu0.b32.cont [10/16] 0.0, 128
        %1001 = vxpose.xlu0.b32.cont [11/16] 0.0, 128
        %1002 = vxpose.xlu0.b32.cont [12/16] 0.0, 128
        %1003 = vxpose.xlu0.b32.cont [13/16] 0.0, 128
        %1004 = vxpose.xlu0.b32.cont [14/16] 0.0, 128
        %1005 = vxpose.xlu0.b32.cont [15/16] 0.0, 128
        %1006 = vxpose.xlu0.b32.end [16/16] 0.0, 128
        %v1007 = vpop.trf.xlu0
        %v1008 = vpop.trf.xlu0
        %v1009 = vpop.trf.xlu0
        %v1010 = vpop.trf.xlu0
        %v1011 = vpop.trf.xlu0
        %v1012 = vpop.trf.xlu0
        %v1013 = vpop.trf.xlu0
        %v1014 = vpop.trf.xlu0
        %v1015 = vpop.trf.xlu0
        %v1016 = vpop.trf.xlu0
        %v1017 = vpop.trf.xlu0
        %v1018 = vpop.trf.xlu0
        %v1019 = vpop.trf.xlu0
        %v1020 = vpop.trf.xlu0
        %v1021 = vpop.trf.xlu0
        %v1022 = vpop.trf.xlu0
        %v1023 = vld [vmem:[%s932] sm:$0xff]
        %v1024 = vld [vmem:[%s932 + $0x8] sm:$0xff]
        %v1025 = vld [vmem:[%s932 + $0x10] sm:$0xff]
        %v1026 = vld [vmem:[%s932 + $0x18] sm:$0xff]
        %1027 = vxpose.xlu0.b32.start [1/16] %v1023, 128
        %1028 = vxpose.xlu0.b32.cont [2/16] %v1024, 128
        %1029 = vxpose.xlu0.b32.cont [3/16] %v1025, 128
        %1030 = vxpose.xlu0.b32.cont [4/16] %v1026, 128
        %1031 = vxpose.xlu0.b32.cont [5/16] 0.0, 128
        %1032 = vxpose.xlu0.b32.cont [6/16] 0.0, 128
        %1033 = vxpose.xlu0.b32.cont [7/16] 0.0, 128
        %1034 = vxpose.xlu0.b32.cont [8/16] 0.0, 128
        %1035 = vxpose.xlu0.b32.cont [9/16] 0.0, 128
        %1036 = vxpose.xlu0.b32.cont [10/16] 0.0, 128
        %1037 = vxpose.xlu0.b32.cont [11/16] 0.0, 128
        %1038 = vxpose.xlu0.b32.cont [12/16] 0.0, 128
        %1039 = vxpose.xlu0.b32.cont [13/16] 0.0, 128
        %1040 = vxpose.xlu0.b32.cont [14/16] 0.0, 128
        %1041 = vxpose.xlu0.b32.cont [15/16] 0.0, 128
        %1042 = vxpose.xlu0.b32.end [16/16] 0.0, 128
        %v1043 = vpop.trf.xlu0
        %v1044 = vpop.trf.xlu0
        %v1045 = vpop.trf.xlu0
        %v1046 = vpop.trf.xlu0
        %v1047 = vpop.trf.xlu0
        %v1048 = vpop.trf.xlu0
        %v1049 = vpop.trf.xlu0
        %v1050 = vpop.trf.xlu0
        %v1051 = vpop.trf.xlu0
        %v1052 = vpop.trf.xlu0
        %v1053 = vpop.trf.xlu0
        %v1054 = vpop.trf.xlu0
        %v1055 = vpop.trf.xlu0
        %v1056 = vpop.trf.xlu0
        %v1057 = vpop.trf.xlu0
        %v1058 = vpop.trf.xlu0
        %vm1059 = vcmask 261120
        %v1060 = vsel %vm1059, %v1007, 0.0
        %1061 = vadd.xlane.f32.xlu0 %v1060
        %v1062 = vpop.xlane.xlu0 %1061
        %v1063 = vsel %vm1059, %v1008, 0.0
        %1064 = vadd.xlane.f32.xlu0 %v1063
        %v1065 = vpop.xlane.xlu0 %1064
        %v1066 = vrcp.pop 32.0
        %v1067 = vmul.f32 %v1062, %v1066
        %v1068 = vmul.f32 %v1065, %v1066
        %v1069 = vsub.f32 %v1007, %v1067
        %v1070 = vsub.f32 %v1008, %v1068
        %v1071 = vmul.f32 %v1069, %v1069
        %v1072 = vmul.f32 %v1070, %v1070
        %v1073 = vsel %vm1059, %v1071, 0.0
        %1074 = vadd.xlane.f32.xlu0 %v1073
        %v1075 = vpop.xlane.xlu0 %1074
        %v1076 = vsel %vm1059, %v1072, 0.0
        %1077 = vadd.xlane.f32.xlu0 %v1076
        %v1078 = vpop.xlane.xlu0 %1077
        %v1079 = vmul.f32 %v1075, %v1066
        %v1080 = vmul.f32 %v1078, %v1066
        %v1081 = vadd.f32 %v1079, 1e-05
        %v1082 = vadd.f32 %v1080, 1e-05
        %v1083 = vrsqrt.pop %v1081
        %v1084 = vrsqrt.pop %v1082
        %v1085 = vmul.f32 %v1069, %v1083
        %v1086 = vmul.f32 %v1070, %v1084
        %v1088 = vlaneseq
        %v1089 = vshrl.u32 %v1088, 7
        %v1090 = vsub.s32 0, %v1089
        %v1091 = vrot.slane %v941, %v1090
        %v1093 = vmul.f32 %v1085, %v1091
        %v1094 = vmul.f32 %v1086, %v1091
        %v1096 = vlaneseq
        %v1097 = vshrl.u32 %v1096, 7
        %v1098 = vsub.s32 0, %v1097
        %v1099 = vrot.slane %v942, %v1098
        %v1101 = vadd.f32 %v1093, %v1099
        %v1102 = vadd.f32 %v1094, %v1099
        %v1103 = vsel %vm1059, %v1043, 0.0
        %1104 = vadd.xlane.f32.xlu0 %v1103
        %v1105 = vpop.xlane.xlu0 %1104
        %v1106 = vsel %vm1059, %v1044, 0.0
        %1107 = vadd.xlane.f32.xlu0 %v1106
        %v1108 = vpop.xlane.xlu0 %1107
        %v1109 = vsel %vm1059, %v1045, 0.0
        %1110 = vadd.xlane.f32.xlu0 %v1109
        %v1111 = vpop.xlane.xlu0 %1110
        %v1112 = vsel %vm1059, %v1046, 0.0
        %1113 = vadd.xlane.f32.xlu0 %v1112
        %v1114 = vpop.xlane.xlu0 %1113
        %v1115 = vsel %vm1059, %v1047, 0.0
        %1116 = vadd.xlane.f32.xlu0 %v1115
        %v1117 = vpop.xlane.xlu0 %1116
        %v1118 = vsel %vm1059, %v1048, 0.0
        %1119 = vadd.xlane.f32.xlu0 %v1118
        %v1120 = vpop.xlane.xlu0 %1119
        %v1121 = vsel %vm1059, %v1049, 0.0
        %1122 = vadd.xlane.f32.xlu0 %v1121
        %v1123 = vpop.xlane.xlu0 %1122
        %v1124 = vsel %vm1059, %v1050, 0.0
        %1125 = vadd.xlane.f32.xlu0 %v1124
        %v1126 = vpop.xlane.xlu0 %1125
        %v1127 = vmul.f32 %v1105, %v1066
        %v1128 = vmul.f32 %v1108, %v1066
        %v1129 = vmul.f32 %v1111, %v1066
        %v1130 = vmul.f32 %v1114, %v1066
        %v1131 = vmul.f32 %v1117, %v1066
        %v1132 = vmul.f32 %v1120, %v1066
        %v1133 = vmul.f32 %v1123, %v1066
        %v1134 = vmul.f32 %v1126, %v1066
        %v1135 = vsub.f32 %v1043, %v1127
        %v1136 = vsub.f32 %v1044, %v1128
        %v1137 = vsub.f32 %v1045, %v1129
        %v1138 = vsub.f32 %v1046, %v1130
        %v1139 = vsub.f32 %v1047, %v1131
        %v1140 = vsub.f32 %v1048, %v1132
        %v1141 = vsub.f32 %v1049, %v1133
        %v1142 = vsub.f32 %v1050, %v1134
        %v1143 = vmul.f32 %v1135, %v1135
        %v1144 = vmul.f32 %v1136, %v1136
        %v1145 = vmul.f32 %v1137, %v1137
        %v1146 = vmul.f32 %v1138, %v1138
        %v1147 = vmul.f32 %v1139, %v1139
        %v1148 = vmul.f32 %v1140, %v1140
        %v1149 = vmul.f32 %v1141, %v1141
        %v1150 = vmul.f32 %v1142, %v1142
        %v1151 = vsel %vm1059, %v1143, 0.0
        %1152 = vadd.xlane.f32.xlu0 %v1151
        %v1153 = vpop.xlane.xlu0 %1152
        %v1154 = vsel %vm1059, %v1144, 0.0
        %1155 = vadd.xlane.f32.xlu0 %v1154
        %v1156 = vpop.xlane.xlu0 %1155
        %v1157 = vsel %vm1059, %v1145, 0.0
        %1158 = vadd.xlane.f32.xlu0 %v1157
        %v1159 = vpop.xlane.xlu0 %1158
        %v1160 = vsel %vm1059, %v1146, 0.0
        %1161 = vadd.xlane.f32.xlu0 %v1160
        %v1162 = vpop.xlane.xlu0 %1161
        %v1163 = vsel %vm1059, %v1147, 0.0
        %1164 = vadd.xlane.f32.xlu0 %v1163
        %v1165 = vpop.xlane.xlu0 %1164
        %v1166 = vsel %vm1059, %v1148, 0.0
        %1167 = vadd.xlane.f32.xlu0 %v1166
        %v1168 = vpop.xlane.xlu0 %1167
        %v1169 = vsel %vm1059, %v1149, 0.0
        %1170 = vadd.xlane.f32.xlu0 %v1169
        %v1171 = vpop.xlane.xlu0 %1170
        %v1172 = vsel %vm1059, %v1150, 0.0
        %1173 = vadd.xlane.f32.xlu0 %v1172
        %v1174 = vpop.xlane.xlu0 %1173
        %v1175 = vmul.f32 %v1153, %v1066
        %v1176 = vmul.f32 %v1156, %v1066
        %v1177 = vmul.f32 %v1159, %v1066
        %v1178 = vmul.f32 %v1162, %v1066
        %v1179 = vmul.f32 %v1165, %v1066
        %v1180 = vmul.f32 %v1168, %v1066
        %v1181 = vmul.f32 %v1171, %v1066
        %v1182 = vmul.f32 %v1174, %v1066
        %v1183 = vadd.f32 %v1175, 1e-05
        %v1184 = vadd.f32 %v1176, 1e-05
        %v1185 = vadd.f32 %v1177, 1e-05
        %v1186 = vadd.f32 %v1178, 1e-05
        %v1187 = vadd.f32 %v1179, 1e-05
        %v1188 = vadd.f32 %v1180, 1e-05
        %v1189 = vadd.f32 %v1181, 1e-05
        %v1190 = vadd.f32 %v1182, 1e-05
        %v1191 = vrsqrt.pop %v1183
        %v1192 = vrsqrt.pop %v1184
        %v1193 = vrsqrt.pop %v1185
        %v1194 = vrsqrt.pop %v1186
        %v1195 = vrsqrt.pop %v1187
        %v1196 = vrsqrt.pop %v1188
        %v1197 = vrsqrt.pop %v1189
        %v1198 = vrsqrt.pop %v1190
        %v1199 = vmul.f32 %v1135, %v1191
        %v1200 = vmul.f32 %v1136, %v1192
        %v1201 = vmul.f32 %v1137, %v1193
        %v1202 = vmul.f32 %v1138, %v1194
        %v1203 = vmul.f32 %v1139, %v1195
        %v1204 = vmul.f32 %v1140, %v1196
        %v1205 = vmul.f32 %v1141, %v1197
        %v1206 = vmul.f32 %v1142, %v1198
        %v1207 = vmul.f32 %v1199, %v1091
        %v1208 = vmul.f32 %v1200, %v1091
        %v1209 = vmul.f32 %v1201, %v1091
        %v1210 = vmul.f32 %v1202, %v1091
        %v1211 = vmul.f32 %v1203, %v1091
        %v1212 = vmul.f32 %v1204, %v1091
        %v1213 = vmul.f32 %v1205, %v1091
        %v1214 = vmul.f32 %v1206, %v1091
        %v1215 = vadd.f32 %v1207, %v1099
        %v1216 = vadd.f32 %v1208, %v1099
        %v1217 = vadd.f32 %v1209, %v1099
        %v1218 = vadd.f32 %v1210, %v1099
        %v1219 = vadd.f32 %v1211, %v1099
        %v1220 = vadd.f32 %v1212, %v1099
        %v1221 = vadd.f32 %v1213, %v1099
        %v1222 = vadd.f32 %v1214, %v1099
        %v1224 = vlaneseq
        %v1225 = vshrl.u32 %v1224, 7
        %v1226 = vsub.s32 0, %v1225
        %v1227 = vrot.slane %v947, %v1226
        %v1230 = vsel %vm1059, %v1101, 0
        %v1233 = vsel %vm1059, %v1102, 0
        %1235 = vmatprep.subr.mxu0 0.0
        %1236 = vmatpush1.msra.mxu0 %v943
        %1237 = vmatprep.subr.mxu0 0.0
        %1238 = vmatpush1.msra.mxu0 %v944
        %1239 = vmatprep.subr.mxu0 0.0
        %1240 = vmatpush1.msra.mxu0 %v945
        %1241 = vmatprep.subr.mxu0 0.0
        %1242 = vmatpush1.msra.mxu0 %v946
        %1243 = vmatprep.subr.mxu0 0.0
        %1244 = vmatpush1.msra.mxu0 0.0
        %1245 = vmatprep.subr.mxu0 0.0
        %1246 = vmatpush1.msra.mxu0 0.0
        %1247 = vmatprep.subr.mxu0 0.0
        %1248 = vmatpush1.msra.mxu0 0.0
        %1249 = vmatprep.subr.mxu0 0.0
        %1250 = vmatpush1.msra.mxu0 0.0
        %1251 = vmatprep.subr.mxu0 0.0
        %1252 = vmatpush1.msra.mxu0 0.0
        %1253 = vmatprep.subr.mxu0 0.0
        %1254 = vmatpush1.msra.mxu0 0.0
        %1255 = vmatprep.subr.mxu0 0.0
        %1256 = vmatpush1.msra.mxu0 0.0
        %1257 = vmatprep.subr.mxu0 0.0
        %1258 = vmatpush1.msra.mxu0 0.0
        %1259 = vmatprep.subr.mxu0 0.0
        %1260 = vmatpush1.msra.mxu0 0.0
        %1261 = vmatprep.subr.mxu0 0.0
        %1262 = vmatpush1.msra.mxu0 0.0
        %1263 = vmatprep.subr.mxu0 0.0
        %1264 = vmatpush1.msra.mxu0 0.0
        %1265 = vmatprep.subr.mxu0 0.0
        %1266 = vmatpush1.msra.mxu0 0.0
        %1267 = vmatprep.subr.mxu0 0.0
        %1268 = vmatpush1.msra.mxu0 0.0
        %1269 = vmatprep.subr.mxu0 0.0
        %1270 = vmatpush1.msra.mxu0 0.0
        %1271 = vmatprep.subr.mxu0 0.0
        %1272 = vmatpush1.msra.mxu0 0.0
        %1273 = vmatprep.subr.mxu0 0.0
        %1274 = vmatpush1.msra.mxu0 0.0
        %1275 = vmatprep.subr.mxu0 0.0
        %1276 = vmatpush1.msra.mxu0 0.0
        %1277 = vmatprep.subr.mxu0 0.0
        %1278 = vmatpush1.msra.mxu0 0.0
        %1279 = vmatprep.subr.mxu0 0.0
        %1280 = vmatpush1.msra.mxu0 0.0
        %1281 = vmatprep.subr.mxu0 0.0
        %1282 = vmatpush1.msra.mxu0 0.0
        %1283 = vmatprep.subr.mxu0 0.0
        %1284 = vmatpush1.msra.mxu0 0.0
        %1285 = vmatprep.subr.mxu0 0.0
        %1286 = vmatpush1.msra.mxu0 0.0
        %1287 = vmatprep.subr.mxu0 0.0
        %1288 = vmatpush1.msra.mxu0 0.0
        %1289 = vmatprep.subr.mxu0 0.0
        %1290 = vmatpush1.msra.mxu0 0.0
        %1291 = vmatprep.subr.mxu0 0.0
        %1292 = vmatpush1.msra.mxu0 0.0
        %1293 = vmatprep.subr.mxu0 0.0
        %1294 = vmatpush1.msra.mxu0 0.0
        %1295 = vmatprep.subr.mxu0 0.0
        %1296 = vmatpush1.msra.mxu0 0.0
        %1297 = vmatprep.subr.mxu0 0.0
        %1298 = vmatpush1.msra.mxu0 0.0
        %1299 = vmatprep.mubr.f32.mxu0 0.0
        %1300 = vmatmul.mubr.f32.gmra.mrb[0].mxu0 %v1230
        %v1301 = vpop.f32.mrb[0].mxu0
        %v1302 = vadd.f32 %v1227, %v1301
        %v1303 = vpop.f32.mrb[0].mxu0
        %1304 = vmatprep.mubr.f32.mxu0 0.0
        %1305 = vmatmul.mubr.f32.gmra.mrb[0].mxu0 %v1233
        %v1306 = vpop.f32.mrb[0].mxu0
        %v1307 = vadd.f32 %v1227, %v1306
        %v1308 = vpop.f32.mrb[0].mxu0
        %1309 = vdwg.mxu0
        %v1311 = vlaneseq
        %v1312 = vshrl.u32 %v1311, 7
        %v1313 = vsub.s32 0, %v1312
        %v1314 = vrot.slane %v952, %v1313
        %v1317 = vsel %vm1059, %v1215, 0
        %v1320 = vsel %vm1059, %v1216, 0
        %v1323 = vsel %vm1059, %v1217, 0
        %v1326 = vsel %vm1059, %v1218, 0
        %v1329 = vsel %vm1059, %v1219, 0
        %v1332 = vsel %vm1059, %v1220, 0
        %v1335 = vsel %vm1059, %v1221, 0
        %v1338 = vsel %vm1059, %v1222, 0
        %1340 = vmatprep.subr.mxu0 0.0
        %1341 = vmatpush1.msra.mxu0 %v948
        %1342 = vmatprep.subr.mxu0 0.0
        %1343 = vmatpush1.msra.mxu0 %v949
        %1344 = vmatprep.subr.mxu0 0.0
        %1345 = vmatpush1.msra.mxu0 %v950
        %1346 = vmatprep.subr.mxu0 0.0
        %1347 = vmatpush1.msra.mxu0 %v951
        %1348 = vmatprep.subr.mxu0 0.0
        %1349 = vmatpush1.msra.mxu0 0.0
        %1350 = vmatprep.subr.mxu0 0.0
        %1351 = vmatpush1.msra.mxu0 0.0
        %1352 = vmatprep.subr.mxu0 0.0
        %1353 = vmatpush1.msra.mxu0 0.0
        %1354 = vmatprep.subr.mxu0 0.0
        %1355 = vmatpush1.msra.mxu0 0.0
        %1356 = vmatprep.subr.mxu0 0.0
        %1357 = vmatpush1.msra.mxu0 0.0
        %1358 = vmatprep.subr.mxu0 0.0
        %1359 = vmatpush1.msra.mxu0 0.0
        %1360 = vmatprep.subr.mxu0 0.0
        %1361 = vmatpush1.msra.mxu0 0.0
        %1362 = vmatprep.subr.mxu0 0.0
        %1363 = vmatpush1.msra.mxu0 0.0
        %1364 = vmatprep.subr.mxu0 0.0
        %1365 = vmatpush1.msra.mxu0 0.0
        %1366 = vmatprep.subr.mxu0 0.0
        %1367 = vmatpush1.msra.mxu0 0.0
        %1368 = vmatprep.subr.mxu0 0.0
        %1369 = vmatpush1.msra.mxu0 0.0
        %1370 = vmatprep.subr.mxu0 0.0
        %1371 = vmatpush1.msra.mxu0 0.0
        %1372 = vmatprep.subr.mxu0 0.0
        %1373 = vmatpush1.msra.mxu0 0.0
        %1374 = vmatprep.subr.mxu0 0.0
        %1375 = vmatpush1.msra.mxu0 0.0
        %1376 = vmatprep.subr.mxu0 0.0
        %1377 = vmatpush1.msra.mxu0 0.0
        %1378 = vmatprep.subr.mxu0 0.0
        %1379 = vmatpush1.msra.mxu0 0.0
        %1380 = vmatprep.subr.mxu0 0.0
        %1381 = vmatpush1.msra.mxu0 0.0
        %1382 = vmatprep.subr.mxu0 0.0
        %1383 = vmatpush1.msra.mxu0 0.0
        %1384 = vmatprep.subr.mxu0 0.0
        %1385 = vmatpush1.msra.mxu0 0.0
        %1386 = vmatprep.subr.mxu0 0.0
        %1387 = vmatpush1.msra.mxu0 0.0
        %1388 = vmatprep.subr.mxu0 0.0
        %1389 = vmatpush1.msra.mxu0 0.0
        %1390 = vmatprep.subr.mxu0 0.0
        %1391 = vmatpush1.msra.mxu0 0.0
        %1392 = vmatprep.subr.mxu0 0.0
        %1393 = vmatpush1.msra.mxu0 0.0
        %1394 = vmatprep.subr.mxu0 0.0
        %1395 = vmatpush1.msra.mxu0 0.0
        %1396 = vmatprep.subr.mxu0 0.0
        %1397 = vmatpush1.msra.mxu0 0.0
        %1398 = vmatprep.subr.mxu0 0.0
        %1399 = vmatpush1.msra.mxu0 0.0
        %1400 = vmatprep.subr.mxu0 0.0
        %1401 = vmatpush1.msra.mxu0 0.0
        %1402 = vmatprep.subr.mxu0 0.0
        %1403 = vmatpush1.msra.mxu0 0.0
        %1404 = vmatprep.mubr.f32.mxu0 0.0
        %1405 = vmatmul.mubr.f32.gmra.mrb[0].mxu0 %v1317
        %v1406 = vpop.f32.mrb[0].mxu0
        %v1407 = vadd.f32 %v1314, %v1406
        %v1408 = vpop.f32.mrb[0].mxu0
        %1409 = vmatprep.mubr.f32.mxu0 0.0
        %1410 = vmatmul.mubr.f32.gmra.mrb[0].mxu0 %v1320
        %v1411 = vpop.f32.mrb[0].mxu0
        %v1412 = vadd.f32 %v1314, %v1411
        %v1413 = vpop.f32.mrb[0].mxu0
        %1414 = vmatprep.mubr.f32.mxu0 0.0
        %1415 = vmatmul.mubr.f32.gmra.mrb[0].mxu0 %v1323
        %v1416 = vpop.f32.mrb[0].mxu0
        %v1417 = vadd.f32 %v1314, %v1416
        %v1418 = vpop.f32.mrb[0].mxu0
        %1419 = vmatprep.mubr.f32.mxu0 0.0
        %1420 = vmatmul.mubr.f32.gmra.mrb[0].mxu0 %v1326
        %v1421 = vpop.f32.mrb[0].mxu0
        %v1422 = vadd.f32 %v1314, %v1421
        %v1423 = vpop.f32.mrb[0].mxu0
        %1424 = vmatprep.mubr.f32.mxu0 0.0
        %1425 = vmatmul.mubr.f32.gmra.mrb[0].mxu0 %v1329
        %v1426 = vpop.f32.mrb[0].mxu0
        %v1427 = vadd.f32 %v1314, %v1426
        %v1428 = vpop.f32.mrb[0].mxu0
        %1429 = vmatprep.mubr.f32.mxu0 0.0
        %1430 = vmatmul.mubr.f32.gmra.mrb[0].mxu0 %v1332
        %v1431 = vpop.f32.mrb[0].mxu0
        %v1432 = vadd.f32 %v1314, %v1431
        %v1433 = vpop.f32.mrb[0].mxu0
        %1434 = vmatprep.mubr.f32.mxu0 0.0
        %1435 = vmatmul.mubr.f32.gmra.mrb[0].mxu0 %v1335
        %v1436 = vpop.f32.mrb[0].mxu0
        %v1437 = vadd.f32 %v1314, %v1436
        %v1438 = vpop.f32.mrb[0].mxu0
        %1439 = vmatprep.mubr.f32.mxu0 0.0
        %1440 = vmatmul.mubr.f32.gmra.mrb[0].mxu0 %v1338
        %v1441 = vpop.f32.mrb[0].mxu0
        %v1442 = vadd.f32 %v1314, %v1441
        %v1443 = vpop.f32.mrb[0].mxu0
        %1444 = vdwg.mxu0
        %v1446 = vsel %vm1059, %v1302, 0
        %v1449 = vsel %vm1059, %v1307, 0
        %v1452 = vsel %vm1059, %v1407, 0
        %v1455 = vsel %vm1059, %v1412, 0
        %v1458 = vsel %vm1059, %v1417, 0
        %v1461 = vsel %vm1059, %v1422, 0
        %v1464 = vsel %vm1059, %v1427, 0
        %v1467 = vsel %vm1059, %v1432, 0
        %v1470 = vsel %vm1059, %v1437, 0
        %v1473 = vsel %vm1059, %v1442, 0
        %1475 = vmatprep.subr.mxu0 0.0
        %1476 = vmatpush1.xpose.msra.mxu0 %v1452
        %1477 = vmatprep.subr.mxu0 0.0
        %1478 = vmatpush1.xpose.msra.mxu0 %v1455
        %1479 = vmatprep.subr.mxu0 0.0
        %1480 = vmatpush1.xpose.msra.mxu0 %v1458
        %1481 = vmatprep.subr.mxu0 0.0
        %1482 = vmatpush1.xpose.msra.mxu0 %v1461
        %1483 = vmatprep.subr.mxu0 0.0
        %1484 = vmatpush1.xpose.msra.mxu0 %v1464
        %1485 = vmatprep.subr.mxu0 0.0
        %1486 = vmatpush1.xpose.msra.mxu0 %v1467
        %1487 = vmatprep.subr.mxu0 0.0
        %1488 = vmatpush1.xpose.msra.mxu0 %v1470
        %1489 = vmatprep.subr.mxu0 0.0
        %1490 = vmatpush1.xpose.msra.mxu0 %v1473
        %1491 = vmatprep.subr.mxu0 0.0
        %1492 = vmatpush1.xpose.msra.mxu0 0.0
        %1493 = vmatprep.subr.mxu0 0.0
        %1494 = vmatpush1.xpose.msra.mxu0 0.0
        %1495 = vmatprep.subr.mxu0 0.0
        %1496 = vmatpush1.xpose.msra.mxu0 0.0
        %1497 = vmatprep.subr.mxu0 0.0
        %1498 = vmatpush1.xpose.msra.mxu0 0.0
        %1499 = vmatprep.subr.mxu0 0.0
        %1500 = vmatpush1.xpose.msra.mxu0 0.0
        %1501 = vmatprep.subr.mxu0 0.0
        %1502 = vmatpush1.xpose.msra.mxu0 0.0
        %1503 = vmatprep.subr.mxu0 0.0
        %1504 = vmatpush1.xpose.msra.mxu0 0.0
        %1505 = vmatprep.subr.mxu0 0.0
        %1506 = vmatpush1.xpose.msra.mxu0 0.0
        %1507 = vmatprep.subr.mxu0 0.0
        %1508 = vmatpush1.xpose.msra.mxu0 0.0
        %1509 = vmatprep.subr.mxu0 0.0
        %1510 = vmatpush1.xpose.msra.mxu0 0.0
        %1511 = vmatprep.subr.mxu0 0.0
        %1512 = vmatpush1.xpose.msra.mxu0 0.0
        %1513 = vmatprep.subr.mxu0 0.0
        %1514 = vmatpush1.xpose.msra.mxu0 0.0
        %1515 = vmatprep.subr.mxu0 0.0
        %1516 = vmatpush1.xpose.msra.mxu0 0.0
        %1517 = vmatprep.subr.mxu0 0.0
        %1518 = vmatpush1.xpose.msra.mxu0 0.0
        %1519 = vmatprep.subr.mxu0 0.0
        %1520 = vmatpush1.xpose.msra.mxu0 0.0
        %1521 = vmatprep.subr.mxu0 0.0
        %1522 = vmatpush1.xpose.msra.mxu0 0.0
        %1523 = vmatprep.subr.mxu0 0.0
        %1524 = vmatpush1.xpose.msra.mxu0 0.0
        %1525 = vmatprep.subr.mxu0 0.0
        %1526 = vmatpush1.xpose.msra.mxu0 0.0
        %1527 = vmatprep.subr.mxu0 0.0
        %1528 = vmatpush1.xpose.msra.mxu0 0.0
        %1529 = vmatprep.subr.mxu0 0.0
        %1530 = vmatpush1.xpose.msra.mxu0 0.0
        %1531 = vmatprep.subr.mxu0 0.0
        %1532 = vmatpush1.xpose.msra.mxu0 0.0
        %1533 = vmatprep.subr.mxu0 0.0
        %1534 = vmatpush1.xpose.msra.mxu0 0.0
        %1535 = vmatprep.subr.mxu0 0.0
        %1536 = vmatpush1.xpose.msra.mxu0 0.0
        %1537 = vmatprep.subr.mxu0 0.0
        %1538 = vmatpush1.xpose.msra.mxu0 0.0
        %1539 = vmatprep.mubr.f32.mxu0 0.0
        %1540 = vmatmul.mubr.f32.gmra.mrb[0].mxu0 %v1446
        %v1541 = vpop.f32.mrb[0].mxu0
        %v1542 = vadd.f32 0.0, %v1541
        %v1543 = vpop.f32.mrb[0].mxu0
        %1544 = vmatprep.mubr.f32.mxu0 0.0
        %1545 = vmatmul.mubr.f32.gmra.mrb[0].mxu0 %v1449
        %v1546 = vpop.f32.mrb[0].mxu0
        %v1547 = vadd.f32 0.0, %v1546
        %v1548 = vpop.f32.mrb[0].mxu0
        %1549 = vdwg.mxu0
        %vm1550 = vcmask 523264
        %v1551 = vsel %vm1550, %v1542, -inf
        %1552 = vmax.xlane.f32.xlu0 %v1551
        %v1553 = vpop.xlane.xlu0 %1552
        %v1554 = vsel %vm1550, %v1547, -inf
        %1555 = vmax.xlane.f32.xlu0 %v1554
        %v1556 = vpop.xlane.xlu0 %1555
        %v1557 = vsub.f32 %v1542, %v1553
        %v1558 = vsub.f32 %v1547, %v1556
        %v1559 = vmul.f32 %v1557, 1.442695
        %v1560 = vpow.pop %v1559
        %v1561 = vmul.f32 %v1558, 1.442695
        %v1562 = vpow.pop %v1561
        %v1563 = vsel %vm1550, %v1560, 0.0
        %1564 = vadd.xlane.f32.xlu0 %v1563
        %v1565 = vpop.xlane.xlu0 %1564
        %v1566 = vsel %vm1550, %v1562, 0.0
        %1567 = vadd.xlane.f32.xlu0 %v1566
        %v1568 = vpop.xlane.xlu0 %1567
        %v1569 = vrcp.pop %v1565
        %v1570 = vrcp.pop %v1568
        %v1571 = vmul.f32 %v1565, %v1569
        %v1572 = vmul.f32 %v1568, %v1570
        %v1573 = vsub.f32 2.0, %v1571
        %v1574 = vsub.f32 2.0, %v1572
        %v1575 = vmul.f32 %v1569, %v1573
        %v1576 = vmul.f32 %v1570, %v1574
        %v1577 = vmul.f32 %v1560, %v1575
        %v1578 = vmul.f32 %v1562, %v1576
        %v1580 = vsel %vm1550, %v1577, 0
        %v1583 = vsel %vm1550, %v1578, 0
        %1585 = vmatprep.subr.mxu0 0.0
        %1586 = vmatpush1.msra.mxu0 %v933
        %1587 = vmatprep.subr.mxu0 0.0
        %1588 = vmatpush1.msra.mxu0 %v934
        %1589 = vmatprep.subr.mxu0 0.0
        %1590 = vmatpush1.msra.mxu0 %v935
        %1591 = vmatprep.subr.mxu0 0.0
        %1592 = vmatpush1.msra.mxu0 %v936
        %1593 = vmatprep.subr.mxu0 0.0
        %1594 = vmatpush1.msra.mxu0 %v937
        %1595 = vmatprep.subr.mxu0 0.0
        %1596 = vmatpush1.msra.mxu0 %v938
        %1597 = vmatprep.subr.mxu0 0.0
        %1598 = vmatpush1.msra.mxu0 %v939
        %1599 = vmatprep.subr.mxu0 0.0
        %1600 = vmatpush1.msra.mxu0 %v940
        %1601 = vmatprep.subr.mxu0 0.0
        %1602 = vmatpush1.msra.mxu0 0.0
        %1603 = vmatprep.subr.mxu0 0.0
        %1604 = vmatpush1.msra.mxu0 0.0
        %1605 = vmatprep.subr.mxu0 0.0
        %1606 = vmatpush1.msra.mxu0 0.0
        %1607 = vmatprep.subr.mxu0 0.0
        %1608 = vmatpush1.msra.mxu0 0.0
        %1609 = vmatprep.subr.mxu0 0.0
        %1610 = vmatpush1.msra.mxu0 0.0
        %1611 = vmatprep.subr.mxu0 0.0
        %1612 = vmatpush1.msra.mxu0 0.0
        %1613 = vmatprep.subr.mxu0 0.0
        %1614 = vmatpush1.msra.mxu0 0.0
        %1615 = vmatprep.subr.mxu0 0.0
        %1616 = vmatpush1.msra.mxu0 0.0
        %1617 = vmatprep.subr.mxu0 0.0
        %1618 = vmatpush1.msra.mxu0 0.0
        %1619 = vmatprep.subr.mxu0 0.0
        %1620 = vmatpush1.msra.mxu0 0.0
        %1621 = vmatprep.subr.mxu0 0.0
        %1622 = vmatpush1.msra.mxu0 0.0
        %1623 = vmatprep.subr.mxu0 0.0
        %1624 = vmatpush1.msra.mxu0 0.0
        %1625 = vmatprep.subr.mxu0 0.0
        %1626 = vmatpush1.msra.mxu0 0.0
        %1627 = vmatprep.subr.mxu0 0.0
        %1628 = vmatpush1.msra.mxu0 0.0
        %1629 = vmatprep.subr.mxu0 0.0
        %1630 = vmatpush1.msra.mxu0 0.0
        %1631 = vmatprep.subr.mxu0 0.0
        %1632 = vmatpush1.msra.mxu0 0.0
        %1633 = vmatprep.subr.mxu0 0.0
        %1634 = vmatpush1.msra.mxu0 0.0
        %1635 = vmatprep.subr.mxu0 0.0
        %1636 = vmatpush1.msra.mxu0 0.0
        %1637 = vmatprep.subr.mxu0 0.0
        %1638 = vmatpush1.msra.mxu0 0.0
        %1639 = vmatprep.subr.mxu0 0.0
        %1640 = vmatpush1.msra.mxu0 0.0
        %1641 = vmatprep.subr.mxu0 0.0
        %1642 = vmatpush1.msra.mxu0 0.0
        %1643 = vmatprep.subr.mxu0 0.0
        %1644 = vmatpush1.msra.mxu0 0.0
        %1645 = vmatprep.subr.mxu0 0.0
        %1646 = vmatpush1.msra.mxu0 0.0
        %1647 = vmatprep.subr.mxu0 0.0
        %1648 = vmatpush1.msra.mxu0 0.0
        %1649 = vmatprep.mubr.f32.mxu0 0.0
        %1650 = vmatmul.mubr.f32.gmra.mrb[0].mxu0 %v1580
        %v1651 = vpop.f32.mrb[0].mxu0
        %v1652 = vadd.f32 0.0, %v1651
        %v1653 = vpop.f32.mrb[0].mxu0
        %1654 = vmatprep.mubr.f32.mxu0 0.0
        %1655 = vmatmul.mubr.f32.gmra.mrb[0].mxu0 %v1583
        %v1656 = vpop.f32.mrb[0].mxu0
        %v1657 = vadd.f32 0.0, %v1656
        %v1658 = vpop.f32.mrb[0].mxu0
        %1659 = vdwg.mxu0
        %v1660 = vsel %vm1059, %v1652, 0.0
        %1661 = vadd.xlane.f32.xlu0 %v1660
        %v1662 = vpop.xlane.xlu0 %1661
        %v1663 = vsel %vm1059, %v1657, 0.0
        %1664 = vadd.xlane.f32.xlu0 %v1663
        %v1665 = vpop.xlane.xlu0 %1664
        %v1666 = vmul.f32 %v1662, %v1066
        %v1667 = vmul.f32 %v1665, %v1066
        %v1668 = vsub.f32 %v1652, %v1666
        %v1669 = vsub.f32 %v1657, %v1667
        %v1670 = vmul.f32 %v1668, %v1668
        %v1671 = vmul.f32 %v1669, %v1669
        %v1672 = vsel %vm1059, %v1670, 0.0
        %1673 = vadd.xlane.f32.xlu0 %v1672
        %v1674 = vpop.xlane.xlu0 %1673
        %v1675 = vsel %vm1059, %v1671, 0.0
        %1676 = vadd.xlane.f32.xlu0 %v1675
        %v1677 = vpop.xlane.xlu0 %1676
        %v1678 = vmul.f32 %v1674, %v1066
        %v1679 = vmul.f32 %v1677, %v1066
        %v1680 = vadd.f32 %v1678, 1e-05
        %v1681 = vadd.f32 %v1679, 1e-05
        %v1682 = vrsqrt.pop %v1680
        %v1683 = vrsqrt.pop %v1681
        %v1684 = vmul.f32 %v1668, %v1682
        %v1685 = vmul.f32 %v1669, %v1683
        %v1687 = vlaneseq
        %v1688 = vshrl.u32 %v1687, 7
        %v1689 = vsub.s32 0, %v1688
        %v1690 = vrot.slane %v953, %v1689
        %v1692 = vmul.f32 %v1684, %v1690
        %v1693 = vmul.f32 %v1685, %v1690
        %v1695 = vlaneseq
        %v1696 = vshrl.u32 %v1695, 7
        %v1697 = vsub.s32 0, %v1696
        %v1698 = vrot.slane %v954, %v1697
        %v1700 = vadd.f32 %v1692, %v1698
        %v1701 = vadd.f32 %v1693, %v1698
        %v1703 = vlaneseq
        %v1704 = vshrl.u32 %v1703, 7
        %v1705 = vsub.s32 0, %v1704
        %v1706 = vrot.slane %v959, %v1705
        %v1709 = vsel %vm1059, %v1700, 0
        %v1712 = vsel %vm1059, %v1701, 0
        %1714 = vmatprep.subr.mxu0 0.0
        %1715 = vmatpush1.msra.mxu0 %v955
        %1716 = vmatprep.subr.mxu0 0.0
        %1717 = vmatpush1.msra.mxu0 %v956
        %1718 = vmatprep.subr.mxu0 0.0
        %1719 = vmatpush1.msra.mxu0 %v957
        %1720 = vmatprep.subr.mxu0 0.0
        %1721 = vmatpush1.msra.mxu0 %v958
        %1722 = vmatprep.subr.mxu0 0.0
        %1723 = vmatpush1.msra.mxu0 0.0
        %1724 = vmatprep.subr.mxu0 0.0
        %1725 = vmatpush1.msra.mxu0 0.0
        %1726 = vmatprep.subr.mxu0 0.0
        %1727 = vmatpush1.msra.mxu0 0.0
        %1728 = vmatprep.subr.mxu0 0.0
        %1729 = vmatpush1.msra.mxu0 0.0
        %1730 = vmatprep.subr.mxu0 0.0
        %1731 = vmatpush1.msra.mxu0 0.0
        %1732 = vmatprep.subr.mxu0 0.0
        %1733 = vmatpush1.msra.mxu0 0.0
        %1734 = vmatprep.subr.mxu0 0.0
        %1735 = vmatpush1.msra.mxu0 0.0
        %1736 = vmatprep.subr.mxu0 0.0
        %1737 = vmatpush1.msra.mxu0 0.0
        %1738 = vmatprep.subr.mxu0 0.0
        %1739 = vmatpush1.msra.mxu0 0.0
        %1740 = vmatprep.subr.mxu0 0.0
        %1741 = vmatpush1.msra.mxu0 0.0
        %1742 = vmatprep.subr.mxu0 0.0
        %1743 = vmatpush1.msra.mxu0 0.0
        %1744 = vmatprep.subr.mxu0 0.0
        %1745 = vmatpush1.msra.mxu0 0.0
        %1746 = vmatprep.subr.mxu0 0.0
        %1747 = vmatpush1.msra.mxu0 0.0
        %1748 = vmatprep.subr.mxu0 0.0
        %1749 = vmatpush1.msra.mxu0 0.0
        %1750 = vmatprep.subr.mxu0 0.0
        %1751 = vmatpush1.msra.mxu0 0.0
        %1752 = vmatprep.subr.mxu0 0.0
        %1753 = vmatpush1.msra.mxu0 0.0
        %1754 = vmatprep.subr.mxu0 0.0
        %1755 = vmatpush1.msra.mxu0 0.0
        %1756 = vmatprep.subr.mxu0 0.0
        %1757 = vmatpush1.msra.mxu0 0.0
        %1758 = vmatprep.subr.mxu0 0.0
        %1759 = vmatpush1.msra.mxu0 0.0
        %1760 = vmatprep.subr.mxu0 0.0
        %1761 = vmatpush1.msra.mxu0 0.0
        %1762 = vmatprep.subr.mxu0 0.0
        %1763 = vmatpush1.msra.mxu0 0.0
        %1764 = vmatprep.subr.mxu0 0.0
        %1765 = vmatpush1.msra.mxu0 0.0
        %1766 = vmatprep.subr.mxu0 0.0
        %1767 = vmatpush1.msra.mxu0 0.0
        %1768 = vmatprep.subr.mxu0 0.0
        %1769 = vmatpush1.msra.mxu0 0.0
        %1770 = vmatprep.subr.mxu0 0.0
        %1771 = vmatpush1.msra.mxu0 0.0
        %1772 = vmatprep.subr.mxu0 0.0
        %1773 = vmatpush1.msra.mxu0 0.0
        %1774 = vmatprep.subr.mxu0 0.0
        %1775 = vmatpush1.msra.mxu0 0.0
        %1776 = vmatprep.subr.mxu0 0.0
        %1777 = vmatpush1.msra.mxu0 0.0
        %1778 = vmatprep.mubr.f32.mxu0 0.0
        %1779 = vmatmul.mubr.f32.gmra.mrb[0].mxu0 %v1709
        %v1780 = vpop.f32.mrb[0].mxu0
        %v1781 = vadd.f32 %v1706, %v1780
        %v1782 = vpop.f32.mrb[0].mxu0
        %1783 = vmatprep.mubr.f32.mxu0 0.0
        %1784 = vmatmul.mubr.f32.gmra.mrb[0].mxu0 %v1712
        %v1785 = vpop.f32.mrb[0].mxu0
        %v1786 = vadd.f32 %v1706, %v1785
        %v1787 = vpop.f32.mrb[0].mxu0
        %1788 = vdwg.mxu0
        %v1790 = vlaneseq
        %v1791 = vshrl.u32 %v1790, 7
        %v1792 = vsub.s32 0, %v1791
        %v1793 = vrot.slane %v964, %v1792
        %1795 = vmatprep.subr.mxu0 0.0
        %1796 = vmatpush1.msra.mxu0 %v960
        %1797 = vmatprep.subr.mxu0 0.0
        %1798 = vmatpush1.msra.mxu0 %v961
        %1799 = vmatprep.subr.mxu0 0.0
        %1800 = vmatpush1.msra.mxu0 %v962
        %1801 = vmatprep.subr.mxu0 0.0
        %1802 = vmatpush1.msra.mxu0 %v963
        %1803 = vmatprep.subr.mxu0 0.0
        %1804 = vmatpush1.msra.mxu0 0.0
        %1805 = vmatprep.subr.mxu0 0.0
        %1806 = vmatpush1.msra.mxu0 0.0
        %1807 = vmatprep.subr.mxu0 0.0
        %1808 = vmatpush1.msra.mxu0 0.0
        %1809 = vmatprep.subr.mxu0 0.0
        %1810 = vmatpush1.msra.mxu0 0.0
        %1811 = vmatprep.subr.mxu0 0.0
        %1812 = vmatpush1.msra.mxu0 0.0
        %1813 = vmatprep.subr.mxu0 0.0
        %1814 = vmatpush1.msra.mxu0 0.0
        %1815 = vmatprep.subr.mxu0 0.0
        %1816 = vmatpush1.msra.mxu0 0.0
        %1817 = vmatprep.subr.mxu0 0.0
        %1818 = vmatpush1.msra.mxu0 0.0
        %1819 = vmatprep.subr.mxu0 0.0
        %1820 = vmatpush1.msra.mxu0 0.0
        %1821 = vmatprep.subr.mxu0 0.0
        %1822 = vmatpush1.msra.mxu0 0.0
        %1823 = vmatprep.subr.mxu0 0.0
        %1824 = vmatpush1.msra.mxu0 0.0
        %1825 = vmatprep.subr.mxu0 0.0
        %1826 = vmatpush1.msra.mxu0 0.0
        %1827 = vmatprep.subr.mxu0 0.0
        %1828 = vmatpush1.msra.mxu0 0.0
        %1829 = vmatprep.subr.mxu0 0.0
        %1830 = vmatpush1.msra.mxu0 0.0
        %1831 = vmatprep.subr.mxu0 0.0
        %1832 = vmatpush1.msra.mxu0 0.0
        %1833 = vmatprep.subr.mxu0 0.0
        %1834 = vmatpush1.msra.mxu0 0.0
        %1835 = vmatprep.subr.mxu0 0.0
        %1836 = vmatpush1.msra.mxu0 0.0
        %1837 = vmatprep.subr.mxu0 0.0
        %1838 = vmatpush1.msra.mxu0 0.0
        %1839 = vmatprep.subr.mxu0 0.0
        %1840 = vmatpush1.msra.mxu0 0.0
        %1841 = vmatprep.subr.mxu0 0.0
        %1842 = vmatpush1.msra.mxu0 0.0
        %1843 = vmatprep.subr.mxu0 0.0
        %1844 = vmatpush1.msra.mxu0 0.0
        %1845 = vmatprep.subr.mxu0 0.0
        %1846 = vmatpush1.msra.mxu0 0.0
        %1847 = vmatprep.subr.mxu0 0.0
        %1848 = vmatpush1.msra.mxu0 0.0
        %1849 = vmatprep.subr.mxu0 0.0
        %1850 = vmatpush1.msra.mxu0 0.0
        %1851 = vmatprep.subr.mxu0 0.0
        %1852 = vmatpush1.msra.mxu0 0.0
        %1853 = vmatprep.subr.mxu0 0.0
        %1854 = vmatpush1.msra.mxu0 0.0
        %1855 = vmatprep.subr.mxu0 0.0
        %1856 = vmatpush1.msra.mxu0 0.0
        %1857 = vmatprep.subr.mxu0 0.0
        %1858 = vmatpush1.msra.mxu0 0.0
        %1859 = vmatprep.mubr.f32.mxu0 0.0
        %1860 = vmatmul.mubr.f32.gmra.mrb[0].mxu0 %v1709
        %v1861 = vpop.f32.mrb[0].mxu0
        %v1862 = vadd.f32 %v1793, %v1861
        %v1863 = vpop.f32.mrb[0].mxu0
        %1864 = vmatprep.mubr.f32.mxu0 0.0
        %1865 = vmatmul.mubr.f32.gmra.mrb[0].mxu0 %v1712
        %v1866 = vpop.f32.mrb[0].mxu0
        %v1867 = vadd.f32 %v1793, %v1866
        %v1868 = vpop.f32.mrb[0].mxu0
        %1869 = vdwg.mxu0
        %v1871 = vlaneseq
        %v1872 = vshrl.u32 %v1871, 7
        %v1873 = vsub.s32 0, %v1872
        %v1874 = vrot.slane %v969, %v1873
        %1876 = vmatprep.subr.mxu0 0.0
        %1877 = vmatpush1.msra.mxu0 %v965
        %1878 = vmatprep.subr.mxu0 0.0
        %1879 = vmatpush1.msra.mxu0 %v966
        %1880 = vmatprep.subr.mxu0 0.0
        %1881 = vmatpush1.msra.mxu0 %v967
        %1882 = vmatprep.subr.mxu0 0.0
        %1883 = vmatpush1.msra.mxu0 %v968
        %1884 = vmatprep.subr.mxu0 0.0
        %1885 = vmatpush1.msra.mxu0 0.0
        %1886 = vmatprep.subr.mxu0 0.0
        %1887 = vmatpush1.msra.mxu0 0.0
        %1888 = vmatprep.subr.mxu0 0.0
        %1889 = vmatpush1.msra.mxu0 0.0
        %1890 = vmatprep.subr.mxu0 0.0
        %1891 = vmatpush1.msra.mxu0 0.0
        %1892 = vmatprep.subr.mxu0 0.0
        %1893 = vmatpush1.msra.mxu0 0.0
        %1894 = vmatprep.subr.mxu0 0.0
        %1895 = vmatpush1.msra.mxu0 0.0
        %1896 = vmatprep.subr.mxu0 0.0
        %1897 = vmatpush1.msra.mxu0 0.0
        %1898 = vmatprep.subr.mxu0 0.0
        %1899 = vmatpush1.msra.mxu0 0.0
        %1900 = vmatprep.subr.mxu0 0.0
        %1901 = vmatpush1.msra.mxu0 0.0
        %1902 = vmatprep.subr.mxu0 0.0
        %1903 = vmatpush1.msra.mxu0 0.0
        %1904 = vmatprep.subr.mxu0 0.0
        %1905 = vmatpush1.msra.mxu0 0.0
        %1906 = vmatprep.subr.mxu0 0.0
        %1907 = vmatpush1.msra.mxu0 0.0
        %1908 = vmatprep.subr.mxu0 0.0
        %1909 = vmatpush1.msra.mxu0 0.0
        %1910 = vmatprep.subr.mxu0 0.0
        %1911 = vmatpush1.msra.mxu0 0.0
        %1912 = vmatprep.subr.mxu0 0.0
        %1913 = vmatpush1.msra.mxu0 0.0
        %1914 = vmatprep.subr.mxu0 0.0
        %1915 = vmatpush1.msra.mxu0 0.0
        %1916 = vmatprep.subr.mxu0 0.0
        %1917 = vmatpush1.msra.mxu0 0.0
        %1918 = vmatprep.subr.mxu0 0.0
        %1919 = vmatpush1.msra.mxu0 0.0
        %1920 = vmatprep.subr.mxu0 0.0
        %1921 = vmatpush1.msra.mxu0 0.0
        %1922 = vmatprep.subr.mxu0 0.0
        %1923 = vmatpush1.msra.mxu0 0.0
        %1924 = vmatprep.subr.mxu0 0.0
        %1925 = vmatpush1.msra.mxu0 0.0
        %1926 = vmatprep.subr.mxu0 0.0
        %1927 = vmatpush1.msra.mxu0 0.0
        %1928 = vmatprep.subr.mxu0 0.0
        %1929 = vmatpush1.msra.mxu0 0.0
        %1930 = vmatprep.subr.mxu0 0.0
        %1931 = vmatpush1.msra.mxu0 0.0
        %1932 = vmatprep.subr.mxu0 0.0
        %1933 = vmatpush1.msra.mxu0 0.0
        %1934 = vmatprep.subr.mxu0 0.0
        %1935 = vmatpush1.msra.mxu0 0.0
        %1936 = vmatprep.subr.mxu0 0.0
        %1937 = vmatpush1.msra.mxu0 0.0
        %1938 = vmatprep.subr.mxu0 0.0
        %1939 = vmatpush1.msra.mxu0 0.0
        %1940 = vmatprep.mubr.f32.mxu0 0.0
        %1941 = vmatmul.mubr.f32.gmra.mrb[0].mxu0 %v1709
        %v1942 = vpop.f32.mrb[0].mxu0
        %v1943 = vadd.f32 %v1874, %v1942
        %v1944 = vpop.f32.mrb[0].mxu0
        %1945 = vmatprep.mubr.f32.mxu0 0.0
        %1946 = vmatmul.mubr.f32.gmra.mrb[0].mxu0 %v1712
        %v1947 = vpop.f32.mrb[0].mxu0
        %v1948 = vadd.f32 %v1874, %v1947
        %v1949 = vpop.f32.mrb[0].mxu0
        %1950 = vdwg.mxu0
        %v1952 = vsel %vm1059, %v1781, 0
        %v1955 = vsel %vm1059, %v1786, 0
        %v1958 = vsel %vm1059, %v1862, 0
        %v1961 = vsel %vm1059, %v1867, 0
        %1963 = vmatprep.subr.mxu0 0.0
        %1964 = vmatpush1.xpose.msra.mxu0 %v1958
        %1965 = vmatprep.subr.mxu0 0.0
        %1966 = vmatpush1.xpose.msra.mxu0 %v1961
        %1967 = vmatprep.subr.mxu0 0.0
        %1968 = vmatpush1.xpose.msra.mxu0 0.0
        %1969 = vmatprep.subr.mxu0 0.0
        %1970 = vmatpush1.xpose.msra.mxu0 0.0
        %1971 = vmatprep.subr.mxu0 0.0
        %1972 = vmatpush1.xpose.msra.mxu0 0.0
        %1973 = vmatprep.subr.mxu0 0.0
        %1974 = vmatpush1.xpose.msra.mxu0 0.0
        %1975 = vmatprep.subr.mxu0 0.0
        %1976 = vmatpush1.xpose.msra.mxu0 0.0
        %1977 = vmatprep.subr.mxu0 0.0
        %1978 = vmatpush1.xpose.msra.mxu0 0.0
        %1979 = vmatprep.subr.mxu0 0.0
        %1980 = vmatpush1.xpose.msra.mxu0 0.0
        %1981 = vmatprep.subr.mxu0 0.0
        %1982 = vmatpush1.xpose.msra.mxu0 0.0
        %1983 = vmatprep.subr.mxu0 0.0
        %1984 = vmatpush1.xpose.msra.mxu0 0.0
        %1985 = vmatprep.subr.mxu0 0.0
        %1986 = vmatpush1.xpose.msra.mxu0 0.0
        %1987 = vmatprep.subr.mxu0 0.0
        %1988 = vmatpush1.xpose.msra.mxu0 0.0
        %1989 = vmatprep.subr.mxu0 0.0
        %1990 = vmatpush1.xpose.msra.mxu0 0.0
        %1991 = vmatprep.subr.mxu0 0.0
        %1992 = vmatpush1.xpose.msra.mxu0 0.0
        %1993 = vmatprep.subr.mxu0 0.0
        %1994 = vmatpush1.xpose.msra.mxu0 0.0
        %1995 = vmatprep.subr.mxu0 0.0
        %1996 = vmatpush1.xpose.msra.mxu0 0.0
        %1997 = vmatprep.subr.mxu0 0.0
        %1998 = vmatpush1.xpose.msra.mxu0 0.0
        %1999 = vmatprep.subr.mxu0 0.0
        %2000 = vmatpush1.xpose.msra.mxu0 0.0
        %2001 = vmatprep.subr.mxu0 0.0
        %2002 = vmatpush1.xpose.msra.mxu0 0.0
        %2003 = vmatprep.subr.mxu0 0.0
        %2004 = vmatpush1.xpose.msra.mxu0 0.0
        %2005 = vmatprep.subr.mxu0 0.0
        %2006 = vmatpush1.xpose.msra.mxu0 0.0
        %2007 = vmatprep.subr.mxu0 0.0
        %2008 = vmatpush1.xpose.msra.mxu0 0.0
        %2009 = vmatprep.subr.mxu0 0.0
        %2010 = vmatpush1.xpose.msra.mxu0 0.0
        %2011 = vmatprep.subr.mxu0 0.0
        %2012 = vmatpush1.xpose.msra.mxu0 0.0
        %2013 = vmatprep.subr.mxu0 0.0
        %2014 = vmatpush1.xpose.msra.mxu0 0.0
        %2015 = vmatprep.subr.mxu0 0.0
        %2016 = vmatpush1.xpose.msra.mxu0 0.0
        %2017 = vmatprep.subr.mxu0 0.0
        %2018 = vmatpush1.xpose.msra.mxu0 0.0
        %2019 = vmatprep.subr.mxu0 0.0
        %2020 = vmatpush1.xpose.msra.mxu0 0.0
        %2021 = vmatprep.subr.mxu0 0.0
        %2022 = vmatpush1.xpose.msra.mxu0 0.0
        %2023 = vmatprep.subr.mxu0 0.0
        %2024 = vmatpush1.xpose.msra.mxu0 0.0
        %2025 = vmatprep.subr.mxu0 0.0
        %2026 = vmatpush1.xpose.msra.mxu0 0.0
        %2027 = vmatprep.mubr.f32.mxu0 0.0
        %2028 = vmatmul.mubr.f32.gmra.mrb[0].mxu0 %v1952
        %v2029 = vpop.f32.mrb[0].mxu0
        %v2030 = vadd.f32 0.0, %v2029
        %v2031 = vpop.f32.mrb[0].mxu0
        %2032 = vmatprep.mubr.f32.mxu0 0.0
        %2033 = vmatmul.mubr.f32.gmra.mrb[0].mxu0 %v1955
        %v2034 = vpop.f32.mrb[0].mxu0
        %v2035 = vadd.f32 0.0, %v2034
        %v2036 = vpop.f32.mrb[0].mxu0
        %2037 = vdwg.mxu0
        %vm2038 = vcmask 130048
        %v2039 = vsel %vm2038, %v2030, -inf
        %2040 = vmax.xlane.f32.xlu0 %v2039
        %v2041 = vpop.xlane.xlu0 %2040
        %v2042 = vsel %vm2038, %v2035, -inf
        %2043 = vmax.xlane.f32.xlu0 %v2042
        %v2044 = vpop.xlane.xlu0 %2043
        %v2045 = vsub.f32 %v2030, %v2041
        %v2046 = vsub.f32 %v2035, %v2044
        %v2047 = vmul.f32 %v2045, 1.442695
        %v2048 = vpow.pop %v2047
        %v2049 = vmul.f32 %v2046, 1.442695
        %v2050 = vpow.pop %v2049
        %v2051 = vsel %vm2038, %v2048, 0.0
        %2052 = vadd.xlane.f32.xlu0 %v2051
        %v2053 = vpop.xlane.xlu0 %2052
        %v2054 = vsel %vm2038, %v2050, 0.0
        %2055 = vadd.xlane.f32.xlu0 %v2054
        %v2056 = vpop.xlane.xlu0 %2055
        %v2057 = vrcp.pop %v2053
        %v2058 = vrcp.pop %v2056
        %v2059 = vmul.f32 %v2053, %v2057
        %v2060 = vmul.f32 %v2056, %v2058
        %v2061 = vsub.f32 2.0, %v2059
        %v2062 = vsub.f32 2.0, %v2060
        %v2063 = vmul.f32 %v2057, %v2061
        %v2064 = vmul.f32 %v2058, %v2062
        %v2065 = vmul.f32 %v2048, %v2063
        %v2066 = vmul.f32 %v2050, %v2064
        %v2068 = vsel %vm2038, %v2065, 0
        %v2071 = vsel %vm2038, %v2066, 0
        %2073 = vmatprep.subr.mxu0 0.0
        %2074 = vmatpush1.msra.mxu0 %v1943
        %2075 = vmatprep.subr.mxu0 0.0
        %2076 = vmatpush1.msra.mxu0 %v1948
        %2077 = vmatprep.subr.mxu0 0.0
        %2078 = vmatpush1.msra.mxu0 0.0
        %2079 = vmatprep.subr.mxu0 0.0
        %2080 = vmatpush1.msra.mxu0 0.0
        %2081 = vmatprep.subr.mxu0 0.0
        %2082 = vmatpush1.msra.mxu0 0.0
        %2083 = vmatprep.subr.mxu0 0.0
        %2084 = vmatpush1.msra.mxu0 0.0
        %2085 = vmatprep.subr.mxu0 0.0
        %2086 = vmatpush1.msra.mxu0 0.0
        %2087 = vmatprep.subr.mxu0 0.0
        %2088 = vmatpush1.msra.mxu0 0.0
        %2089 = vmatprep.subr.mxu0 0.0
        %2090 = vmatpush1.msra.mxu0 0.0
        %2091 = vmatprep.subr.mxu0 0.0
        %2092 = vmatpush1.msra.mxu0 0.0
        %2093 = vmatprep.subr.mxu0 0.0
        %2094 = vmatpush1.msra.mxu0 0.0
        %2095 = vmatprep.subr.mxu0 0.0
        %2096 = vmatpush1.msra.mxu0 0.0
        %2097 = vmatprep.subr.mxu0 0.0
        %2098 = vmatpush1.msra.mxu0 0.0
        %2099 = vmatprep.subr.mxu0 0.0
        %2100 = vmatpush1.msra.mxu0 0.0
        %2101 = vmatprep.subr.mxu0 0.0
        %2102 = vmatpush1.msra.mxu0 0.0
        %2103 = vmatprep.subr.mxu0 0.0
        %2104 = vmatpush1.msra.mxu0 0.0
        %2105 = vmatprep.subr.mxu0 0.0
        %2106 = vmatpush1.msra.mxu0 0.0
        %2107 = vmatprep.subr.mxu0 0.0
        %2108 = vmatpush1.msra.mxu0 0.0
        %2109 = vmatprep.subr.mxu0 0.0
        %2110 = vmatpush1.msra.mxu0 0.0
        %2111 = vmatprep.subr.mxu0 0.0
        %2112 = vmatpush1.msra.mxu0 0.0
        %2113 = vmatprep.subr.mxu0 0.0
        %2114 = vmatpush1.msra.mxu0 0.0
        %2115 = vmatprep.subr.mxu0 0.0
        %2116 = vmatpush1.msra.mxu0 0.0
        %2117 = vmatprep.subr.mxu0 0.0
        %2118 = vmatpush1.msra.mxu0 0.0
        %2119 = vmatprep.subr.mxu0 0.0
        %2120 = vmatpush1.msra.mxu0 0.0
        %2121 = vmatprep.subr.mxu0 0.0
        %2122 = vmatpush1.msra.mxu0 0.0
        %2123 = vmatprep.subr.mxu0 0.0
        %2124 = vmatpush1.msra.mxu0 0.0
        %2125 = vmatprep.subr.mxu0 0.0
        %2126 = vmatpush1.msra.mxu0 0.0
        %2127 = vmatprep.subr.mxu0 0.0
        %2128 = vmatpush1.msra.mxu0 0.0
        %2129 = vmatprep.subr.mxu0 0.0
        %2130 = vmatpush1.msra.mxu0 0.0
        %2131 = vmatprep.subr.mxu0 0.0
        %2132 = vmatpush1.msra.mxu0 0.0
        %2133 = vmatprep.subr.mxu0 0.0
        %2134 = vmatpush1.msra.mxu0 0.0
        %2135 = vmatprep.subr.mxu0 0.0
        %2136 = vmatpush1.msra.mxu0 0.0
        %2137 = vmatprep.mubr.f32.mxu0 0.0
        %2138 = vmatmul.mubr.f32.gmra.mrb[0].mxu0 %v2068
        %v2139 = vpop.f32.mrb[0].mxu0
        %v2140 = vadd.f32 0.0, %v2139
        %v2141 = vpop.f32.mrb[0].mxu0
        %2142 = vmatprep.mubr.f32.mxu0 0.0
        %2143 = vmatmul.mubr.f32.gmra.mrb[0].mxu0 %v2071
        %v2144 = vpop.f32.mrb[0].mxu0
        %v2145 = vadd.f32 0.0, %v2144
        %v2146 = vpop.f32.mrb[0].mxu0
        %2147 = vdwg.mxu0
        %v2149 = vlaneseq
        %v2150 = vshrl.u32 %v2149, 7
        %v2151 = vsub.s32 0, %v2150
        %v2152 = vrot.slane %v974, %v2151
        %v2155 = vsel %vm1059, %v2140, 0
        %v2158 = vsel %vm1059, %v2145, 0
        %2160 = vmatprep.subr.mxu0 0.0
        %2161 = vmatpush1.msra.mxu0 %v970
        %2162 = vmatprep.subr.mxu0 0.0
        %2163 = vmatpush1.msra.mxu0 %v971
        %2164 = vmatprep.subr.mxu0 0.0
        %2165 = vmatpush1.msra.mxu0 %v972
        %2166 = vmatprep.subr.mxu0 0.0
        %2167 = vmatpush1.msra.mxu0 %v973
        %2168 = vmatprep.subr.mxu0 0.0
        %2169 = vmatpush1.msra.mxu0 0.0
        %2170 = vmatprep.subr.mxu0 0.0
        %2171 = vmatpush1.msra.mxu0 0.0
        %2172 = vmatprep.subr.mxu0 0.0
        %2173 = vmatpush1.msra.mxu0 0.0
        %2174 = vmatprep.subr.mxu0 0.0
        %2175 = vmatpush1.msra.mxu0 0.0
        %2176 = vmatprep.subr.mxu0 0.0
        %2177 = vmatpush1.msra.mxu0 0.0
        %2178 = vmatprep.subr.mxu0 0.0
        %2179 = vmatpush1.msra.mxu0 0.0
        %2180 = vmatprep.subr.mxu0 0.0
        %2181 = vmatpush1.msra.mxu0 0.0
        %2182 = vmatprep.subr.mxu0 0.0
        %2183 = vmatpush1.msra.mxu0 0.0
        %2184 = vmatprep.subr.mxu0 0.0
        %2185 = vmatpush1.msra.mxu0 0.0
        %2186 = vmatprep.subr.mxu0 0.0
        %2187 = vmatpush1.msra.mxu0 0.0
        %2188 = vmatprep.subr.mxu0 0.0
        %2189 = vmatpush1.msra.mxu0 0.0
        %2190 = vmatprep.subr.mxu0 0.0
        %2191 = vmatpush1.msra.mxu0 0.0
        %2192 = vmatprep.subr.mxu0 0.0
        %2193 = vmatpush1.msra.mxu0 0.0
        %2194 = vmatprep.subr.mxu0 0.0
        %2195 = vmatpush1.msra.mxu0 0.0
        %2196 = vmatprep.subr.mxu0 0.0
        %2197 = vmatpush1.msra.mxu0 0.0
        %2198 = vmatprep.subr.mxu0 0.0
        %2199 = vmatpush1.msra.mxu0 0.0
        %2200 = vmatprep.subr.mxu0 0.0
        %2201 = vmatpush1.msra.mxu0 0.0
        %2202 = vmatprep.subr.mxu0 0.0
        %2203 = vmatpush1.msra.mxu0 0.0
        %2204 = vmatprep.subr.mxu0 0.0
        %2205 = vmatpush1.msra.mxu0 0.0
        %2206 = vmatprep.subr.mxu0 0.0
        %2207 = vmatpush1.msra.mxu0 0.0
        %2208 = vmatprep.subr.mxu0 0.0
        %2209 = vmatpush1.msra.mxu0 0.0
        %2210 = vmatprep.subr.mxu0 0.0
        %2211 = vmatpush1.msra.mxu0 0.0
        %2212 = vmatprep.subr.mxu0 0.0
        %2213 = vmatpush1.msra.mxu0 0.0
        %2214 = vmatprep.subr.mxu0 0.0
        %2215 = vmatpush1.msra.mxu0 0.0
        %2216 = vmatprep.subr.mxu0 0.0
        %2217 = vmatpush1.msra.mxu0 0.0
        %2218 = vmatprep.subr.mxu0 0.0
        %2219 = vmatpush1.msra.mxu0 0.0
        %2220 = vmatprep.subr.mxu0 0.0
        %2221 = vmatpush1.msra.mxu0 0.0
        %2222 = vmatprep.subr.mxu0 0.0
        %2223 = vmatpush1.msra.mxu0 0.0
        %2224 = vmatprep.mubr.f32.mxu0 0.0
        %2225 = vmatmul.mubr.f32.gmra.mrb[0].mxu0 %v2155
        %v2226 = vpop.f32.mrb[0].mxu0
        %v2227 = vadd.f32 %v2152, %v2226
        %v2228 = vpop.f32.mrb[0].mxu0
        %2229 = vmatprep.mubr.f32.mxu0 0.0
        %2230 = vmatmul.mubr.f32.gmra.mrb[0].mxu0 %v2158
        %v2231 = vpop.f32.mrb[0].mxu0
        %v2232 = vadd.f32 %v2152, %v2231
        %v2233 = vpop.f32.mrb[0].mxu0
        %2234 = vdwg.mxu0
        %v2235 = vadd.f32 %v1652, %v2227
        %v2236 = vadd.f32 %v1657, %v2232
        %v2237 = vsel %vm1059, %v2235, 0.0
        %2238 = vadd.xlane.f32.xlu0 %v2237
        %v2239 = vpop.xlane.xlu0 %2238
        %v2240 = vsel %vm1059, %v2236, 0.0
        %2241 = vadd.xlane.f32.xlu0 %v2240
        %v2242 = vpop.xlane.xlu0 %2241
        %v2243 = vmul.f32 %v2239, %v1066
        %v2244 = vmul.f32 %v2242, %v1066
        %v2245 = vsub.f32 %v2235, %v2243
        %v2246 = vsub.f32 %v2236, %v2244
        %v2247 = vmul.f32 %v2245, %v2245
        %v2248 = vmul.f32 %v2246, %v2246
        %v2249 = vsel %vm1059, %v2247, 0.0
        %2250 = vadd.xlane.f32.xlu0 %v2249
        %v2251 = vpop.xlane.xlu0 %2250
        %v2252 = vsel %vm1059, %v2248, 0.0
        %2253 = vadd.xlane.f32.xlu0 %v2252
        %v2254 = vpop.xlane.xlu0 %2253
        %v2255 = vmul.f32 %v2251, %v1066
        %v2256 = vmul.f32 %v2254, %v1066
        %v2257 = vadd.f32 %v2255, 1e-05
        %v2258 = vadd.f32 %v2256, 1e-05
        %v2259 = vrsqrt.pop %v2257
        %v2260 = vrsqrt.pop %v2258
        %v2261 = vmul.f32 %v2245, %v2259
        %v2262 = vmul.f32 %v2246, %v2260
        %v2264 = vlaneseq
        %v2265 = vshrl.u32 %v2264, 7
        %v2266 = vsub.s32 0, %v2265
        %v2267 = vrot.slane %v975, %v2266
        %v2269 = vmul.f32 %v2261, %v2267
        %v2270 = vmul.f32 %v2262, %v2267
        %v2272 = vlaneseq
        %v2273 = vshrl.u32 %v2272, 7
        %v2274 = vsub.s32 0, %v2273
        %v2275 = vrot.slane %v976, %v2274
        %v2277 = vadd.f32 %v2269, %v2275
        %v2278 = vadd.f32 %v2270, %v2275
        %v2280 = vlaneseq
        %v2281 = vshrl.u32 %v2280, 7
        %v2282 = vsub.s32 0, %v2281
        %v2283 = vrot.slane %v981, %v2282
        %v2286 = vsel %vm1059, %v2277, 0
        %v2289 = vsel %vm1059, %v2278, 0
        %2291 = vmatprep.subr.mxu0 0.0
        %2292 = vmatpush1.msra.mxu0 %v977
        %2293 = vmatprep.subr.mxu0 0.0
        %2294 = vmatpush1.msra.mxu0 %v978
        %2295 = vmatprep.subr.mxu0 0.0
        %2296 = vmatpush1.msra.mxu0 %v979
        %2297 = vmatprep.subr.mxu0 0.0
        %2298 = vmatpush1.msra.mxu0 %v980
        %2299 = vmatprep.subr.mxu0 0.0
        %2300 = vmatpush1.msra.mxu0 0.0
        %2301 = vmatprep.subr.mxu0 0.0
        %2302 = vmatpush1.msra.mxu0 0.0
        %2303 = vmatprep.subr.mxu0 0.0
        %2304 = vmatpush1.msra.mxu0 0.0
        %2305 = vmatprep.subr.mxu0 0.0
        %2306 = vmatpush1.msra.mxu0 0.0
        %2307 = vmatprep.subr.mxu0 0.0
        %2308 = vmatpush1.msra.mxu0 0.0
        %2309 = vmatprep.subr.mxu0 0.0
        %2310 = vmatpush1.msra.mxu0 0.0
        %2311 = vmatprep.subr.mxu0 0.0
        %2312 = vmatpush1.msra.mxu0 0.0
        %2313 = vmatprep.subr.mxu0 0.0
        %2314 = vmatpush1.msra.mxu0 0.0
        %2315 = vmatprep.subr.mxu0 0.0
        %2316 = vmatpush1.msra.mxu0 0.0
        %2317 = vmatprep.subr.mxu0 0.0
        %2318 = vmatpush1.msra.mxu0 0.0
        %2319 = vmatprep.subr.mxu0 0.0
        %2320 = vmatpush1.msra.mxu0 0.0
        %2321 = vmatprep.subr.mxu0 0.0
        %2322 = vmatpush1.msra.mxu0 0.0
        %2323 = vmatprep.subr.mxu0 0.0
        %2324 = vmatpush1.msra.mxu0 0.0
        %2325 = vmatprep.subr.mxu0 0.0
        %2326 = vmatpush1.msra.mxu0 0.0
        %2327 = vmatprep.subr.mxu0 0.0
        %2328 = vmatpush1.msra.mxu0 0.0
        %2329 = vmatprep.subr.mxu0 0.0
        %2330 = vmatpush1.msra.mxu0 0.0
        %2331 = vmatprep.subr.mxu0 0.0
        %2332 = vmatpush1.msra.mxu0 0.0
        %2333 = vmatprep.subr.mxu0 0.0
        %2334 = vmatpush1.msra.mxu0 0.0
        %2335 = vmatprep.subr.mxu0 0.0
        %2336 = vmatpush1.msra.mxu0 0.0
        %2337 = vmatprep.subr.mxu0 0.0
        %2338 = vmatpush1.msra.mxu0 0.0
        %2339 = vmatprep.subr.mxu0 0.0
        %2340 = vmatpush1.msra.mxu0 0.0
        %2341 = vmatprep.subr.mxu0 0.0
        %2342 = vmatpush1.msra.mxu0 0.0
        %2343 = vmatprep.subr.mxu0 0.0
        %2344 = vmatpush1.msra.mxu0 0.0
        %2345 = vmatprep.subr.mxu0 0.0
        %2346 = vmatpush1.msra.mxu0 0.0
        %2347 = vmatprep.subr.mxu0 0.0
        %2348 = vmatpush1.msra.mxu0 0.0
        %2349 = vmatprep.subr.mxu0 0.0
        %2350 = vmatpush1.msra.mxu0 0.0
        %2351 = vmatprep.subr.mxu0 0.0
        %2352 = vmatpush1.msra.mxu0 0.0
        %2353 = vmatprep.subr.mxu0 0.0
        %2354 = vmatpush1.msra.mxu0 0.0
        %2355 = vmatprep.mubr.f32.mxu0 0.0
        %2356 = vmatmul.mubr.f32.gmra.mrb[0].mxu0 %v2286
        %v2357 = vpop.f32.mrb[0].mxu0
        %v2358 = vadd.f32 %v2283, %v2357
        %v2359 = vpop.f32.mrb[0].mxu0
        %2360 = vmatprep.mubr.f32.mxu0 0.0
        %2361 = vmatmul.mubr.f32.gmra.mrb[0].mxu0 %v2289
        %v2362 = vpop.f32.mrb[0].mxu0
        %v2363 = vadd.f32 %v2283, %v2362
        %v2364 = vpop.f32.mrb[0].mxu0
        %2365 = vdwg.mxu0
        %v2366 = vmul.f32 %v2358, %v2358
        %v2367 = vmul.f32 %v2363, %v2363
        %v2368 = vmul.f32 %v2358, %v2366
        %v2369 = vmul.f32 %v2363, %v2367
        %v2370 = vmul.f32 %v2368, 0.044715
        %v2371 = vmul.f32 %v2369, 0.044715
        %v2372 = vadd.f32 %v2358, %v2370
        %v2373 = vadd.f32 %v2363, %v2371
        %v2374 = vmul.f32 %v2372, 0.7978846
        %v2375 = vmul.f32 %v2373, 0.7978846
        %v2376 = vtanh.pop %v2374
        %v2377 = vtanh.pop %v2375
        %v2378 = vadd.f32 %v2376, 1.0
        %v2379 = vadd.f32 %v2377, 1.0
        %v2380 = vmul.f32 %v2378, 0.5
        %v2381 = vmul.f32 %v2379, 0.5
        %v2382 = vmul.f32 %v2358, %v2380
        %v2383 = vmul.f32 %v2363, %v2381
        %v2385 = vlaneseq
        %v2386 = vshrl.u32 %v2385, 7
        %v2387 = vsub.s32 0, %v2386
        %v2388 = vrot.slane %v986, %v2387
        %v2391 = vsel %vm1059, %v2382, 0
        %v2394 = vsel %vm1059, %v2383, 0
        %2396 = vmatprep.subr.mxu0 0.0
        %2397 = vmatpush1.msra.mxu0 %v982
        %2398 = vmatprep.subr.mxu0 0.0
        %2399 = vmatpush1.msra.mxu0 %v983
        %2400 = vmatprep.subr.mxu0 0.0
        %2401 = vmatpush1.msra.mxu0 %v984
        %2402 = vmatprep.subr.mxu0 0.0
        %2403 = vmatpush1.msra.mxu0 %v985
        %2404 = vmatprep.subr.mxu0 0.0
        %2405 = vmatpush1.msra.mxu0 0.0
        %2406 = vmatprep.subr.mxu0 0.0
        %2407 = vmatpush1.msra.mxu0 0.0
        %2408 = vmatprep.subr.mxu0 0.0
        %2409 = vmatpush1.msra.mxu0 0.0
        %2410 = vmatprep.subr.mxu0 0.0
        %2411 = vmatpush1.msra.mxu0 0.0
        %2412 = vmatprep.subr.mxu0 0.0
        %2413 = vmatpush1.msra.mxu0 0.0
        %2414 = vmatprep.subr.mxu0 0.0
        %2415 = vmatpush1.msra.mxu0 0.0
        %2416 = vmatprep.subr.mxu0 0.0
        %2417 = vmatpush1.msra.mxu0 0.0
        %2418 = vmatprep.subr.mxu0 0.0
        %2419 = vmatpush1.msra.mxu0 0.0
        %2420 = vmatprep.subr.mxu0 0.0
        %2421 = vmatpush1.msra.mxu0 0.0
        %2422 = vmatprep.subr.mxu0 0.0
        %2423 = vmatpush1.msra.mxu0 0.0
        %2424 = vmatprep.subr.mxu0 0.0
        %2425 = vmatpush1.msra.mxu0 0.0
        %2426 = vmatprep.subr.mxu0 0.0
        %2427 = vmatpush1.msra.mxu0 0.0
        %2428 = vmatprep.subr.mxu0 0.0
        %2429 = vmatpush1.msra.mxu0 0.0
        %2430 = vmatprep.subr.mxu0 0.0
        %2431 = vmatpush1.msra.mxu0 0.0
        %2432 = vmatprep.subr.mxu0 0.0
        %2433 = vmatpush1.msra.mxu0 0.0
        %2434 = vmatprep.subr.mxu0 0.0
        %2435 = vmatpush1.msra.mxu0 0.0
        %2436 = vmatprep.subr.mxu0 0.0
        %2437 = vmatpush1.msra.mxu0 0.0
        %2438 = vmatprep.subr.mxu0 0.0
        %2439 = vmatpush1.msra.mxu0 0.0
        %2440 = vmatprep.subr.mxu0 0.0
        %2441 = vmatpush1.msra.mxu0 0.0
        %2442 = vmatprep.subr.mxu0 0.0
        %2443 = vmatpush1.msra.mxu0 0.0
        %2444 = vmatprep.subr.mxu0 0.0
        %2445 = vmatpush1.msra.mxu0 0.0
        %2446 = vmatprep.subr.mxu0 0.0
        %2447 = vmatpush1.msra.mxu0 0.0
        %2448 = vmatprep.subr.mxu0 0.0
        %2449 = vmatpush1.msra.mxu0 0.0
        %2450 = vmatprep.subr.mxu0 0.0
        %2451 = vmatpush1.msra.mxu0 0.0
        %2452 = vmatprep.subr.mxu0 0.0
        %2453 = vmatpush1.msra.mxu0 0.0
        %2454 = vmatprep.subr.mxu0 0.0
        %2455 = vmatpush1.msra.mxu0 0.0
        %2456 = vmatprep.subr.mxu0 0.0
        %2457 = vmatpush1.msra.mxu0 0.0
        %2458 = vmatprep.subr.mxu0 0.0
        %2459 = vmatpush1.msra.mxu0 0.0
        %2460 = vmatprep.mubr.f32.mxu0 0.0
        %2461 = vmatmul.mubr.f32.gmra.mrb[0].mxu0 %v2391
        %v2462 = vpop.f32.mrb[0].mxu0
        %v2463 = vadd.f32 %v2388, %v2462
        %v2464 = vpop.f32.mrb[0].mxu0
        %2465 = vmatprep.mubr.f32.mxu0 0.0
        %2466 = vmatmul.mubr.f32.gmra.mrb[0].mxu0 %v2394
        %v2467 = vpop.f32.mrb[0].mxu0
        %v2468 = vadd.f32 %v2388, %v2467
        %v2469 = vpop.f32.mrb[0].mxu0
        %2470 = vdwg.mxu0
        %v2471 = vadd.f32 %v2235, %v2463
        %v2472 = vadd.f32 %v2236, %v2468
        %2473 = vst.msk [vmem:[%s922] sm:$0xff] %vm1059, %v2471
        %2474 = vst.msk [vmem:[%s922 + $0x8] sm:$0xff] %vm1059, %v2472
        %s2475 = sand.u32 %s588, 1
        %s2476 = scalar_lea.sflag [#allocation4], %s2475
        %s2477 = sand.u32 %s588, 1
        %s2478 = smul.addr %s2477, 16
        %s2479 = scalar_lea.vmem [#allocation20], %s2478
        // Predicated region
        $region165: #{pose_transformer_forward.1} parent=119 // pred_check
          %p2480 = pneg %p598
        $region166: #{pose_transformer_forward.1} parent=119 // pred_check_branch
          %2482 = sbr.rel (%p2480) target = $region168
        $region167: #{pose_transformer_forward.1} parent=119 // pred_region
          %s2484 = ssub.s32 256, 256
          %2485 = vsyncadd %s2476, %s2484
          %s2486 = smul.addr %s45, 2
          %s2487 = smul.addr %s2486, 128
          %s2488 = scalar_lea.hbm %s25, %s2487
          %s2489 = sshll.u32 %s2479, 4
          %s2490 = int_to_ptr.vmem [resolvable:$true] %s2489
          %2495 = dma.vmem_to_hbm [thread:$0]  %s2490, 256, %s2488, %s2476, 128, 128, 8
        $region168: #{pose_transformer_forward.1} parent=119 // pred_fallthru
          _
      $region120: #{pose_transformer_forward.1} parent=5 // pred_fallthru
        _
      %p2496 = scmp.le.s32.totalorder 2, %s40
      // Predicated region
      $region169: #{pose_transformer_forward.1} parent=5 // pred_check
        %p2497 = pneg %p2496
      $region170: #{pose_transformer_forward.1} parent=5 // pred_check_branch
        %2499 = sbr.rel (%p2497) target = $region172
      $region171: #{pose_transformer_forward.1} parent=5 // pred_region
        %s2500 = ssub.s32 %s40, 2
        // Predicated region
        $region173: #{pose_transformer_forward.1} parent=171 // pred_check
          %p2501 = pneg %p604
        $region174: #{pose_transformer_forward.1} parent=171 // pred_check_branch
          %2503 = sbr.rel (%p2501) target = $region176
        $region175: #{pose_transformer_forward.1} parent=171 // pred_region
          %s2504 = sand.u32 %s589, 1
          %s2505 = scalar_lea.sflag [#allocation4], %s2504
          %s2506 = sand.u32 %s589, 1
          %s2507 = smul.addr %s2506, 16
          %s2508 = scalar_lea.vmem [#allocation20], %s2507
          %2509 = dma.done %s2505, 256
        $region176: #{pose_transformer_forward.1} parent=171 // pred_fallthru
          _
      $region172: #{pose_transformer_forward.1} parent=5 // pred_fallthru
        _
    $region6: #{pose_transformer_forward.1} parent=1 // loop_footer
      %s44 = sadd.s32 1, %s40
    $region7: #{pose_transformer_forward.1} parent=1 // loop_footer_branch
      %39 = sbr.rel target = $region3
    $region8: #{pose_transformer_forward.1} parent=1 // loop_exit
      _
    %2510 = vsyncpa [#allocation3], 1
    %s2511 = scalar_lea.sflag [#allocation3], 1
    %2512 = vsyncpa %s2511, 1
    %2513 = vsyncpa [#allocation6], 1
    %2514 = vsyncpa [#allocation9], 1
    %2515 = vsyncpa [#allocation12], 1
    %2516 = vsyncpa [#allocation15], 1
    %2517 = vsyncpa [#allocation18], 1
    %2518 = vsyncpa [#allocation4], 1
    %s2519 = scalar_lea.sflag [#allocation4], 1
    %2520 = vsyncpa %s2519, 1

</llo_original>
